<compile_context>
chip_gen: v7x
topology: tpu7x:2x2x1
jax: 0.10.0
libtpu: 0.0.40
codegen_flags: <defaults>
</compile_context>

<pallas_src>
import functools
import math

import jax
import jax.numpy as jnp
from jax.experimental import pallas as pl
from jax.experimental.pallas import tpu as pltpu


def _round_up(x, m):
    return (x + m - 1) // m * m


# ---------------------------------------------------------------------------
# Generic tiled matmul kernels: out = act(x @ w + b)
# ---------------------------------------------------------------------------

def _matmul_kernel_single_k(*refs, has_bias, activation):
    """K fits in one block: pure dot + (bias/act) + cast, no scratch, no phases."""
    if has_bias:
        x_ref, w_ref, b_ref, o_ref = refs
    else:
        x_ref, w_ref, o_ref = refs
    acc = jnp.dot(x_ref[...], w_ref[...], preferred_element_type=jnp.float32)
    if has_bias:
        acc = acc + b_ref[...]
    if activation == "relu":
        acc = jnp.maximum(acc, 0.0)
    o_ref[...] = acc.astype(o_ref.dtype)


def _matmul_kernel_multi_k(*refs, has_bias, activation):
    """K split across innermost ('arbitrary') grid axis; f32 VMEM accumulator."""
    if has_bias:
        x_ref, w_ref, b_ref, o_ref, acc_ref = refs
    else:
        x_ref, w_ref, o_ref, acc_ref = refs

    @pl.when(pl.program_id(2) == 0)
    def _():
        acc_ref[...] = jnp.zeros_like(acc_ref)

    acc_ref[...] += jnp.dot(x_ref[...], w_ref[...],
                            preferred_element_type=jnp.float32)

    @pl.when(pl.program_id(2) == pl.num_programs(2) - 1)
    def _():
        acc = acc_ref[...]
        if has_bias:
            acc = acc + b_ref[...]
        if activation == "relu":
            acc = jnp.maximum(acc, 0.0)
        o_ref[...] = acc.astype(o_ref.dtype)


def pallas_matmul(x, w, bias=None, *, activation=None,
                  compute_dtype=jnp.bfloat16, out_dtype=None,
                  tm=None, tn=None, tk=None):
    """act(x @ w + bias) with a weight-stationary tiled Pallas TPU kernel.

    x: (M, K) float32, w: (K, N), bias: (N,) or None. Output (M, N) f32.
    """
    M, K = x.shape
    K2, N = w.shape
    assert K == K2
    out_dtype = out_dtype or x.dtype

    # Tile defaults: MXU-sized, (8,128)-aligned, capped for the v7x 64 MiB VMEM.
    tm = tm if tm is not None else min(256, _round_up(M, 8))
    tn = tn if tn is not None else min(512, _round_up(N, 128))
    k_single_max = 2048                       # single-K-block budget (bf16)
    k_aligned = _round_up(K, 128)
    if tk is None:
        tk = k_aligned if k_aligned <= k_single_max else k_single_max

    m_pad = _round_up(M, tm)
    n_pad = _round_up(N, tn)                  # lane-dense output stores
    k_pad = _round_up(K, tk)                  # K zero-padded: safe accumulation

    xp = x if (m_pad, k_pad) == (M, K) else jnp.pad(
        x, ((0, m_pad - M), (0, k_pad - K)))
    wp = w if (k_pad, n_pad) == (K, N) else jnp.pad(
        w, ((0, k_pad - K), (0, n_pad - N)))
    xp = xp.astype(compute_dtype)
    wp = wp.astype(compute_dtype)

    has_bias = bias is not None
    inputs = [xp, wp]
    if has_bias:
        bp = bias.reshape(1, N).astype(jnp.float32)
        if n_pad != N:
            bp = jnp.pad(bp, ((0, 0), (0, n_pad - N)))
        inputs.append(bp)

    grid_j = n_pad // tn          # weight/output-column axis: OUTER
    grid_i = m_pad // tm          # token axis: INNER (weight block stays resident)
    grid_k = k_pad // tk

    cost = pl.CostEstimate(
        flops=2 * m_pad * k_pad * n_pad,
        transcendentals=0,
        bytes_accessed=(xp.size * xp.dtype.itemsize
                        + wp.size * wp.dtype.itemsize
                        + m_pad * n_pad * jnp.dtype(out_dtype).itemsize),
    )

    if grid_k == 1:
        kernel = functools.partial(_matmul_kernel_single_k,
                                   has_bias=has_bias, activation=activation)
        in_specs = [
            pl.BlockSpec((tm, k_pad), lambda j, i: (i, 0)),
            pl.BlockSpec((k_pad, tn), lambda j, i: (0, j)),   # stationary over i
        ]
        if has_bias:
            in_specs.append(pl.BlockSpec((1, tn), lambda j, i: (0, j)))
        grid = (grid_j, grid_i)
        out_spec = pl.BlockSpec((tm, tn), lambda j, i: (i, j))
        scratch = []
        dims = ("parallel", "parallel")
    else:
        kernel = functools.partial(_matmul_kernel_multi_k,
                                   has_bias=has_bias, activation=activation)
        in_specs = [
            pl.BlockSpec((tm, tk), lambda j, i, k: (i, k)),
            pl.BlockSpec((tk, tn), lambda j, i, k: (k, j)),
        ]
        if has_bias:
            in_specs.append(pl.BlockSpec((1, tn), lambda j, i, k: (0, j)))
        grid = (grid_j, grid_i, grid_k)
        out_spec = pl.BlockSpec((tm, tn), lambda j, i, k: (i, j))
        scratch = [pltpu.VMEM((tm, tn), jnp.float32)]
        dims = ("parallel", "parallel", "arbitrary")

    out = pl.pallas_call(
        kernel,
        out_shape=jax.ShapeDtypeStruct((m_pad, n_pad), out_dtype),
        grid_spec=pltpu.PrefetchScalarGridSpec(
            num_scalar_prefetch=0,
            grid=grid,
            in_specs=in_specs,
            out_specs=out_spec,
            scratch_shapes=scratch,
        ),
        compiler_params=pltpu.CompilerParams(
            dimension_semantics=dims,
            vmem_limit_bytes=48 * 1024 * 1024,
        ),
        cost_estimate=cost,
    )(*inputs)

    return out[:M, :N]


# ---------------------------------------------------------------------------
# Fused causal-softmax attention core (tiny n_ctx), gridded over batch*heads
# ---------------------------------------------------------------------------

def _attention_kernel(q_ref, k_ref, v_ref, mask_ref, o_ref, *, scale):
    q = q_ref[...].astype(jnp.float32)         # (bh, S, dh)
    k = k_ref[...].astype(jnp.float32)
    v = v_ref[...].astype(jnp.float32)
    m = mask_ref[...]                          # (S, S): 1.0 on/below diagonal
    # scores[bh, q, k] = sum_d q[bh, q, d] * k[bh, k, d]
    s = jax.lax.dot_general(q, k, (((2,), (2,)), ((0,), (0,))),
                            preferred_element_type=jnp.float32) * scale
    s = jnp.where(m[None, :, :] > 0.5, s, jnp.float32(-1e9))
    s = s - jnp.max(s, axis=-1, keepdims=True)
    p = jnp.exp(s)
    p = p / jnp.sum(p, axis=-1, keepdims=True)
    # out[bh, q, d] = sum_k p[bh, q, k] * v[bh, k, d]
    o = jax.lax.dot_general(p, v, (((2,), (1,)), ((0,), (0,))),
                            preferred_element_type=jnp.float32)
    o_ref[...] = o.astype(o_ref.dtype)


def pallas_attention(q, k, v, *, scale, bh_block=None):
    """q, k, v: (B, H, S, dh) float32 -> (B, H, S, dh) float32 (causal softmax)."""
    B, H, S, dh = q.shape
    BH = B * H
    bh_block = bh_block if bh_block is not None else min(_round_up(BH, 8), 64)
    bh_pad = _round_up(BH, bh_block)

    def flat(a):
        a = a.reshape(BH, S, dh)
        if bh_pad != BH:
            # zero padding is safe: padded rows softmax over zeros, output zeros.
            a = jnp.pad(a, ((0, bh_pad - BH), (0, 0), (0, 0)))
        return a

    qf, kf, vf = flat(q), flat(k), flat(v)
    mask = jnp.tril(jnp.ones((S, S), jnp.float32))
    kernel = functools.partial(_attention_kernel, scale=scale)
    out = pl.pallas_call(
        kernel,
        out_shape=jax.ShapeDtypeStruct((bh_pad, S, dh), jnp.float32),
        grid_spec=pltpu.PrefetchScalarGridSpec(
            num_scalar_prefetch=0,
            grid=(bh_pad // bh_block,),
            in_specs=[
                pl.BlockSpec((bh_block, S, dh), lambda b: (b, 0, 0)),
                pl.BlockSpec((bh_block, S, dh), lambda b: (b, 0, 0)),
                pl.BlockSpec((bh_block, S, dh), lambda b: (b, 0, 0)),
                pl.BlockSpec((S, S), lambda b: (0, 0)),
            ],
            out_specs=pl.BlockSpec((bh_block, S, dh), lambda b: (b, 0, 0)),
        ),
        compiler_params=pltpu.CompilerParams(
            dimension_semantics=("parallel",)),
    )(qf, kf, vf, mask)
    return out[:BH].reshape(B, H, S, dh)


# ---------------------------------------------------------------------------
# Transformer forward (Pallas path) and parameter init
# ---------------------------------------------------------------------------

def init_params(key, *, d_vocab, d_model, n_ctx, num_heads, d_head, d_mlp,
                num_layers, p):
    inv = 1.0 / math.sqrt(d_model)
    keys = iter(jax.random.split(key, 3 + 6 * num_layers))

    def rnd(shape):
        return jax.random.normal(next(keys), shape, jnp.float32) * inv

    params = {
        "W_E": rnd((d_model, d_vocab)),
        "W_pos": rnd((n_ctx, d_model)),
        "W_U": rnd((d_model, p)),
        "blocks": [],
    }
    for _ in range(num_layers):
        params["blocks"].append({
            "W_Q": rnd((num_heads, d_head, d_model)),
            "W_K": rnd((num_heads, d_head, d_model)),
            "W_V": rnd((num_heads, d_head, d_model)),
            "W_O": rnd((d_model, num_heads * d_head)),
            "W_in": rnd((d_mlp, d_model)),
            "b_in": jnp.zeros((d_mlp,), jnp.float32),
            "W_out": rnd((d_model, d_mlp)),
            "b_out": jnp.zeros((d_model,), jnp.float32),
        })
    return params


def transformer_forward(params, tokens, *, num_heads, d_head, bol_pos=True):
    # TODO(synk): the embedding token gather stays in XLA (jnp.take); a Pallas gather
    # via scalar-prefetched pl.Element indexing is not worth it at (batch, n_ctx=3).
    x = jnp.take(params["W_E"].T, tokens, axis=0)          # (B, S, D)
    if bol_pos:
        x = x + params["W_pos"][: tokens.shape[-1]]
    B, S, D = x.shape
    H, dh = num_heads, d_head
    scale = 1.0 / math.sqrt(d_head)

    for blk in params["blocks"]:
        # ---- attention ----
        x2 = x.reshape(B * S, D)
        w_qkv = jnp.concatenate(
            [blk["W_Q"].reshape(H * dh, D),
             blk["W_K"].reshape(H * dh, D),
             blk["W_V"].reshape(H * dh, D)], axis=0)        # (3*H*dh, D)
        qkv = pallas_matmul(x2, w_qkv.T)                    # (B*S, 3*H*dh)
        qkv = qkv.reshape(B, S, 3, H, dh)
        q = qkv[:, :, 0].transpose(0, 2, 1, 3)              # (B, H, S, dh)
        k = qkv[:, :, 1].transpose(0, 2, 1, 3)
        v = qkv[:, :, 2].transpose(0, 2, 1, 3)
        z = pallas_attention(q, k, v, scale=scale)          # (B, H, S, dh)
        z_flat = z.transpose(0, 2, 1, 3).reshape(B * S, H * dh)
        attn_out = pallas_matmul(z_flat, blk["W_O"].T)      # (B*S, D)
        x = x + attn_out.reshape(B, S, D)

        # ---- MLP (bias + ReLU fused into the kernel epilogue) ----
        x2 = x.reshape(B * S, D)
        h = pallas_matmul(x2, blk["W_in"].T, blk["b_in"], activation="relu")
        m = pallas_matmul(h, blk["W_out"].T, blk["b_out"])
        x = x + m.reshape(B, S, D)

    x_final = x[:, 2, :]                                    # (B, D)
    logits = pallas_matmul(x_final, params["W_U"])          # (B, p) unembed
    return logits


# ---------------------------------------------------------------------------
# Pure-JAX reference (mirrors the PyTorch module exactly, f32 everywhere)
# ---------------------------------------------------------------------------

def reference_forward(params, tokens, *, d_head, bol_pos=True):
    x = jnp.einsum("dbp->bpd", params["W_E"][:, tokens])
    if bol_pos:
        x = x + params["W_pos"][: tokens.shape[-1]]
    B, S, _ = x.shape
    for blk in params["blocks"]:
        k = jnp.einsum("ihd,bpd->biph", blk["W_K"], x)
        q = jnp.einsum("ihd,bpd->biph", blk["W_Q"], x)
        v = jnp.einsum("ihd,bpd->biph", blk["W_V"], x)
        scores = jnp.einsum("biph,biqh->biqp", k, q)
        mask = jnp.tril(jnp.ones((S, S), jnp.float32))
        scores = jnp.tril(scores) - 1e10 * (1.0 - mask)
        attn = jax.nn.softmax(scores / math.sqrt(d_head), axis=-1)
        z = jnp.einsum("biph,biqp->biqh", v, attn)
        z_flat = jnp.transpose(z, (0, 2, 1, 3)).reshape(B, S, -1)
        x = x + jnp.einsum("df,bqf->bqd", blk["W_O"], z_flat)
        h = jax.nn.relu(jnp.einsum("md,bpd->bpm", blk["W_in"], x) + blk["b_in"])
        x = x + jnp.einsum("dm,bpm->bpd", blk["W_out"], h) + blk["b_out"]
    x = x[:, 2, :]
    return x @ params["W_U"]


if __name__ == "__main__":
    # Config values from the spec (already small).
    d_model, d_vocab, n_ctx = 128, 98, 3
    num_heads, num_layers, p = 4, 2, 97
    d_head = d_model // num_heads
    d_mlp = 4 * d_model
    batch = 4

    key = jax.random.PRNGKey(0)
    kp, kt = jax.random.split(key)
    params = init_params(kp, d_vocab=d_vocab, d_model=d_model, n_ctx=n_ctx,
                         num_heads=num_heads, d_head=d_head, d_mlp=d_mlp,
                         num_layers=num_layers, p=p)
    tokens = jax.random.randint(kt, (batch, n_ctx), 0, d_vocab, dtype=jnp.int32)

    fwd = jax.jit(functools.partial(transformer_forward,
                                    num_heads=num_heads, d_head=d_head))
    logits = jax.block_until_ready(fwd(params, tokens))

    ref = reference_forward(params, tokens, d_head=d_head)
    assert logits.shape == (batch, p)
    max_diff = float(jnp.max(jnp.abs(logits - ref)))
    # bf16 compute (f32 accumulation) vs f32 reference -> small tolerance.
    assert jnp.allclose(logits, ref, atol=5e-2, rtol=5e-2), (
        f"mismatch vs reference, max abs diff {max_diff:.4f}")
    print("KERNEL_OK")
</pallas_src>

<mosaic_0001>
module attributes {stable_mosaic.version = 11 : i64} {
  func.func @_matmul_kernel_single_k(%arg0: i32, %arg1: i32, %arg2: memref<16x128xbf16, #tpu.memory_space<vmem>>, %arg3: memref<128x384xbf16, #tpu.memory_space<vmem>>, %arg4: memref<16x384xf32, #tpu.memory_space<vmem>>) attributes {dimension_semantics = [#tpu.dimension_semantics<parallel>, #tpu.dimension_semantics<parallel>], iteration_bounds = array<i64: 1, 1>, scalar_prefetch = 0 : i64, scratch_operands = 0 : i64, tpu.core_type = #tpu.core_type<tc>, window_params = [{transform_indices = @transform_0, window_bounds = array<i64: 16, 128>}, {transform_indices = @transform_1, window_bounds = array<i64: 128, 384>}, {transform_indices = @transform_2, window_bounds = array<i64: 16, 384>}]} {
    %c0 = arith.constant 0 : index
    %c0_0 = arith.constant 0 : index
    %0 = vector.load %arg2[%c0, %c0_0] : memref<16x128xbf16, #tpu.memory_space<vmem>>, vector<16x128xbf16>
    %c0_1 = arith.constant 0 : index
    %c0_2 = arith.constant 0 : index
    %1 = vector.load %arg3[%c0_1, %c0_2] : memref<128x384xbf16, #tpu.memory_space<vmem>>, vector<128x384xbf16>
    %cst = arith.constant dense<0.000000e+00> : vector<16x384xf32>
    %2 = tpu.matmul %0, %1, %cst {dimension_numbers = #tpu.dot_dimension_numbers<[1], [0], [0], [1], [0, 0, 1, 1], [], []>} : vector<16x128xbf16>, vector<128x384xbf16>, vector<16x384xf32> -> vector<16x384xf32>
    %c0_3 = arith.constant 0 : index
    %c0_4 = arith.constant 0 : index
    %3 = vector.load %arg4[%c0_3, %c0_4] : memref<16x384xf32, #tpu.memory_space<vmem>>, vector<16x384xf32>
    tpu.vector_store %arg4[%c0_3, %c0_4], %2 {strides = array<i32>} : memref<16x384xf32, #tpu.memory_space<vmem>>, vector<16x384xf32>,
    return
  }
  func.func @transform_0(%arg0: i32, %arg1: i32) -> (i32, i32) {
    %c0_i32 = arith.constant 0 : i32
    %c0_i32_0 = arith.constant 0 : i32
    return %arg1, %c0_i32 : i32, i32
  }
  func.func @transform_1(%arg0: i32, %arg1: i32) -> (i32, i32) {
    %c0_i32 = arith.constant 0 : i32
    %c0_i32_0 = arith.constant 0 : i32
    return %c0_i32, %arg0 : i32, i32
  }
  func.func @transform_2(%arg0: i32, %arg1: i32) -> (i32, i32) {
    %c0_i32 = arith.constant 0 : i32
    return %arg1, %arg0 : i32, i32
  }
}

module attributes {stable_mosaic.version = 11 : i64} {
  func.func @_attention_kernel(%arg0: i32, %arg1: memref<16x3x32xf32, #tpu.memory_space<vmem>>, %arg2: memref<16x3x32xf32, #tpu.memory_space<vmem>>, %arg3: memref<16x3x32xf32, #tpu.memory_space<vmem>>, %arg4: memref<3x3xf32, #tpu.memory_space<vmem>>, %arg5: memref<16x3x32xf32, #tpu.memory_space<vmem>>) attributes {dimension_semantics = [#tpu.dimension_semantics<parallel>], iteration_bounds = array<i64: 1>, scalar_prefetch = 0 : i64, scratch_operands = 0 : i64, tpu.core_type = #tpu.core_type<tc>, window_params = [{transform_indices = @transform_0, window_bounds = array<i64: 16, 3, 32>}, {transform_indices = @transform_1, window_bounds = array<i64: 16, 3, 32>}, {transform_indices = @transform_2, window_bounds = array<i64: 16, 3, 32>}, {pipeline_mode = #tpu.pipeline_mode<synchronous>, transform_indices = @transform_3, window_bounds = array<i64: 3, 3>}, {transform_indices = @transform_4, window_bounds = array<i64: 16, 3, 32>}]} {
    %c0 = arith.constant 0 : index
    %c0_0 = arith.constant 0 : index
    %c0_1 = arith.constant 0 : index
    %0 = vector.load %arg1[%c0, %c0_0, %c0_1] : memref<16x3x32xf32, #tpu.memory_space<vmem>>, vector<16x3x32xf32>
    %c0_2 = arith.constant 0 : index
    %c0_3 = arith.constant 0 : index
    %c0_4 = arith.constant 0 : index
    %1 = vector.load %arg2[%c0_2, %c0_3, %c0_4] : memref<16x3x32xf32, #tpu.memory_space<vmem>>, vector<16x3x32xf32>
    %c0_5 = arith.constant 0 : index
    %c0_6 = arith.constant 0 : index
    %c0_7 = arith.constant 0 : index
    %2 = vector.load %arg3[%c0_5, %c0_6, %c0_7] : memref<16x3x32xf32, #tpu.memory_space<vmem>>, vector<16x3x32xf32>
    %c0_8 = arith.constant 0 : index
    %c0_9 = arith.constant 0 : index
    %3 = vector.load %arg4[%c0_8, %c0_9] : memref<3x3xf32, #tpu.memory_space<vmem>>, vector<3x3xf32>
    %cst = arith.constant dense<0.000000e+00> : vector<16x3x3xf32>
    %4 = tpu.matmul %0, %1, %cst {dimension_numbers = #tpu.dot_dimension_numbers<[2], [2], [1], [1], [0, 0, 0, 1, 1, 1], [0], [0]>} : vector<16x3x32xf32>, vector<16x3x32xf32>, vector<16x3x3xf32> -> vector<16x3x3xf32>
    %cst_10 = arith.constant 0.176776692 : f32
    %5 = vector.broadcast %cst_10 : f32 to vector<16x3x3xf32>
    %6 = arith.mulf %4, %5 : vector<16x3x3xf32>
    %7 = vector.shape_cast %3 : vector<3x3xf32> to vector<1x3x3xf32>
    %cst_11 = arith.constant 5.000000e-01 : f32
    %8 = vector.broadcast %cst_11 : f32 to vector<1x3x3xf32>
    %9 = arith.cmpf ogt, %7, %8 : vector<1x3x3xf32>
    %cst_12 = arith.constant -1.000000e+09 : f32
    %10 = vector.shape_cast %9 : vector<1x3x3xi1> to vector<1x3x3xi1>
    %11 = vector.broadcast %10 : vector<1x3x3xi1> to vector<16x3x3xi1>
    %12 = vector.broadcast %cst_12 : f32 to vector<16x3x3xf32>
    %13 = arith.select %11, %6, %12 : vector<16x3x3xi1>, vector<16x3x3xf32>
    %cst_13 = arith.constant dense<0xFF800000> : vector<16x3xf32>
    %14 = vector.multi_reduction <maximumf>, %13, %cst_13 [2] : vector<16x3x3xf32> to vector<16x3xf32>
    %15 = vector.shape_cast %14 : vector<16x3xf32> to vector<16x3x1xf32>
    %16 = vector.broadcast %15 : vector<16x3x1xf32> to vector<16x3x3xf32>
    %17 = arith.subf %13, %16 : vector<16x3x3xf32>
    %18 = math.exp %17 : vector<16x3x3xf32>
    %cst_14 = arith.constant dense<0.000000e+00> : vector<16x3xf32>
    %19 = vector.multi_reduction <add>, %18, %cst_14 [2] : vector<16x3x3xf32> to vector<16x3xf32>
    %20 = vector.shape_cast %19 : vector<16x3xf32> to vector<16x3x1xf32>
    %21 = vector.broadcast %20 : vector<16x3x1xf32> to vector<16x3x3xf32>
    %22 = arith.divf %18, %21 : vector<16x3x3xf32>
    %cst_15 = arith.constant dense<0.000000e+00> : vector<16x3x32xf32>
    %23 = tpu.matmul %22, %2, %cst_15 {dimension_numbers = #tpu.dot_dimension_numbers<[2], [1], [1], [2], [0, 0, 0, 1, 1, 2], [0], [0]>} : vector<16x3x3xf32>, vector<16x3x32xf32>, vector<16x3x32xf32> -> vector<16x3x32xf32>
    %c0_16 = arith.constant 0 : index
    %c0_17 = arith.constant 0 : index
    %c0_18 = arith.constant 0 : index
    %24 = vector.load %arg5[%c0_16, %c0_17, %c0_18] : memref<16x3x32xf32, #tpu.memory_space<vmem>>, vector<16x3x32xf32>
    tpu.vector_store %arg5[%c0_16, %c0_17, %c0_18], %23 {strides = array<i32>} : memref<16x3x32xf32, #tpu.memory_space<vmem>>, vector<16x3x32xf32>,
    return
  }
  func.func @transform_0(%arg0: i32) -> (i32, i32, i32) {
    %c0_i32 = arith.constant 0 : i32
    %c0_i32_0 = arith.constant 0 : i32
    %c0_i32_1 = arith.constant 0 : i32
    return %arg0, %c0_i32, %c0_i32_0 : i32, i32, i32
  }
  func.func @transform_1(%arg0: i32) -> (i32, i32, i32) {
    %c0_i32 = arith.constant 0 : i32
    %c0_i32_0 = arith.constant 0 : i32
    %c0_i32_1 = arith.constant 0 : i32
    return %arg0, %c0_i32, %c0_i32_0 : i32, i32, i32
  }
  func.func @transform_2(%arg0: i32) -> (i32, i32, i32) {
    %c0_i32 = arith.constant 0 : i32
    %c0_i32_0 = arith.constant 0 : i32
    %c0_i32_1 = arith.constant 0 : i32
    return %arg0, %c0_i32, %c0_i32_0 : i32, i32, i32
  }
  func.func @transform_3(%arg0: i32) -> (i32, i32) {
    %c0_i32 = arith.constant 0 : i32
    %c0_i32_0 = arith.constant 0 : i32
    %c0_i32_1 = arith.constant 0 : i32
    return %c0_i32, %c0_i32_0 : i32, i32
  }
  func.func @transform_4(%arg0: i32) -> (i32, i32, i32) {
    %c0_i32 = arith.constant 0 : i32
    %c0_i32_0 = arith.constant 0 : i32
    %c0_i32_1 = arith.constant 0 : i32
    return %arg0, %c0_i32, %c0_i32_0 : i32, i32, i32
  }
}

module attributes {stable_mosaic.version = 11 : i64} {
  func.func @_matmul_kernel_single_k(%arg0: i32, %arg1: i32, %arg2: memref<16x128xbf16, #tpu.memory_space<vmem>>, %arg3: memref<128x128xbf16, #tpu.memory_space<vmem>>, %arg4: memref<16x128xf32, #tpu.memory_space<vmem>>) attributes {dimension_semantics = [#tpu.dimension_semantics<parallel>, #tpu.dimension_semantics<parallel>], iteration_bounds = array<i64: 1, 1>, scalar_prefetch = 0 : i64, scratch_operands = 0 : i64, tpu.core_type = #tpu.core_type<tc>, window_params = [{transform_indices = @transform_0, window_bounds = array<i64: 16, 128>}, {transform_indices = @transform_1, window_bounds = array<i64: 128, 128>}, {transform_indices = @transform_2, window_bounds = array<i64: 16, 128>}]} {
    %c0 = arith.constant 0 : index
    %c0_0 = arith.constant 0 : index
    %0 = vector.load %arg2[%c0, %c0_0] : memref<16x128xbf16, #tpu.memory_space<vmem>>, vector<16x128xbf16>
    %c0_1 = arith.constant 0 : index
    %c0_2 = arith.constant 0 : index
    %1 = vector.load %arg3[%c0_1, %c0_2] : memref<128x128xbf16, #tpu.memory_space<vmem>>, vector<128x128xbf16>
    %cst = arith.constant dense<0.000000e+00> : vector<16x128xf32>
    %2 = tpu.matmul %0, %1, %cst {dimension_numbers = #tpu.dot_dimension_numbers<[1], [0], [0], [1], [0, 0, 1, 1], [], []>} : vector<16x128xbf16>, vector<128x128xbf16>, vector<16x128xf32> -> vector<16x128xf32>
    %c0_3 = arith.constant 0 : index
    %c0_4 = arith.constant 0 : index
    %3 = vector.load %arg4[%c0_3, %c0_4] : memref<16x128xf32, #tpu.memory_space<vmem>>, vector<16x128xf32>
    tpu.vector_store %arg4[%c0_3, %c0_4], %2 {strides = array<i32>} : memref<16x128xf32, #tpu.memory_space<vmem>>, vector<16x128xf32>,
    return
  }
  func.func @transform_0(%arg0: i32, %arg1: i32) -> (i32, i32) {
    %c0_i32 = arith.constant 0 : i32
    %c0_i32_0 = arith.constant 0 : i32
    return %arg1, %c0_i32 : i32, i32
  }
  func.func @transform_1(%arg0: i32, %arg1: i32) -> (i32, i32) {
    %c0_i32 = arith.constant 0 : i32
    %c0_i32_0 = arith.constant 0 : i32
    return %c0_i32, %arg0 : i32, i32
  }
  func.func @transform_2(%arg0: i32, %arg1: i32) -> (i32, i32) {
    %c0_i32 = arith.constant 0 : i32
    return %arg1, %arg0 : i32, i32
  }
}

module attributes {stable_mosaic.version = 11 : i64} {
  func.func @_matmul_kernel_single_k(%arg0: i32, %arg1: i32, %arg2: memref<16x128xbf16, #tpu.memory_space<vmem>>, %arg3: memref<128x512xbf16, #tpu.memory_space<vmem>>, %arg4: memref<1x512xf32, #tpu.memory_space<vmem>>, %arg5: memref<16x512xf32, #tpu.memory_space<vmem>>) attributes {dimension_semantics = [#tpu.dimension_semantics<parallel>, #tpu.dimension_semantics<parallel>], iteration_bounds = array<i64: 1, 1>, scalar_prefetch = 0 : i64, scratch_operands = 0 : i64, tpu.core_type = #tpu.core_type<tc>, window_params = [{transform_indices = @transform_0, window_bounds = array<i64: 16, 128>}, {transform_indices = @transform_1, window_bounds = array<i64: 128, 512>}, {transform_indices = @transform_2, window_bounds = array<i64: 1, 512>}, {transform_indices = @transform_3, window_bounds = array<i64: 16, 512>}]} {
    %c0 = arith.constant 0 : index
    %c0_0 = arith.constant 0 : index
    %0 = vector.load %arg2[%c0, %c0_0] : memref<16x128xbf16, #tpu.memory_space<vmem>>, vector<16x128xbf16>
    %c0_1 = arith.constant 0 : index
    %c0_2 = arith.constant 0 : index
    %1 = vector.load %arg3[%c0_1, %c0_2] : memref<128x512xbf16, #tpu.memory_space<vmem>>, vector<128x512xbf16>
    %cst = arith.constant dense<0.000000e+00> : vector<16x512xf32>
    %2 = tpu.matmul %0, %1, %cst {dimension_numbers = #tpu.dot_dimension_numbers<[1], [0], [0], [1], [0, 0, 1, 1], [], []>} : vector<16x128xbf16>, vector<128x512xbf16>, vector<16x512xf32> -> vector<16x512xf32>
    %c0_3 = arith.constant 0 : index
    %c0_4 = arith.constant 0 : index
    %3 = vector.load %arg4[%c0_3, %c0_4] : memref<1x512xf32, #tpu.memory_space<vmem>>, vector<1x512xf32>
    %4 = vector.broadcast %3 : vector<1x512xf32> to vector<16x512xf32>
    %5 = arith.addf %2, %4 : vector<16x512xf32>
    %cst_5 = arith.constant 0.000000e+00 : f32
    %6 = vector.broadcast %cst_5 : f32 to vector<16x512xf32>
    %7 = arith.maximumf %5, %6 : vector<16x512xf32>
    %c0_6 = arith.constant 0 : index
    %c0_7 = arith.constant 0 : index
    %8 = vector.load %arg5[%c0_6, %c0_7] : memref<16x512xf32, #tpu.memory_space<vmem>>, vector<16x512xf32>
    tpu.vector_store %arg5[%c0_6, %c0_7], %7 {strides = array<i32>} : memref<16x512xf32, #tpu.memory_space<vmem>>, vector<16x512xf32>,
    return
  }
  func.func @transform_0(%arg0: i32, %arg1: i32) -> (i32, i32) {
    %c0_i32 = arith.constant 0 : i32
    %c0_i32_0 = arith.constant 0 : i32
    return %arg1, %c0_i32 : i32, i32
  }
  func.func @transform_1(%arg0: i32, %arg1: i32) -> (i32, i32) {
    %c0_i32 = arith.constant 0 : i32
    %c0_i32_0 = arith.constant 0 : i32
    return %c0_i32, %arg0 : i32, i32
  }
  func.func @transform_2(%arg0: i32, %arg1: i32) -> (i32, i32) {
    %c0_i32 = arith.constant 0 : i32
    %c0_i32_0 = arith.constant 0 : i32
    return %c0_i32, %arg0 : i32, i32
  }
  func.func @transform_3(%arg0: i32, %arg1: i32) -> (i32, i32) {
    %c0_i32 = arith.constant 0 : i32
    return %arg1, %arg0 : i32, i32
  }
}

module attributes {stable_mosaic.version = 11 : i64} {
  func.func @_matmul_kernel_single_k(%arg0: i32, %arg1: i32, %arg2: memref<16x512xbf16, #tpu.memory_space<vmem>>, %arg3: memref<512x128xbf16, #tpu.memory_space<vmem>>, %arg4: memref<1x128xf32, #tpu.memory_space<vmem>>, %arg5: memref<16x128xf32, #tpu.memory_space<vmem>>) attributes {dimension_semantics = [#tpu.dimension_semantics<parallel>, #tpu.dimension_semantics<parallel>], iteration_bounds = array<i64: 1, 1>, scalar_prefetch = 0 : i64, scratch_operands = 0 : i64, tpu.core_type = #tpu.core_type<tc>, window_params = [{transform_indices = @transform_0, window_bounds = array<i64: 16, 512>}, {transform_indices = @transform_1, window_bounds = array<i64: 512, 128>}, {transform_indices = @transform_2, window_bounds = array<i64: 1, 128>}, {transform_indices = @transform_3, window_bounds = array<i64: 16, 128>}]} {
    %c0 = arith.constant 0 : index
    %c0_0 = arith.constant 0 : index
    %0 = vector.load %arg2[%c0, %c0_0] : memref<16x512xbf16, #tpu.memory_space<vmem>>, vector<16x512xbf16>
    %c0_1 = arith.constant 0 : index
    %c0_2 = arith.constant 0 : index
    %1 = vector.load %arg3[%c0_1, %c0_2] : memref<512x128xbf16, #tpu.memory_space<vmem>>, vector<512x128xbf16>
    %cst = arith.constant dense<0.000000e+00> : vector<16x128xf32>
    %2 = tpu.matmul %0, %1, %cst {dimension_numbers = #tpu.dot_dimension_numbers<[1], [0], [0], [1], [0, 0, 1, 1], [], []>} : vector<16x512xbf16>, vector<512x128xbf16>, vector<16x128xf32> -> vector<16x128xf32>
    %c0_3 = arith.constant 0 : index
    %c0_4 = arith.constant 0 : index
    %3 = vector.load %arg4[%c0_3, %c0_4] : memref<1x128xf32, #tpu.memory_space<vmem>>, vector<1x128xf32>
    %4 = vector.broadcast %3 : vector<1x128xf32> to vector<16x128xf32>
    %5 = arith.addf %2, %4 : vector<16x128xf32>
    %c0_5 = arith.constant 0 : index
    %c0_6 = arith.constant 0 : index
    %6 = vector.load %arg5[%c0_5, %c0_6] : memref<16x128xf32, #tpu.memory_space<vmem>>, vector<16x128xf32>
    tpu.vector_store %arg5[%c0_5, %c0_6], %5 {strides = array<i32>} : memref<16x128xf32, #tpu.memory_space<vmem>>, vector<16x128xf32>,
    return
  }
  func.func @transform_0(%arg0: i32, %arg1: i32) -> (i32, i32) {
    %c0_i32 = arith.constant 0 : i32
    %c0_i32_0 = arith.constant 0 : i32
    return %arg1, %c0_i32 : i32, i32
  }
  func.func @transform_1(%arg0: i32, %arg1: i32) -> (i32, i32) {
    %c0_i32 = arith.constant 0 : i32
    %c0_i32_0 = arith.constant 0 : i32
    return %c0_i32, %arg0 : i32, i32
  }
  func.func @transform_2(%arg0: i32, %arg1: i32) -> (i32, i32) {
    %c0_i32 = arith.constant 0 : i32
    %c0_i32_0 = arith.constant 0 : i32
    return %c0_i32, %arg0 : i32, i32
  }
  func.func @transform_3(%arg0: i32, %arg1: i32) -> (i32, i32) {
    %c0_i32 = arith.constant 0 : i32
    return %arg1, %arg0 : i32, i32
  }
}

module attributes {stable_mosaic.version = 11 : i64} {
  func.func @_matmul_kernel_single_k(%arg0: i32, %arg1: i32, %arg2: memref<8x128xbf16, #tpu.memory_space<vmem>>, %arg3: memref<128x128xbf16, #tpu.memory_space<vmem>>, %arg4: memref<8x128xf32, #tpu.memory_space<vmem>>) attributes {dimension_semantics = [#tpu.dimension_semantics<parallel>, #tpu.dimension_semantics<parallel>], iteration_bounds = array<i64: 1, 1>, scalar_prefetch = 0 : i64, scratch_operands = 0 : i64, tpu.core_type = #tpu.core_type<tc>, window_params = [{transform_indices = @transform_0, window_bounds = array<i64: 8, 128>}, {transform_indices = @transform_1, window_bounds = array<i64: 128, 128>}, {transform_indices = @transform_2, window_bounds = array<i64: 8, 128>}]} {
    %c0 = arith.constant 0 : index
    %c0_0 = arith.constant 0 : index
    %0 = vector.load %arg2[%c0, %c0_0] : memref<8x128xbf16, #tpu.memory_space<vmem>>, vector<8x128xbf16>
    %c0_1 = arith.constant 0 : index
    %c0_2 = arith.constant 0 : index
    %1 = vector.load %arg3[%c0_1, %c0_2] : memref<128x128xbf16, #tpu.memory_space<vmem>>, vector<128x128xbf16>
    %cst = arith.constant dense<0.000000e+00> : vector<8x128xf32>
    %2 = tpu.matmul %0, %1, %cst {dimension_numbers = #tpu.dot_dimension_numbers<[1], [0], [0], [1], [0, 0, 1, 1], [], []>} : vector<8x128xbf16>, vector<128x128xbf16>, vector<8x128xf32> -> vector<8x128xf32>
    %c0_3 = arith.constant 0 : index
    %c0_4 = arith.constant 0 : index
    %3 = vector.load %arg4[%c0_3, %c0_4] : memref<8x128xf32, #tpu.memory_space<vmem>>, vector<8x128xf32>
    tpu.vector_store %arg4[%c0_3, %c0_4], %2 {strides = array<i32>} : memref<8x128xf32, #tpu.memory_space<vmem>>, vector<8x128xf32>,
    return
  }
  func.func @transform_0(%arg0: i32, %arg1: i32) -> (i32, i32) {
    %c0_i32 = arith.constant 0 : i32
    %c0_i32_0 = arith.constant 0 : i32
    return %arg1, %c0_i32 : i32, i32
  }
  func.func @transform_1(%arg0: i32, %arg1: i32) -> (i32, i32) {
    %c0_i32 = arith.constant 0 : i32
    %c0_i32_0 = arith.constant 0 : i32
    return %c0_i32, %arg0 : i32, i32
  }
  func.func @transform_2(%arg0: i32, %arg1: i32) -> (i32, i32) {
    %c0_i32 = arith.constant 0 : i32
    return %arg1, %arg0 : i32, i32
  }
}

</mosaic_0001>

<llo_original>
// kernel: transformer_forward.11
$region0: #{transformer_forward.11}
  #allocation0 [shape = 'u32[]', space=smem, size = 0x4, offset = 0x4, fixed_abs, tag = 'smem constant byte address 0x4 - core index']
  #allocation1 [shape = 'u32[144,128]{1,0:T(1,128)}', space=vmem, size = 0x12000, scoped, tag = 'internal scratch']
  %s0 = inlined_call_operand.vmem [shape: bf16[16,128], index: 0, kind: input, shape index: {}]
  %s1 = inlined_call_operand.vmem [shape: bf16[128,384], index: 1, kind: input, shape index: {}]
  %s2 = inlined_call_operand.vmem [shape: f32[16,384], index: 2, kind: output, shape index: {}]
  %s3 = sld [smem:[#allocation0]]
  $region18: #{transformer_forward.11} parent=0
    _
  %s5 = ssub.s32 1, %s3
  %s6 = scalar_select 0, %s5, %s3
  // Predicated region
  $region2: #{transformer_forward.11} parent=0 // pred_check
    _
  $region3: #{transformer_forward.11} parent=0 // pred_check_branch
    %8 = sbr.rel (0) target = $region5
  $region4: #{transformer_forward.11} parent=0 // pred_region
    _
  $region5: #{transformer_forward.11} parent=0 // pred_fallthru
    _
  // Predicated region
  $region6: #{transformer_forward.11} parent=0 // pred_check
    _
  $region7: #{transformer_forward.11} parent=0 // pred_check_branch
    %10 = sbr.rel (0) target = $region9
  $region8: #{transformer_forward.11} parent=0 // pred_region
    _
  $region9: #{transformer_forward.11} parent=0 // pred_fallthru
    _
  %v12 = vld [vmem:[%s0] sm:$0xf]
  %v13 = vld [vmem:[%s0 + $0x4] sm:$0xf]
  %v14 = vld [vmem:[%s1] sm:$0xff]
  %v15 = vld [vmem:[%s1 + $0x8] sm:$0xf]
  %v16 = vld [vmem:[%s1 + $0xc] sm:$0xff]
  %v17 = vld [vmem:[%s1 + $0x14] sm:$0xf]
  %v18 = vld [vmem:[%s1 + $0x18] sm:$0xff]
  %v19 = vld [vmem:[%s1 + $0x20] sm:$0xf]
  %v20 = vld [vmem:[%s1 + $0x24] sm:$0xff]
  %v21 = vld [vmem:[%s1 + $0x2c] sm:$0xf]
  %v22 = vld [vmem:[%s1 + $0x30] sm:$0xff]
  %v23 = vld [vmem:[%s1 + $0x38] sm:$0xf]
  %v24 = vld [vmem:[%s1 + $0x3c] sm:$0xff]
  %v25 = vld [vmem:[%s1 + $0x44] sm:$0xf]
  %v26 = vld [vmem:[%s1 + $0x48] sm:$0xff]
  %v27 = vld [vmem:[%s1 + $0x50] sm:$0xf]
  %v28 = vld [vmem:[%s1 + $0x54] sm:$0xff]
  %v29 = vld [vmem:[%s1 + $0x5c] sm:$0xf]
  %v30 = vld [vmem:[%s1 + $0x60] sm:$0xff]
  %v31 = vld [vmem:[%s1 + $0x68] sm:$0xf]
  %v32 = vld [vmem:[%s1 + $0x6c] sm:$0xff]
  %v33 = vld [vmem:[%s1 + $0x74] sm:$0xf]
  %v34 = vld [vmem:[%s1 + $0x78] sm:$0xff]
  %v35 = vld [vmem:[%s1 + $0x80] sm:$0xf]
  %v36 = vld [vmem:[%s1 + $0x84] sm:$0xff]
  %v37 = vld [vmem:[%s1 + $0x8c] sm:$0xf]
  %v38 = vld [vmem:[%s1 + $0x90] sm:$0xff]
  %v39 = vld [vmem:[%s1 + $0x98] sm:$0xf]
  %v40 = vld [vmem:[%s1 + $0x9c] sm:$0xff]
  %v41 = vld [vmem:[%s1 + $0xa4] sm:$0xf]
  %v42 = vld [vmem:[%s1 + $0xa8] sm:$0xff]
  %v43 = vld [vmem:[%s1 + $0xb0] sm:$0xf]
  %v44 = vld [vmem:[%s1 + $0xb4] sm:$0xff]
  %v45 = vld [vmem:[%s1 + $0xbc] sm:$0xf]
  %v48 = vunpack.c.l.b16 %v12
  %v49 = vunpack.c.l.b16 %v13
  %v50 = vpack.c.b16 %v49, %v48
  %v84 = vunpack.c.l.b16 %v14
  %v85 = vunpack.c.h.b16 %v14
  %v86 = vunpack.c.l.b16 %v15
  %v87 = vunpack.c.l.b16 %v16
  %v88 = vunpack.c.h.b16 %v16
  %v89 = vunpack.c.l.b16 %v17
  %v90 = vunpack.c.l.b16 %v18
  %v91 = vunpack.c.h.b16 %v18
  %v92 = vunpack.c.l.b16 %v19
  %v93 = vunpack.c.l.b16 %v20
  %v94 = vunpack.c.h.b16 %v20
  %v95 = vunpack.c.l.b16 %v21
  %v96 = vunpack.c.l.b16 %v22
  %v97 = vunpack.c.h.b16 %v22
  %v98 = vunpack.c.l.b16 %v23
  %v99 = vunpack.c.l.b16 %v24
  %v100 = vunpack.c.h.b16 %v24
  %v101 = vunpack.c.l.b16 %v25
  %v102 = vunpack.c.l.b16 %v26
  %v103 = vunpack.c.h.b16 %v26
  %v104 = vunpack.c.l.b16 %v27
  %v105 = vunpack.c.l.b16 %v28
  %v106 = vunpack.c.h.b16 %v28
  %v107 = vunpack.c.l.b16 %v29
  %v108 = vunpack.c.l.b16 %v30
  %v109 = vunpack.c.h.b16 %v30
  %v110 = vunpack.c.l.b16 %v31
  %v111 = vunpack.c.l.b16 %v32
  %v112 = vunpack.c.h.b16 %v32
  %v113 = vunpack.c.l.b16 %v33
  %v114 = vunpack.c.l.b16 %v34
  %v115 = vunpack.c.h.b16 %v34
  %v116 = vunpack.c.l.b16 %v35
  %v117 = vunpack.c.l.b16 %v36
  %v118 = vunpack.c.h.b16 %v36
  %v119 = vunpack.c.l.b16 %v37
  %v120 = vunpack.c.l.b16 %v38
  %v121 = vunpack.c.h.b16 %v38
  %v122 = vunpack.c.l.b16 %v39
  %v123 = vunpack.c.l.b16 %v40
  %v124 = vunpack.c.h.b16 %v40
  %v125 = vunpack.c.l.b16 %v41
  %v126 = vunpack.c.l.b16 %v42
  %v127 = vunpack.c.h.b16 %v42
  %v128 = vunpack.c.l.b16 %v43
  %v129 = vunpack.c.l.b16 %v44
  %v130 = vunpack.c.h.b16 %v44
  %v131 = vunpack.c.l.b16 %v45
  %v132 = vpack.c.b16 %v87, %v84
  %v133 = vpack.c.b16 %v88, %v85
  %v134 = vpack.c.b16 %v89, %v86
  %v135 = vpack.c.b16 %v93, %v90
  %v136 = vpack.c.b16 %v94, %v91
  %v137 = vpack.c.b16 %v95, %v92
  %v138 = vpack.c.b16 %v99, %v96
  %v139 = vpack.c.b16 %v100, %v97
  %v140 = vpack.c.b16 %v101, %v98
  %v141 = vpack.c.b16 %v105, %v102
  %v142 = vpack.c.b16 %v106, %v103
  %v143 = vpack.c.b16 %v107, %v104
  %v144 = vpack.c.b16 %v111, %v108
  %v145 = vpack.c.b16 %v112, %v109
  %v146 = vpack.c.b16 %v113, %v110
  %v147 = vpack.c.b16 %v117, %v114
  %v148 = vpack.c.b16 %v118, %v115
  %v149 = vpack.c.b16 %v119, %v116
  %v150 = vpack.c.b16 %v123, %v120
  %v151 = vpack.c.b16 %v124, %v121
  %v152 = vpack.c.b16 %v125, %v122
  %v153 = vpack.c.b16 %v129, %v126
  %v154 = vpack.c.b16 %v130, %v127
  %v155 = vpack.c.b16 %v131, %v128
  %180 = vmatprep.subr.bf16.mxu0 %v133
  %181 = vmatpush1.bf16.msra.mxu0 %v132
  %182 = vmatprep.subr.bf16.mxu0 %v136
  %183 = vmatpush1.bf16.msra.mxu0 %v135
  %184 = vmatprep.subr.bf16.mxu0 %v139
  %185 = vmatpush1.bf16.msra.mxu0 %v138
  %186 = vmatprep.subr.bf16.mxu0 %v142
  %187 = vmatpush1.bf16.msra.mxu0 %v141
  %188 = vmatprep.subr.bf16.mxu0 %v145
  %189 = vmatpush1.bf16.msra.mxu0 %v144
  %190 = vmatprep.subr.bf16.mxu0 %v148
  %191 = vmatpush1.bf16.msra.mxu0 %v147
  %192 = vmatprep.subr.bf16.mxu0 %v151
  %193 = vmatpush1.bf16.msra.mxu0 %v150
  %194 = vmatprep.subr.bf16.mxu0 %v154
  %195 = vmatpush1.bf16.msra.mxu0 %v153
  %196 = vmatprep.subr.bf16.mxu0 0
  %197 = vmatpush1.bf16.msra.mxu0 0
  %198 = vmatprep.subr.bf16.mxu0 0
  %199 = vmatpush1.bf16.msra.mxu0 0
  %200 = vmatprep.subr.bf16.mxu0 0
  %201 = vmatpush1.bf16.msra.mxu0 0
  %202 = vmatprep.subr.bf16.mxu0 0
  %203 = vmatpush1.bf16.msra.mxu0 0
  %204 = vmatprep.subr.bf16.mxu0 0
  %205 = vmatpush1.bf16.msra.mxu0 0
  %206 = vmatprep.subr.bf16.mxu0 0
  %207 = vmatpush1.bf16.msra.mxu0 0
  %208 = vmatprep.subr.bf16.mxu0 0
  %209 = vmatpush1.bf16.msra.mxu0 0
  %210 = vmatprep.subr.bf16.mxu0 0
  %211 = vmatpush1.bf16.msra.mxu0 0
  %212 = vmatprep.mubr.bf16.mxu0 0
  %213 = vmatmul.mubr.bf16.gmra.mrb[0].mxu0 %v50
  %v214 = vpop.f32.mrb[0].mxu0
  %v215 = vadd.f32 0.0, %v214
  %v216 = vpop.f32.mrb[0].mxu0
  %v217 = vadd.f32 0.0, %v216
  %v218 = vpop.f32.mrb[0].mxu0
  %v219 = vadd.f32 0.0, %v218
  %v220 = vpop.f32.mrb[0].mxu0
  %v221 = vadd.f32 0.0, %v220
  %222 = vdwg.mxu0
  %223 = vmatprep.subr.bf16.mxu0 0
  %224 = vmatpush1.bf16.msra.mxu0 %v134
  %225 = vmatprep.subr.bf16.mxu0 0
  %226 = vmatpush1.bf16.msra.mxu0 %v137
  %227 = vmatprep.subr.bf16.mxu0 0
  %228 = vmatpush1.bf16.msra.mxu0 %v140
  %229 = vmatprep.subr.bf16.mxu0 0
  %230 = vmatpush1.bf16.msra.mxu0 %v143
  %231 = vmatprep.subr.bf16.mxu0 0
  %232 = vmatpush1.bf16.msra.mxu0 %v146
  %233 = vmatprep.subr.bf16.mxu0 0
  %234 = vmatpush1.bf16.msra.mxu0 %v149
  %235 = vmatprep.subr.bf16.mxu0 0
  %236 = vmatpush1.bf16.msra.mxu0 %v152
  %237 = vmatprep.subr.bf16.mxu0 0
  %238 = vmatpush1.bf16.msra.mxu0 %v155
  %239 = vmatprep.subr.bf16.mxu0 0
  %240 = vmatpush1.bf16.msra.mxu0 0
  %241 = vmatprep.subr.bf16.mxu0 0
  %242 = vmatpush1.bf16.msra.mxu0 0
  %243 = vmatprep.subr.bf16.mxu0 0
  %244 = vmatpush1.bf16.msra.mxu0 0
  %245 = vmatprep.subr.bf16.mxu0 0
  %246 = vmatpush1.bf16.msra.mxu0 0
  %247 = vmatprep.subr.bf16.mxu0 0
  %248 = vmatpush1.bf16.msra.mxu0 0
  %249 = vmatprep.subr.bf16.mxu0 0
  %250 = vmatpush1.bf16.msra.mxu0 0
  %251 = vmatprep.subr.bf16.mxu0 0
  %252 = vmatpush1.bf16.msra.mxu0 0
  %253 = vmatprep.subr.bf16.mxu0 0
  %254 = vmatpush1.bf16.msra.mxu0 0
  %255 = vmatprep.mubr.bf16.mxu0 0
  %256 = vmatmul.mubr.bf16.gmra.mrb[0].mxu0 %v50
  %v257 = vpop.f32.mrb[0].mxu0
  %v258 = vadd.f32 0.0, %v257
  %v259 = vpop.f32.mrb[0].mxu0
  %v260 = vpop.f32.mrb[0].mxu0
  %v261 = vadd.f32 0.0, %v260
  %v262 = vpop.f32.mrb[0].mxu0
  %263 = vdwg.mxu0
  %264 = vst [vmem:[%s2] sm:$0xff] %v215
  %265 = vst [vmem:[%s2 + $0x8] sm:$0xff] %v217
  %266 = vst [vmem:[%s2 + $0x10] sm:$0xff] %v258
  %267 = vst [vmem:[%s2 + $0x18] sm:$0xff] %v219
  %268 = vst [vmem:[%s2 + $0x20] sm:$0xff] %v221
  %269 = vst [vmem:[%s2 + $0x28] sm:$0xff] %v261
  // Predicated region
  $region10: #{transformer_forward.11} parent=0 // pred_check
    _
  $region11: #{transformer_forward.11} parent=0 // pred_check_branch
    %271 = sbr.rel (0) target = $region13
  $region12: #{transformer_forward.11} parent=0 // pred_region
    _
  $region13: #{transformer_forward.11} parent=0 // pred_fallthru
    _
  // Predicated region
  $region14: #{transformer_forward.11} parent=0 // pred_check
    _
  $region15: #{transformer_forward.11} parent=0 // pred_check_branch
    %273 = sbr.rel (0) target = $region17
  $region16: #{transformer_forward.11} parent=0 // pred_region
    _
  $region17: #{transformer_forward.11} parent=0 // pred_fallthru
    _

// kernel: transformer_forward.13
$region0: #{transformer_forward.13}
  #allocation0 [shape = 'u32[]', space=smem, size = 0x4, offset = 0x4, fixed_abs, tag = 'smem constant byte address 0x4 - core index']
  #allocation1 [shape = 'u32[144,128]{1,0:T(1,128)}', space=vmem, size = 0x12000, scoped, tag = 'internal scratch']
  %s0 = inlined_call_operand.vmem [shape: bf16[16,128], index: 0, kind: input, shape index: {}]
  %s1 = inlined_call_operand.vmem [shape: bf16[128,128], index: 1, kind: input, shape index: {}]
  %s2 = inlined_call_operand.vmem [shape: f32[16,128], index: 2, kind: output, shape index: {}]
  %s3 = sld [smem:[#allocation0]]
  $region18: #{transformer_forward.13} parent=0
    _
  %s5 = ssub.s32 1, %s3
  %s6 = scalar_select 0, %s5, %s3
  // Predicated region
  $region2: #{transformer_forward.13} parent=0 // pred_check
    _
  $region3: #{transformer_forward.13} parent=0 // pred_check_branch
    %8 = sbr.rel (0) target = $region5
  $region4: #{transformer_forward.13} parent=0 // pred_region
    _
  $region5: #{transformer_forward.13} parent=0 // pred_fallthru
    _
  // Predicated region
  $region6: #{transformer_forward.13} parent=0 // pred_check
    _
  $region7: #{transformer_forward.13} parent=0 // pred_check_branch
    %10 = sbr.rel (0) target = $region9
  $region8: #{transformer_forward.13} parent=0 // pred_region
    _
  $region9: #{transformer_forward.13} parent=0 // pred_fallthru
    _
  %v12 = vld [vmem:[%s0] sm:$0xf]
  %v13 = vld [vmem:[%s0 + $0x4] sm:$0xf]
  %v14 = vld [vmem:[%s1] sm:$0xf]
  %v15 = vld [vmem:[%s1 + $0x4] sm:$0xf]
  %v16 = vld [vmem:[%s1 + $0x8] sm:$0xf]
  %v17 = vld [vmem:[%s1 + $0xc] sm:$0xf]
  %v18 = vld [vmem:[%s1 + $0x10] sm:$0xf]
  %v19 = vld [vmem:[%s1 + $0x14] sm:$0xf]
  %v20 = vld [vmem:[%s1 + $0x18] sm:$0xf]
  %v21 = vld [vmem:[%s1 + $0x1c] sm:$0xf]
  %v22 = vld [vmem:[%s1 + $0x20] sm:$0xf]
  %v23 = vld [vmem:[%s1 + $0x24] sm:$0xf]
  %v24 = vld [vmem:[%s1 + $0x28] sm:$0xf]
  %v25 = vld [vmem:[%s1 + $0x2c] sm:$0xf]
  %v26 = vld [vmem:[%s1 + $0x30] sm:$0xf]
  %v27 = vld [vmem:[%s1 + $0x34] sm:$0xf]
  %v28 = vld [vmem:[%s1 + $0x38] sm:$0xf]
  %v29 = vld [vmem:[%s1 + $0x3c] sm:$0xf]
  %v32 = vunpack.c.l.b16 %v12
  %v33 = vunpack.c.l.b16 %v13
  %v34 = vpack.c.b16 %v33, %v32
  %v52 = vunpack.c.l.b16 %v14
  %v53 = vunpack.c.l.b16 %v15
  %v54 = vunpack.c.l.b16 %v16
  %v55 = vunpack.c.l.b16 %v17
  %v56 = vunpack.c.l.b16 %v18
  %v57 = vunpack.c.l.b16 %v19
  %v58 = vunpack.c.l.b16 %v20
  %v59 = vunpack.c.l.b16 %v21
  %v60 = vunpack.c.l.b16 %v22
  %v61 = vunpack.c.l.b16 %v23
  %v62 = vunpack.c.l.b16 %v24
  %v63 = vunpack.c.l.b16 %v25
  %v64 = vunpack.c.l.b16 %v26
  %v65 = vunpack.c.l.b16 %v27
  %v66 = vunpack.c.l.b16 %v28
  %v67 = vunpack.c.l.b16 %v29
  %v68 = vpack.c.b16 %v53, %v52
  %v69 = vpack.c.b16 %v55, %v54
  %v70 = vpack.c.b16 %v57, %v56
  %v71 = vpack.c.b16 %v59, %v58
  %v72 = vpack.c.b16 %v61, %v60
  %v73 = vpack.c.b16 %v63, %v62
  %v74 = vpack.c.b16 %v65, %v64
  %v75 = vpack.c.b16 %v67, %v66
  %84 = vmatprep.subr.bf16.mxu0 0
  %85 = vmatpush1.bf16.msra.mxu0 %v68
  %86 = vmatprep.subr.bf16.mxu0 0
  %87 = vmatpush1.bf16.msra.mxu0 %v69
  %88 = vmatprep.subr.bf16.mxu0 0
  %89 = vmatpush1.bf16.msra.mxu0 %v70
  %90 = vmatprep.subr.bf16.mxu0 0
  %91 = vmatpush1.bf16.msra.mxu0 %v71
  %92 = vmatprep.subr.bf16.mxu0 0
  %93 = vmatpush1.bf16.msra.mxu0 %v72
  %94 = vmatprep.subr.bf16.mxu0 0
  %95 = vmatpush1.bf16.msra.mxu0 %v73
  %96 = vmatprep.subr.bf16.mxu0 0
  %97 = vmatpush1.bf16.msra.mxu0 %v74
  %98 = vmatprep.subr.bf16.mxu0 0
  %99 = vmatpush1.bf16.msra.mxu0 %v75
  %100 = vmatprep.subr.bf16.mxu0 0
  %101 = vmatpush1.bf16.msra.mxu0 0
  %102 = vmatprep.subr.bf16.mxu0 0
  %103 = vmatpush1.bf16.msra.mxu0 0
  %104 = vmatprep.subr.bf16.mxu0 0
  %105 = vmatpush1.bf16.msra.mxu0 0
  %106 = vmatprep.subr.bf16.mxu0 0
  %107 = vmatpush1.bf16.msra.mxu0 0
  %108 = vmatprep.subr.bf16.mxu0 0
  %109 = vmatpush1.bf16.msra.mxu0 0
  %110 = vmatprep.subr.bf16.mxu0 0
  %111 = vmatpush1.bf16.msra.mxu0 0
  %112 = vmatprep.subr.bf16.mxu0 0
  %113 = vmatpush1.bf16.msra.mxu0 0
  %114 = vmatprep.subr.bf16.mxu0 0
  %115 = vmatpush1.bf16.msra.mxu0 0
  %116 = vmatprep.mubr.bf16.mxu0 0
  %117 = vmatmul.mubr.bf16.gmra.mrb[0].mxu0 %v34
  %v118 = vpop.f32.mrb[0].mxu0
  %v119 = vadd.f32 0.0, %v118
  %v120 = vpop.f32.mrb[0].mxu0
  %v121 = vpop.f32.mrb[0].mxu0
  %v122 = vadd.f32 0.0, %v121
  %v123 = vpop.f32.mrb[0].mxu0
  %124 = vdwg.mxu0
  %125 = vst [vmem:[%s2] sm:$0xff] %v119
  %126 = vst [vmem:[%s2 + $0x8] sm:$0xff] %v122
  // Predicated region
  $region10: #{transformer_forward.13} parent=0 // pred_check
    _
  $region11: #{transformer_forward.13} parent=0 // pred_check_branch
    %128 = sbr.rel (0) target = $region13
  $region12: #{transformer_forward.13} parent=0 // pred_region
    _
  $region13: #{transformer_forward.13} parent=0 // pred_fallthru
    _
  // Predicated region
  $region14: #{transformer_forward.13} parent=0 // pred_check
    _
  $region15: #{transformer_forward.13} parent=0 // pred_check_branch
    %130 = sbr.rel (0) target = $region17
  $region16: #{transformer_forward.13} parent=0 // pred_region
    _
  $region17: #{transformer_forward.13} parent=0 // pred_fallthru
    _

// kernel: transformer_forward.14
$region0: #{transformer_forward.14}
  #allocation0 [shape = 'u32[]', space=smem, size = 0x4, offset = 0x4, fixed_abs, tag = 'smem constant byte address 0x4 - core index']
  #allocation1 [shape = 'u32[144,128]{1,0:T(1,128)}', space=vmem, size = 0x12000, scoped, tag = 'internal scratch']
  %s0 = inlined_call_operand.vmem [shape: bf16[16,128], index: 0, kind: input, shape index: {}]
  %s1 = inlined_call_operand.vmem [shape: bf16[128,512], index: 1, kind: input, shape index: {}]
  %s2 = inlined_call_operand.vmem [shape: f32[1,512], index: 2, kind: input, shape index: {}]
  %s3 = inlined_call_operand.vmem [shape: f32[16,512], index: 3, kind: output, shape index: {}]
  %s4 = sld [smem:[#allocation0]]
  $region22: #{transformer_forward.14} parent=0
    _
  %s6 = ssub.s32 1, %s4
  %s7 = scalar_select 0, %s6, %s4
  // Predicated region
  $region2: #{transformer_forward.14} parent=0 // pred_check
    _
  $region3: #{transformer_forward.14} parent=0 // pred_check_branch
    %9 = sbr.rel (0) target = $region5
  $region4: #{transformer_forward.14} parent=0 // pred_region
    _
  $region5: #{transformer_forward.14} parent=0 // pred_fallthru
    _
  // Predicated region
  $region6: #{transformer_forward.14} parent=0 // pred_check
    _
  $region7: #{transformer_forward.14} parent=0 // pred_check_branch
    %11 = sbr.rel (0) target = $region9
  $region8: #{transformer_forward.14} parent=0 // pred_region
    _
  $region9: #{transformer_forward.14} parent=0 // pred_fallthru
    _
  // Predicated region
  $region10: #{transformer_forward.14} parent=0 // pred_check
    _
  $region11: #{transformer_forward.14} parent=0 // pred_check_branch
    %13 = sbr.rel (0) target = $region13
  $region12: #{transformer_forward.14} parent=0 // pred_region
    _
  $region13: #{transformer_forward.14} parent=0 // pred_fallthru
    _
  %v15 = vld [vmem:[%s0] sm:$0xf]
  %v16 = vld [vmem:[%s0 + $0x4] sm:$0xf]
  %v17 = vld [vmem:[%s1] sm:$0xff]
  %v18 = vld [vmem:[%s1 + $0x8] sm:$0xff]
  %v19 = vld [vmem:[%s1 + $0x10] sm:$0xff]
  %v20 = vld [vmem:[%s1 + $0x18] sm:$0xff]
  %v21 = vld [vmem:[%s1 + $0x20] sm:$0xff]
  %v22 = vld [vmem:[%s1 + $0x28] sm:$0xff]
  %v23 = vld [vmem:[%s1 + $0x30] sm:$0xff]
  %v24 = vld [vmem:[%s1 + $0x38] sm:$0xff]
  %v25 = vld [vmem:[%s1 + $0x40] sm:$0xff]
  %v26 = vld [vmem:[%s1 + $0x48] sm:$0xff]
  %v27 = vld [vmem:[%s1 + $0x50] sm:$0xff]
  %v28 = vld [vmem:[%s1 + $0x58] sm:$0xff]
  %v29 = vld [vmem:[%s1 + $0x60] sm:$0xff]
  %v30 = vld [vmem:[%s1 + $0x68] sm:$0xff]
  %v31 = vld [vmem:[%s1 + $0x70] sm:$0xff]
  %v32 = vld [vmem:[%s1 + $0x78] sm:$0xff]
  %v33 = vld [vmem:[%s1 + $0x80] sm:$0xff]
  %v34 = vld [vmem:[%s1 + $0x88] sm:$0xff]
  %v35 = vld [vmem:[%s1 + $0x90] sm:$0xff]
  %v36 = vld [vmem:[%s1 + $0x98] sm:$0xff]
  %v37 = vld [vmem:[%s1 + $0xa0] sm:$0xff]
  %v38 = vld [vmem:[%s1 + $0xa8] sm:$0xff]
  %v39 = vld [vmem:[%s1 + $0xb0] sm:$0xff]
  %v40 = vld [vmem:[%s1 + $0xb8] sm:$0xff]
  %v41 = vld [vmem:[%s1 + $0xc0] sm:$0xff]
  %v42 = vld [vmem:[%s1 + $0xc8] sm:$0xff]
  %v43 = vld [vmem:[%s1 + $0xd0] sm:$0xff]
  %v44 = vld [vmem:[%s1 + $0xd8] sm:$0xff]
  %v45 = vld [vmem:[%s1 + $0xe0] sm:$0xff]
  %v46 = vld [vmem:[%s1 + $0xe8] sm:$0xff]
  %v47 = vld [vmem:[%s1 + $0xf0] sm:$0xff]
  %v48 = vld [vmem:[%s1 + $0xf8] sm:$0xff]
  %v49 = vld [vmem:[%s2] sm:$0xf]
  %v51 = vlaneseq
  %v52 = vshrl.u32 %v51, 7
  %v53 = vsub.s32 0, %v52
  %v54 = vrot.slane %v49, %v53
  %v55 = vlaneseq
  %v56 = vshrl.u32 %v55, 7
  %v57 = vsub.s32 1, %v56
  %v58 = vrot.slane %v49, %v57
  %v59 = vlaneseq
  %v60 = vshrl.u32 %v59, 7
  %v61 = vsub.s32 2, %v60
  %v62 = vrot.slane %v49, %v61
  %v63 = vlaneseq
  %v64 = vshrl.u32 %v63, 7
  %v65 = vsub.s32 3, %v64
  %v66 = vrot.slane %v49, %v65
  %v73 = vunpack.c.l.b16 %v15
  %v74 = vunpack.c.l.b16 %v16
  %v75 = vpack.c.b16 %v74, %v73
  %v109 = vunpack.c.l.b16 %v17
  %v110 = vunpack.c.h.b16 %v17
  %v111 = vunpack.c.l.b16 %v18
  %v112 = vunpack.c.h.b16 %v18
  %v113 = vunpack.c.l.b16 %v19
  %v114 = vunpack.c.h.b16 %v19
  %v115 = vunpack.c.l.b16 %v20
  %v116 = vunpack.c.h.b16 %v20
  %v117 = vunpack.c.l.b16 %v21
  %v118 = vunpack.c.h.b16 %v21
  %v119 = vunpack.c.l.b16 %v22
  %v120 = vunpack.c.h.b16 %v22
  %v121 = vunpack.c.l.b16 %v23
  %v122 = vunpack.c.h.b16 %v23
  %v123 = vunpack.c.l.b16 %v24
  %v124 = vunpack.c.h.b16 %v24
  %v125 = vunpack.c.l.b16 %v25
  %v126 = vunpack.c.h.b16 %v25
  %v127 = vunpack.c.l.b16 %v26
  %v128 = vunpack.c.h.b16 %v26
  %v129 = vunpack.c.l.b16 %v27
  %v130 = vunpack.c.h.b16 %v27
  %v131 = vunpack.c.l.b16 %v28
  %v132 = vunpack.c.h.b16 %v28
  %v133 = vunpack.c.l.b16 %v29
  %v134 = vunpack.c.h.b16 %v29
  %v135 = vunpack.c.l.b16 %v30
  %v136 = vunpack.c.h.b16 %v30
  %v137 = vunpack.c.l.b16 %v31
  %v138 = vunpack.c.h.b16 %v31
  %v139 = vunpack.c.l.b16 %v32
  %v140 = vunpack.c.h.b16 %v32
  %v141 = vunpack.c.l.b16 %v33
  %v142 = vunpack.c.h.b16 %v33
  %v143 = vunpack.c.l.b16 %v34
  %v144 = vunpack.c.h.b16 %v34
  %v145 = vunpack.c.l.b16 %v35
  %v146 = vunpack.c.h.b16 %v35
  %v147 = vunpack.c.l.b16 %v36
  %v148 = vunpack.c.h.b16 %v36
  %v149 = vunpack.c.l.b16 %v37
  %v150 = vunpack.c.h.b16 %v37
  %v151 = vunpack.c.l.b16 %v38
  %v152 = vunpack.c.h.b16 %v38
  %v153 = vunpack.c.l.b16 %v39
  %v154 = vunpack.c.h.b16 %v39
  %v155 = vunpack.c.l.b16 %v40
  %v156 = vunpack.c.h.b16 %v40
  %v157 = vunpack.c.l.b16 %v41
  %v158 = vunpack.c.h.b16 %v41
  %v159 = vunpack.c.l.b16 %v42
  %v160 = vunpack.c.h.b16 %v42
  %v161 = vunpack.c.l.b16 %v43
  %v162 = vunpack.c.h.b16 %v43
  %v163 = vunpack.c.l.b16 %v44
  %v164 = vunpack.c.h.b16 %v44
  %v165 = vunpack.c.l.b16 %v45
  %v166 = vunpack.c.h.b16 %v45
  %v167 = vunpack.c.l.b16 %v46
  %v168 = vunpack.c.h.b16 %v46
  %v169 = vunpack.c.l.b16 %v47
  %v170 = vunpack.c.h.b16 %v47
  %v171 = vunpack.c.l.b16 %v48
  %v172 = vunpack.c.h.b16 %v48
  %v173 = vpack.c.b16 %v113, %v109
  %v174 = vpack.c.b16 %v114, %v110
  %v175 = vpack.c.b16 %v115, %v111
  %v176 = vpack.c.b16 %v116, %v112
  %v177 = vpack.c.b16 %v121, %v117
  %v178 = vpack.c.b16 %v122, %v118
  %v179 = vpack.c.b16 %v123, %v119
  %v180 = vpack.c.b16 %v124, %v120
  %v181 = vpack.c.b16 %v129, %v125
  %v182 = vpack.c.b16 %v130, %v126
  %v183 = vpack.c.b16 %v131, %v127
  %v184 = vpack.c.b16 %v132, %v128
  %v185 = vpack.c.b16 %v137, %v133
  %v186 = vpack.c.b16 %v138, %v134
  %v187 = vpack.c.b16 %v139, %v135
  %v188 = vpack.c.b16 %v140, %v136
  %v189 = vpack.c.b16 %v145, %v141
  %v190 = vpack.c.b16 %v146, %v142
  %v191 = vpack.c.b16 %v147, %v143
  %v192 = vpack.c.b16 %v148, %v144
  %v193 = vpack.c.b16 %v153, %v149
  %v194 = vpack.c.b16 %v154, %v150
  %v195 = vpack.c.b16 %v155, %v151
  %v196 = vpack.c.b16 %v156, %v152
  %v197 = vpack.c.b16 %v161, %v157
  %v198 = vpack.c.b16 %v162, %v158
  %v199 = vpack.c.b16 %v163, %v159
  %v200 = vpack.c.b16 %v164, %v160
  %v201 = vpack.c.b16 %v169, %v165
  %v202 = vpack.c.b16 %v170, %v166
  %v203 = vpack.c.b16 %v171, %v167
  %v204 = vpack.c.b16 %v172, %v168
  %237 = vmatprep.subr.bf16.mxu0 %v174
  %238 = vmatpush1.bf16.msra.mxu0 %v173
  %239 = vmatprep.subr.bf16.mxu0 %v178
  %240 = vmatpush1.bf16.msra.mxu0 %v177
  %241 = vmatprep.subr.bf16.mxu0 %v182
  %242 = vmatpush1.bf16.msra.mxu0 %v181
  %243 = vmatprep.subr.bf16.mxu0 %v186
  %244 = vmatpush1.bf16.msra.mxu0 %v185
  %245 = vmatprep.subr.bf16.mxu0 %v190
  %246 = vmatpush1.bf16.msra.mxu0 %v189
  %247 = vmatprep.subr.bf16.mxu0 %v194
  %248 = vmatpush1.bf16.msra.mxu0 %v193
  %249 = vmatprep.subr.bf16.mxu0 %v198
  %250 = vmatpush1.bf16.msra.mxu0 %v197
  %251 = vmatprep.subr.bf16.mxu0 %v202
  %252 = vmatpush1.bf16.msra.mxu0 %v201
  %253 = vmatprep.subr.bf16.mxu0 0
  %254 = vmatpush1.bf16.msra.mxu0 0
  %255 = vmatprep.subr.bf16.mxu0 0
  %256 = vmatpush1.bf16.msra.mxu0 0
  %257 = vmatprep.subr.bf16.mxu0 0
  %258 = vmatpush1.bf16.msra.mxu0 0
  %259 = vmatprep.subr.bf16.mxu0 0
  %260 = vmatpush1.bf16.msra.mxu0 0
  %261 = vmatprep.subr.bf16.mxu0 0
  %262 = vmatpush1.bf16.msra.mxu0 0
  %263 = vmatprep.subr.bf16.mxu0 0
  %264 = vmatpush1.bf16.msra.mxu0 0
  %265 = vmatprep.subr.bf16.mxu0 0
  %266 = vmatpush1.bf16.msra.mxu0 0
  %267 = vmatprep.subr.bf16.mxu0 0
  %268 = vmatpush1.bf16.msra.mxu0 0
  %269 = vmatprep.mubr.bf16.mxu0 0
  %270 = vmatmul.mubr.bf16.gmra.mrb[0].mxu0 %v75
  %v271 = vpop.f32.mrb[0].mxu0
  %v272 = vadd.f32 %v54, %v271
  %v273 = vpop.f32.mrb[0].mxu0
  %v274 = vadd.f32 %v58, %v273
  %v275 = vpop.f32.mrb[0].mxu0
  %v276 = vadd.f32 %v54, %v275
  %v277 = vpop.f32.mrb[0].mxu0
  %v278 = vadd.f32 %v58, %v277
  %279 = vdwg.mxu0
  %280 = vmatprep.subr.bf16.mxu0 %v176
  %281 = vmatpush1.bf16.msra.mxu0 %v175
  %282 = vmatprep.subr.bf16.mxu0 %v180
  %283 = vmatpush1.bf16.msra.mxu0 %v179
  %284 = vmatprep.subr.bf16.mxu0 %v184
  %285 = vmatpush1.bf16.msra.mxu0 %v183
  %286 = vmatprep.subr.bf16.mxu0 %v188
  %287 = vmatpush1.bf16.msra.mxu0 %v187
  %288 = vmatprep.subr.bf16.mxu0 %v192
  %289 = vmatpush1.bf16.msra.mxu0 %v191
  %290 = vmatprep.subr.bf16.mxu0 %v196
  %291 = vmatpush1.bf16.msra.mxu0 %v195
  %292 = vmatprep.subr.bf16.mxu0 %v200
  %293 = vmatpush1.bf16.msra.mxu0 %v199
  %294 = vmatprep.subr.bf16.mxu0 %v204
  %295 = vmatpush1.bf16.msra.mxu0 %v203
  %296 = vmatprep.subr.bf16.mxu0 0
  %297 = vmatpush1.bf16.msra.mxu0 0
  %298 = vmatprep.subr.bf16.mxu0 0
  %299 = vmatpush1.bf16.msra.mxu0 0
  %300 = vmatprep.subr.bf16.mxu0 0
  %301 = vmatpush1.bf16.msra.mxu0 0
  %302 = vmatprep.subr.bf16.mxu0 0
  %303 = vmatpush1.bf16.msra.mxu0 0
  %304 = vmatprep.subr.bf16.mxu0 0
  %305 = vmatpush1.bf16.msra.mxu0 0
  %306 = vmatprep.subr.bf16.mxu0 0
  %307 = vmatpush1.bf16.msra.mxu0 0
  %308 = vmatprep.subr.bf16.mxu0 0
  %309 = vmatpush1.bf16.msra.mxu0 0
  %310 = vmatprep.subr.bf16.mxu0 0
  %311 = vmatpush1.bf16.msra.mxu0 0
  %312 = vmatprep.mubr.bf16.mxu0 0
  %313 = vmatmul.mubr.bf16.gmra.mrb[0].mxu0 %v75
  %v314 = vpop.f32.mrb[0].mxu0
  %v315 = vadd.f32 %v62, %v314
  %v316 = vpop.f32.mrb[0].mxu0
  %v317 = vadd.f32 %v66, %v316
  %v318 = vpop.f32.mrb[0].mxu0
  %v319 = vadd.f32 %v62, %v318
  %v320 = vpop.f32.mrb[0].mxu0
  %v321 = vadd.f32 %v66, %v320
  %322 = vdwg.mxu0
  %v323 = vmax.f32 %v272, 0.0
  %v324 = vmax.f32 %v274, 0.0
  %v325 = vmax.f32 %v315, 0.0
  %v326 = vmax.f32 %v317, 0.0
  %v327 = vmax.f32 %v276, 0.0
  %v328 = vmax.f32 %v278, 0.0
  %v329 = vmax.f32 %v319, 0.0
  %v330 = vmax.f32 %v321, 0.0
  %331 = vst [vmem:[%s3] sm:$0xff] %v323
  %332 = vst [vmem:[%s3 + $0x8] sm:$0xff] %v324
  %333 = vst [vmem:[%s3 + $0x10] sm:$0xff] %v325
  %334 = vst [vmem:[%s3 + $0x18] sm:$0xff] %v326
  %335 = vst [vmem:[%s3 + $0x20] sm:$0xff] %v327
  %336 = vst [vmem:[%s3 + $0x28] sm:$0xff] %v328
  %337 = vst [vmem:[%s3 + $0x30] sm:$0xff] %v329
  %338 = vst [vmem:[%s3 + $0x38] sm:$0xff] %v330
  // Predicated region
  $region14: #{transformer_forward.14} parent=0 // pred_check
    _
  $region15: #{transformer_forward.14} parent=0 // pred_check_branch
    %340 = sbr.rel (0) target = $region17
  $region16: #{transformer_forward.14} parent=0 // pred_region
    _
  $region17: #{transformer_forward.14} parent=0 // pred_fallthru
    _
  // Predicated region
  $region18: #{transformer_forward.14} parent=0 // pred_check
    _
  $region19: #{transformer_forward.14} parent=0 // pred_check_branch
    %342 = sbr.rel (0) target = $region21
  $region20: #{transformer_forward.14} parent=0 // pred_region
    _
  $region21: #{transformer_forward.14} parent=0 // pred_fallthru
    _

// kernel: transformer_forward.15
$region0: #{transformer_forward.15}
  #allocation0 [shape = 'u32[]', space=smem, size = 0x4, offset = 0x4, fixed_abs, tag = 'smem constant byte address 0x4 - core index']
  #allocation1 [shape = 'u32[144,128]{1,0:T(1,128)}', space=vmem, size = 0x12000, scoped, tag = 'internal scratch']
  %s0 = inlined_call_operand.vmem [shape: bf16[16,512], index: 0, kind: input, shape index: {}]
  %s1 = inlined_call_operand.vmem [shape: bf16[512,128], index: 1, kind: input, shape index: {}]
  %s2 = inlined_call_operand.vmem [shape: f32[1,128], index: 2, kind: input, shape index: {}]
  %s3 = inlined_call_operand.vmem [shape: f32[16,128], index: 3, kind: output, shape index: {}]
  %s4 = sld [smem:[#allocation0]]
  $region22: #{transformer_forward.15} parent=0
    _
  %s6 = ssub.s32 1, %s4
  %s7 = scalar_select 0, %s6, %s4
  // Predicated region
  $region2: #{transformer_forward.15} parent=0 // pred_check
    _
  $region3: #{transformer_forward.15} parent=0 // pred_check_branch
    %9 = sbr.rel (0) target = $region5
  $region4: #{transformer_forward.15} parent=0 // pred_region
    _
  $region5: #{transformer_forward.15} parent=0 // pred_fallthru
    _
  // Predicated region
  $region6: #{transformer_forward.15} parent=0 // pred_check
    _
  $region7: #{transformer_forward.15} parent=0 // pred_check_branch
    %11 = sbr.rel (0) target = $region9
  $region8: #{transformer_forward.15} parent=0 // pred_region
    _
  $region9: #{transformer_forward.15} parent=0 // pred_fallthru
    _
  // Predicated region
  $region10: #{transformer_forward.15} parent=0 // pred_check
    _
  $region11: #{transformer_forward.15} parent=0 // pred_check_branch
    %13 = sbr.rel (0) target = $region13
  $region12: #{transformer_forward.15} parent=0 // pred_region
    _
  $region13: #{transformer_forward.15} parent=0 // pred_fallthru
    _
  %v15 = vld [vmem:[%s0] sm:$0xff]
  %v16 = vld [vmem:[%s0 + $0x8] sm:$0xff]
  %v17 = vld [vmem:[%s0 + $0x10] sm:$0xff]
  %v18 = vld [vmem:[%s0 + $0x18] sm:$0xff]
  %v19 = vld [vmem:[%s1] sm:$0xf]
  %v20 = vld [vmem:[%s1 + $0x4] sm:$0xf]
  %v21 = vld [vmem:[%s1 + $0x8] sm:$0xf]
  %v22 = vld [vmem:[%s1 + $0xc] sm:$0xf]
  %v23 = vld [vmem:[%s1 + $0x10] sm:$0xf]
  %v24 = vld [vmem:[%s1 + $0x14] sm:$0xf]
  %v25 = vld [vmem:[%s1 + $0x18] sm:$0xf]
  %v26 = vld [vmem:[%s1 + $0x1c] sm:$0xf]
  %v27 = vld [vmem:[%s1 + $0x20] sm:$0xf]
  %v28 = vld [vmem:[%s1 + $0x24] sm:$0xf]
  %v29 = vld [vmem:[%s1 + $0x28] sm:$0xf]
  %v30 = vld [vmem:[%s1 + $0x2c] sm:$0xf]
  %v31 = vld [vmem:[%s1 + $0x30] sm:$0xf]
  %v32 = vld [vmem:[%s1 + $0x34] sm:$0xf]
  %v33 = vld [vmem:[%s1 + $0x38] sm:$0xf]
  %v34 = vld [vmem:[%s1 + $0x3c] sm:$0xf]
  %v35 = vld [vmem:[%s1 + $0x40] sm:$0xf]
  %v36 = vld [vmem:[%s1 + $0x44] sm:$0xf]
  %v37 = vld [vmem:[%s1 + $0x48] sm:$0xf]
  %v38 = vld [vmem:[%s1 + $0x4c] sm:$0xf]
  %v39 = vld [vmem:[%s1 + $0x50] sm:$0xf]
  %v40 = vld [vmem:[%s1 + $0x54] sm:$0xf]
  %v41 = vld [vmem:[%s1 + $0x58] sm:$0xf]
  %v42 = vld [vmem:[%s1 + $0x5c] sm:$0xf]
  %v43 = vld [vmem:[%s1 + $0x60] sm:$0xf]
  %v44 = vld [vmem:[%s1 + $0x64] sm:$0xf]
  %v45 = vld [vmem:[%s1 + $0x68] sm:$0xf]
  %v46 = vld [vmem:[%s1 + $0x6c] sm:$0xf]
  %v47 = vld [vmem:[%s1 + $0x70] sm:$0xf]
  %v48 = vld [vmem:[%s1 + $0x74] sm:$0xf]
  %v49 = vld [vmem:[%s1 + $0x78] sm:$0xf]
  %v50 = vld [vmem:[%s1 + $0x7c] sm:$0xf]
  %v51 = vld [vmem:[%s1 + $0x80] sm:$0xf]
  %v52 = vld [vmem:[%s1 + $0x84] sm:$0xf]
  %v53 = vld [vmem:[%s1 + $0x88] sm:$0xf]
  %v54 = vld [vmem:[%s1 + $0x8c] sm:$0xf]
  %v55 = vld [vmem:[%s1 + $0x90] sm:$0xf]
  %v56 = vld [vmem:[%s1 + $0x94] sm:$0xf]
  %v57 = vld [vmem:[%s1 + $0x98] sm:$0xf]
  %v58 = vld [vmem:[%s1 + $0x9c] sm:$0xf]
  %v59 = vld [vmem:[%s1 + $0xa0] sm:$0xf]
  %v60 = vld [vmem:[%s1 + $0xa4] sm:$0xf]
  %v61 = vld [vmem:[%s1 + $0xa8] sm:$0xf]
  %v62 = vld [vmem:[%s1 + $0xac] sm:$0xf]
  %v63 = vld [vmem:[%s1 + $0xb0] sm:$0xf]
  %v64 = vld [vmem:[%s1 + $0xb4] sm:$0xf]
  %v65 = vld [vmem:[%s1 + $0xb8] sm:$0xf]
  %v66 = vld [vmem:[%s1 + $0xbc] sm:$0xf]
  %v67 = vld [vmem:[%s1 + $0xc0] sm:$0xf]
  %v68 = vld [vmem:[%s1 + $0xc4] sm:$0xf]
  %v69 = vld [vmem:[%s1 + $0xc8] sm:$0xf]
  %v70 = vld [vmem:[%s1 + $0xcc] sm:$0xf]
  %v71 = vld [vmem:[%s1 + $0xd0] sm:$0xf]
  %v72 = vld [vmem:[%s1 + $0xd4] sm:$0xf]
  %v73 = vld [vmem:[%s1 + $0xd8] sm:$0xf]
  %v74 = vld [vmem:[%s1 + $0xdc] sm:$0xf]
  %v75 = vld [vmem:[%s1 + $0xe0] sm:$0xf]
  %v76 = vld [vmem:[%s1 + $0xe4] sm:$0xf]
  %v77 = vld [vmem:[%s1 + $0xe8] sm:$0xf]
  %v78 = vld [vmem:[%s1 + $0xec] sm:$0xf]
  %v79 = vld [vmem:[%s1 + $0xf0] sm:$0xf]
  %v80 = vld [vmem:[%s1 + $0xf4] sm:$0xf]
  %v81 = vld [vmem:[%s1 + $0xf8] sm:$0xf]
  %v82 = vld [vmem:[%s1 + $0xfc] sm:$0xf]
  %v83 = vld [vmem:[%s2] sm:$0x1]
  %v85 = vlaneseq
  %v86 = vshrl.u32 %v85, 7
  %v87 = vsub.s32 0, %v86
  %v88 = vrot.slane %v83, %v87
  %v94 = vunpack.c.l.b16 %v15
  %v95 = vunpack.c.h.b16 %v15
  %v96 = vunpack.c.l.b16 %v16
  %v97 = vunpack.c.h.b16 %v16
  %v98 = vunpack.c.l.b16 %v17
  %v99 = vunpack.c.h.b16 %v17
  %v100 = vunpack.c.l.b16 %v18
  %v101 = vunpack.c.h.b16 %v18
  %v102 = vpack.c.b16 %v98, %v94
  %v103 = vpack.c.b16 %v99, %v95
  %v104 = vpack.c.b16 %v100, %v96
  %v105 = vpack.c.b16 %v101, %v97
  %v174 = vunpack.c.l.b16 %v19
  %v175 = vunpack.c.l.b16 %v20
  %v176 = vunpack.c.l.b16 %v21
  %v177 = vunpack.c.l.b16 %v22
  %v178 = vunpack.c.l.b16 %v23
  %v179 = vunpack.c.l.b16 %v24
  %v180 = vunpack.c.l.b16 %v25
  %v181 = vunpack.c.l.b16 %v26
  %v182 = vunpack.c.l.b16 %v27
  %v183 = vunpack.c.l.b16 %v28
  %v184 = vunpack.c.l.b16 %v29
  %v185 = vunpack.c.l.b16 %v30
  %v186 = vunpack.c.l.b16 %v31
  %v187 = vunpack.c.l.b16 %v32
  %v188 = vunpack.c.l.b16 %v33
  %v189 = vunpack.c.l.b16 %v34
  %v190 = vunpack.c.l.b16 %v35
  %v191 = vunpack.c.l.b16 %v36
  %v192 = vunpack.c.l.b16 %v37
  %v193 = vunpack.c.l.b16 %v38
  %v194 = vunpack.c.l.b16 %v39
  %v195 = vunpack.c.l.b16 %v40
  %v196 = vunpack.c.l.b16 %v41
  %v197 = vunpack.c.l.b16 %v42
  %v198 = vunpack.c.l.b16 %v43
  %v199 = vunpack.c.l.b16 %v44
  %v200 = vunpack.c.l.b16 %v45
  %v201 = vunpack.c.l.b16 %v46
  %v202 = vunpack.c.l.b16 %v47
  %v203 = vunpack.c.l.b16 %v48
  %v204 = vunpack.c.l.b16 %v49
  %v205 = vunpack.c.l.b16 %v50
  %v206 = vunpack.c.l.b16 %v51
  %v207 = vunpack.c.l.b16 %v52
  %v208 = vunpack.c.l.b16 %v53
  %v209 = vunpack.c.l.b16 %v54
  %v210 = vunpack.c.l.b16 %v55
  %v211 = vunpack.c.l.b16 %v56
  %v212 = vunpack.c.l.b16 %v57
  %v213 = vunpack.c.l.b16 %v58
  %v214 = vunpack.c.l.b16 %v59
  %v215 = vunpack.c.l.b16 %v60
  %v216 = vunpack.c.l.b16 %v61
  %v217 = vunpack.c.l.b16 %v62
  %v218 = vunpack.c.l.b16 %v63
  %v219 = vunpack.c.l.b16 %v64
  %v220 = vunpack.c.l.b16 %v65
  %v221 = vunpack.c.l.b16 %v66
  %v222 = vunpack.c.l.b16 %v67
  %v223 = vunpack.c.l.b16 %v68
  %v224 = vunpack.c.l.b16 %v69
  %v225 = vunpack.c.l.b16 %v70
  %v226 = vunpack.c.l.b16 %v71
  %v227 = vunpack.c.l.b16 %v72
  %v228 = vunpack.c.l.b16 %v73
  %v229 = vunpack.c.l.b16 %v74
  %v230 = vunpack.c.l.b16 %v75
  %v231 = vunpack.c.l.b16 %v76
  %v232 = vunpack.c.l.b16 %v77
  %v233 = vunpack.c.l.b16 %v78
  %v234 = vunpack.c.l.b16 %v79
  %v235 = vunpack.c.l.b16 %v80
  %v236 = vunpack.c.l.b16 %v81
  %v237 = vunpack.c.l.b16 %v82
  %v238 = vpack.c.b16 %v175, %v174
  %v239 = vpack.c.b16 %v177, %v176
  %v240 = vpack.c.b16 %v179, %v178
  %v241 = vpack.c.b16 %v181, %v180
  %v242 = vpack.c.b16 %v183, %v182
  %v243 = vpack.c.b16 %v185, %v184
  %v244 = vpack.c.b16 %v187, %v186
  %v245 = vpack.c.b16 %v189, %v188
  %v246 = vpack.c.b16 %v191, %v190
  %v247 = vpack.c.b16 %v193, %v192
  %v248 = vpack.c.b16 %v195, %v194
  %v249 = vpack.c.b16 %v197, %v196
  %v250 = vpack.c.b16 %v199, %v198
  %v251 = vpack.c.b16 %v201, %v200
  %v252 = vpack.c.b16 %v203, %v202
  %v253 = vpack.c.b16 %v205, %v204
  %v254 = vpack.c.b16 %v207, %v206
  %v255 = vpack.c.b16 %v209, %v208
  %v256 = vpack.c.b16 %v211, %v210
  %v257 = vpack.c.b16 %v213, %v212
  %v258 = vpack.c.b16 %v215, %v214
  %v259 = vpack.c.b16 %v217, %v216
  %v260 = vpack.c.b16 %v219, %v218
  %v261 = vpack.c.b16 %v221, %v220
  %v262 = vpack.c.b16 %v223, %v222
  %v263 = vpack.c.b16 %v225, %v224
  %v264 = vpack.c.b16 %v227, %v226
  %v265 = vpack.c.b16 %v229, %v228
  %v266 = vpack.c.b16 %v231, %v230
  %v267 = vpack.c.b16 %v233, %v232
  %v268 = vpack.c.b16 %v235, %v234
  %v269 = vpack.c.b16 %v237, %v236
  %302 = vmatprep.subr.bf16.mxu0 0
  %303 = vmatpush1.bf16.msra.mxu0 %v238
  %304 = vmatprep.subr.bf16.mxu0 0
  %305 = vmatpush1.bf16.msra.mxu0 %v239
  %306 = vmatprep.subr.bf16.mxu0 0
  %307 = vmatpush1.bf16.msra.mxu0 %v240
  %308 = vmatprep.subr.bf16.mxu0 0
  %309 = vmatpush1.bf16.msra.mxu0 %v241
  %310 = vmatprep.subr.bf16.mxu0 0
  %311 = vmatpush1.bf16.msra.mxu0 %v242
  %312 = vmatprep.subr.bf16.mxu0 0
  %313 = vmatpush1.bf16.msra.mxu0 %v243
  %314 = vmatprep.subr.bf16.mxu0 0
  %315 = vmatpush1.bf16.msra.mxu0 %v244
  %316 = vmatprep.subr.bf16.mxu0 0
  %317 = vmatpush1.bf16.msra.mxu0 %v245
  %318 = vmatprep.subr.bf16.mxu0 0
  %319 = vmatpush1.bf16.msra.mxu0 %v246
  %320 = vmatprep.subr.bf16.mxu0 0
  %321 = vmatpush1.bf16.msra.mxu0 %v247
  %322 = vmatprep.subr.bf16.mxu0 0
  %323 = vmatpush1.bf16.msra.mxu0 %v248
  %324 = vmatprep.subr.bf16.mxu0 0
  %325 = vmatpush1.bf16.msra.mxu0 %v249
  %326 = vmatprep.subr.bf16.mxu0 0
  %327 = vmatpush1.bf16.msra.mxu0 %v250
  %328 = vmatprep.subr.bf16.mxu0 0
  %329 = vmatpush1.bf16.msra.mxu0 %v251
  %330 = vmatprep.subr.bf16.mxu0 0
  %331 = vmatpush1.bf16.msra.mxu0 %v252
  %332 = vmatprep.subr.bf16.mxu0 0
  %333 = vmatpush1.bf16.msra.mxu0 %v253
  %334 = vmatprep.mubr.bf16.mxu0 %v103
  %335 = vmatmul.mubr.bf16.gmra.mrb[0].mxu0 %v102
  %v336 = vpop.f32.mrb[0].mxu0
  %v337 = vadd.f32 %v88, %v336
  %v338 = vpop.f32.mrb[0].mxu0
  %v339 = vpop.f32.mrb[0].mxu0
  %v340 = vadd.f32 %v88, %v339
  %v341 = vpop.f32.mrb[0].mxu0
  %342 = vdwg.mxu0
  %343 = vmatprep.subr.bf16.mxu0 0
  %344 = vmatpush1.bf16.msra.mxu0 %v254
  %345 = vmatprep.subr.bf16.mxu0 0
  %346 = vmatpush1.bf16.msra.mxu0 %v255
  %347 = vmatprep.subr.bf16.mxu0 0
  %348 = vmatpush1.bf16.msra.mxu0 %v256
  %349 = vmatprep.subr.bf16.mxu0 0
  %350 = vmatpush1.bf16.msra.mxu0 %v257
  %351 = vmatprep.subr.bf16.mxu0 0
  %352 = vmatpush1.bf16.msra.mxu0 %v258
  %353 = vmatprep.subr.bf16.mxu0 0
  %354 = vmatpush1.bf16.msra.mxu0 %v259
  %355 = vmatprep.subr.bf16.mxu0 0
  %356 = vmatpush1.bf16.msra.mxu0 %v260
  %357 = vmatprep.subr.bf16.mxu0 0
  %358 = vmatpush1.bf16.msra.mxu0 %v261
  %359 = vmatprep.subr.bf16.mxu0 0
  %360 = vmatpush1.bf16.msra.mxu0 %v262
  %361 = vmatprep.subr.bf16.mxu0 0
  %362 = vmatpush1.bf16.msra.mxu0 %v263
  %363 = vmatprep.subr.bf16.mxu0 0
  %364 = vmatpush1.bf16.msra.mxu0 %v264
  %365 = vmatprep.subr.bf16.mxu0 0
  %366 = vmatpush1.bf16.msra.mxu0 %v265
  %367 = vmatprep.subr.bf16.mxu0 0
  %368 = vmatpush1.bf16.msra.mxu0 %v266
  %369 = vmatprep.subr.bf16.mxu0 0
  %370 = vmatpush1.bf16.msra.mxu0 %v267
  %371 = vmatprep.subr.bf16.mxu0 0
  %372 = vmatpush1.bf16.msra.mxu0 %v268
  %373 = vmatprep.subr.bf16.mxu0 0
  %374 = vmatpush1.bf16.msra.mxu0 %v269
  %375 = vmatprep.mubr.bf16.mxu0 %v105
  %376 = vmatmul.mubr.bf16.gmra.mrb[0].mxu0 %v104
  %v377 = vpop.f32.mrb[0].mxu0
  %v378 = vadd.f32 %v337, %v377
  %v379 = vpop.f32.mrb[0].mxu0
  %v380 = vpop.f32.mrb[0].mxu0
  %v381 = vadd.f32 %v340, %v380
  %v382 = vpop.f32.mrb[0].mxu0
  %383 = vdwg.mxu0
  %384 = vst [vmem:[%s3] sm:$0xff] %v378
  %385 = vst [vmem:[%s3 + $0x8] sm:$0xff] %v381
  // Predicated region
  $region14: #{transformer_forward.15} parent=0 // pred_check
    _
  $region15: #{transformer_forward.15} parent=0 // pred_check_branch
    %387 = sbr.rel (0) target = $region17
  $region16: #{transformer_forward.15} parent=0 // pred_region
    _
  $region17: #{transformer_forward.15} parent=0 // pred_fallthru
    _
  // Predicated region
  $region18: #{transformer_forward.15} parent=0 // pred_check
    _
  $region19: #{transformer_forward.15} parent=0 // pred_check_branch
    %389 = sbr.rel (0) target = $region21
  $region20: #{transformer_forward.15} parent=0 // pred_region
    _
  $region21: #{transformer_forward.15} parent=0 // pred_fallthru
    _

// kernel: transformer_forward.12
$region0: #{transformer_forward.12}
  #allocation0 [shape = 'u32[]', space=smem, size = 0x4, offset = 0x4, fixed_abs, tag = 'smem constant byte address 0x4 - core index']
  #allocation1 [shape = 'u32[144,128]{1,0:T(1,128)}', space=vmem, size = 0x12000, scoped, tag = 'internal scratch']
  %s0 = inlined_call_operand.vmem [shape: f32[16,3,32], index: 0, kind: input, shape index: {}]
  %s1 = inlined_call_operand.vmem [shape: f32[16,3,32], index: 1, kind: input, shape index: {}]
  %s2 = inlined_call_operand.vmem [shape: f32[16,3,32], index: 2, kind: input, shape index: {}]
  %s3 = inlined_call_operand.vmem [shape: f32[3,3], index: 3, kind: input, shape index: {}]
  %s4 = inlined_call_operand.vmem [shape: f32[16,3,32], index: 4, kind: output, shape index: {}]
  %s5 = sld [smem:[#allocation0]]
  $region26: #{transformer_forward.12} parent=0
    _
  %s7 = ssub.s32 1, %s5
  %s8 = scalar_select 0, %s7, %s5
  // Predicated region
  $region2: #{transformer_forward.12} parent=0 // pred_check
    _
  $region3: #{transformer_forward.12} parent=0 // pred_check_branch
    %10 = sbr.rel (0) target = $region5
  $region4: #{transformer_forward.12} parent=0 // pred_region
    _
  $region5: #{transformer_forward.12} parent=0 // pred_fallthru
    _
  // Predicated region
  $region6: #{transformer_forward.12} parent=0 // pred_check
    _
  $region7: #{transformer_forward.12} parent=0 // pred_check_branch
    %12 = sbr.rel (0) target = $region9
  $region8: #{transformer_forward.12} parent=0 // pred_region
    _
  $region9: #{transformer_forward.12} parent=0 // pred_fallthru
    _
  // Predicated region
  $region10: #{transformer_forward.12} parent=0 // pred_check
    _
  $region11: #{transformer_forward.12} parent=0 // pred_check_branch
    %14 = sbr.rel (0) target = $region13
  $region12: #{transformer_forward.12} parent=0 // pred_region
    _
  $region13: #{transformer_forward.12} parent=0 // pred_fallthru
    _
  // Predicated region
  $region14: #{transformer_forward.12} parent=0 // pred_check
    _
  $region15: #{transformer_forward.12} parent=0 // pred_check_branch
    %16 = sbr.rel (0) target = $region17
  $region16: #{transformer_forward.12} parent=0 // pred_region
    _
  $region17: #{transformer_forward.12} parent=0 // pred_fallthru
    _
  %v17 = vld [vmem:[%s0] sm:$0x7]
  %v18 = vld [vmem:[%s0 + $0x4] sm:$0x7]
  %v19 = vld [vmem:[%s0 + $0x8] sm:$0x7]
  %v20 = vld [vmem:[%s0 + $0xc] sm:$0x7]
  %v21 = vld [vmem:[%s0 + $0x10] sm:$0x7]
  %v22 = vld [vmem:[%s0 + $0x14] sm:$0x7]
  %v23 = vld [vmem:[%s0 + $0x18] sm:$0x7]
  %v24 = vld [vmem:[%s0 + $0x1c] sm:$0x7]
  %v25 = vld [vmem:[%s0 + $0x20] sm:$0x7]
  %v26 = vld [vmem:[%s0 + $0x24] sm:$0x7]
  %v27 = vld [vmem:[%s0 + $0x28] sm:$0x7]
  %v28 = vld [vmem:[%s0 + $0x2c] sm:$0x7]
  %v29 = vld [vmem:[%s0 + $0x30] sm:$0x7]
  %v30 = vld [vmem:[%s0 + $0x34] sm:$0x7]
  %v31 = vld [vmem:[%s0 + $0x38] sm:$0x7]
  %v32 = vld [vmem:[%s0 + $0x3c] sm:$0x7]
  %v33 = vld [vmem:[%s1] sm:$0x7]
  %v34 = vld [vmem:[%s1 + $0x4] sm:$0x7]
  %v35 = vld [vmem:[%s1 + $0x8] sm:$0x7]
  %v36 = vld [vmem:[%s1 + $0xc] sm:$0x7]
  %v37 = vld [vmem:[%s1 + $0x10] sm:$0x7]
  %v38 = vld [vmem:[%s1 + $0x14] sm:$0x7]
  %v39 = vld [vmem:[%s1 + $0x18] sm:$0x7]
  %v40 = vld [vmem:[%s1 + $0x1c] sm:$0x7]
  %v41 = vld [vmem:[%s1 + $0x20] sm:$0x7]
  %v42 = vld [vmem:[%s1 + $0x24] sm:$0x7]
  %v43 = vld [vmem:[%s1 + $0x28] sm:$0x7]
  %v44 = vld [vmem:[%s1 + $0x2c] sm:$0x7]
  %v45 = vld [vmem:[%s1 + $0x30] sm:$0x7]
  %v46 = vld [vmem:[%s1 + $0x34] sm:$0x7]
  %v47 = vld [vmem:[%s1 + $0x38] sm:$0x7]
  %v48 = vld [vmem:[%s1 + $0x3c] sm:$0x7]
  %v49 = vld [vmem:[%s2] sm:$0x7]
  %v50 = vld [vmem:[%s2 + $0x4] sm:$0x7]
  %v51 = vld [vmem:[%s2 + $0x8] sm:$0x7]
  %v52 = vld [vmem:[%s2 + $0xc] sm:$0x7]
  %v53 = vld [vmem:[%s2 + $0x10] sm:$0x7]
  %v54 = vld [vmem:[%s2 + $0x14] sm:$0x7]
  %v55 = vld [vmem:[%s2 + $0x18] sm:$0x7]
  %v56 = vld [vmem:[%s2 + $0x1c] sm:$0x7]
  %v57 = vld [vmem:[%s2 + $0x20] sm:$0x7]
  %v58 = vld [vmem:[%s2 + $0x24] sm:$0x7]
  %v59 = vld [vmem:[%s2 + $0x28] sm:$0x7]
  %v60 = vld [vmem:[%s2 + $0x2c] sm:$0x7]
  %v61 = vld [vmem:[%s2 + $0x30] sm:$0x7]
  %v62 = vld [vmem:[%s2 + $0x34] sm:$0x7]
  %v63 = vld [vmem:[%s2 + $0x38] sm:$0x7]
  %v64 = vld [vmem:[%s2 + $0x3c] sm:$0x7]
  %v65 = vld [vmem:[%s3] sm:$0x7]
  %vm66 = vcmask 261120
  %v68 = vsel %vm66, %v17, 0
  %v71 = vsel %vm66, %v33, 0
  %73 = vmatprep.subr.mxu0 0.0
  %74 = vmatpush1.xpose.msra.mxu0 %v71
  %75 = vmatprep.subr.mxu0 0.0
  %76 = vmatpush1.xpose.msra.mxu0 0.0
  %77 = vmatprep.subr.mxu0 0.0
  %78 = vmatpush1.xpose.msra.mxu0 0.0
  %79 = vmatprep.subr.mxu0 0.0
  %80 = vmatpush1.xpose.msra.mxu0 0.0
  %81 = vmatprep.subr.mxu0 0.0
  %82 = vmatpush1.xpose.msra.mxu0 0.0
  %83 = vmatprep.subr.mxu0 0.0
  %84 = vmatpush1.xpose.msra.mxu0 0.0
  %85 = vmatprep.subr.mxu0 0.0
  %86 = vmatpush1.xpose.msra.mxu0 0.0
  %87 = vmatprep.subr.mxu0 0.0
  %88 = vmatpush1.xpose.msra.mxu0 0.0
  %89 = vmatprep.subr.mxu0 0.0
  %90 = vmatpush1.xpose.msra.mxu0 0.0
  %91 = vmatprep.subr.mxu0 0.0
  %92 = vmatpush1.xpose.msra.mxu0 0.0
  %93 = vmatprep.subr.mxu0 0.0
  %94 = vmatpush1.xpose.msra.mxu0 0.0
  %95 = vmatprep.subr.mxu0 0.0
  %96 = vmatpush1.xpose.msra.mxu0 0.0
  %97 = vmatprep.subr.mxu0 0.0
  %98 = vmatpush1.xpose.msra.mxu0 0.0
  %99 = vmatprep.subr.mxu0 0.0
  %100 = vmatpush1.xpose.msra.mxu0 0.0
  %101 = vmatprep.subr.mxu0 0.0
  %102 = vmatpush1.xpose.msra.mxu0 0.0
  %103 = vmatprep.subr.mxu0 0.0
  %104 = vmatpush1.xpose.msra.mxu0 0.0
  %105 = vmatprep.subr.mxu0 0.0
  %106 = vmatpush1.xpose.msra.mxu0 0.0
  %107 = vmatprep.subr.mxu0 0.0
  %108 = vmatpush1.xpose.msra.mxu0 0.0
  %109 = vmatprep.subr.mxu0 0.0
  %110 = vmatpush1.xpose.msra.mxu0 0.0
  %111 = vmatprep.subr.mxu0 0.0
  %112 = vmatpush1.xpose.msra.mxu0 0.0
  %113 = vmatprep.subr.mxu0 0.0
  %114 = vmatpush1.xpose.msra.mxu0 0.0
  %115 = vmatprep.subr.mxu0 0.0
  %116 = vmatpush1.xpose.msra.mxu0 0.0
  %117 = vmatprep.subr.mxu0 0.0
  %118 = vmatpush1.xpose.msra.mxu0 0.0
  %119 = vmatprep.subr.mxu0 0.0
  %120 = vmatpush1.xpose.msra.mxu0 0.0
  %121 = vmatprep.subr.mxu0 0.0
  %122 = vmatpush1.xpose.msra.mxu0 0.0
  %123 = vmatprep.subr.mxu0 0.0
  %124 = vmatpush1.xpose.msra.mxu0 0.0
  %125 = vmatprep.subr.mxu0 0.0
  %126 = vmatpush1.xpose.msra.mxu0 0.0
  %127 = vmatprep.subr.mxu0 0.0
  %128 = vmatpush1.xpose.msra.mxu0 0.0
  %129 = vmatprep.subr.mxu0 0.0
  %130 = vmatpush1.xpose.msra.mxu0 0.0
  %131 = vmatprep.subr.mxu0 0.0
  %132 = vmatpush1.xpose.msra.mxu0 0.0
  %133 = vmatprep.subr.mxu0 0.0
  %134 = vmatpush1.xpose.msra.mxu0 0.0
  %135 = vmatprep.subr.mxu0 0.0
  %136 = vmatpush1.xpose.msra.mxu0 0.0
  %137 = vmatprep.mubr.f32.mxu0 0.0
  %138 = vmatmul.mubr.f32.gmra.mrb[0].mxu0 %v68
  %v139 = vpop.f32.mrb[0].mxu0
  %v140 = vadd.f32 0.0, %v139
  %v141 = vpop.f32.mrb[0].mxu0
  %142 = vdwg.mxu0
  %v144 = vsel %vm66, %v18, 0
  %v147 = vsel %vm66, %v34, 0
  %149 = vmatprep.subr.mxu0 0.0
  %150 = vmatpush1.xpose.msra.mxu0 %v147
  %151 = vmatprep.subr.mxu0 0.0
  %152 = vmatpush1.xpose.msra.mxu0 0.0
  %153 = vmatprep.subr.mxu0 0.0
  %154 = vmatpush1.xpose.msra.mxu0 0.0
  %155 = vmatprep.subr.mxu0 0.0
  %156 = vmatpush1.xpose.msra.mxu0 0.0
  %157 = vmatprep.subr.mxu0 0.0
  %158 = vmatpush1.xpose.msra.mxu0 0.0
  %159 = vmatprep.subr.mxu0 0.0
  %160 = vmatpush1.xpose.msra.mxu0 0.0
  %161 = vmatprep.subr.mxu0 0.0
  %162 = vmatpush1.xpose.msra.mxu0 0.0
  %163 = vmatprep.subr.mxu0 0.0
  %164 = vmatpush1.xpose.msra.mxu0 0.0
  %165 = vmatprep.subr.mxu0 0.0
  %166 = vmatpush1.xpose.msra.mxu0 0.0
  %167 = vmatprep.subr.mxu0 0.0
  %168 = vmatpush1.xpose.msra.mxu0 0.0
  %169 = vmatprep.subr.mxu0 0.0
  %170 = vmatpush1.xpose.msra.mxu0 0.0
  %171 = vmatprep.subr.mxu0 0.0
  %172 = vmatpush1.xpose.msra.mxu0 0.0
  %173 = vmatprep.subr.mxu0 0.0
  %174 = vmatpush1.xpose.msra.mxu0 0.0
  %175 = vmatprep.subr.mxu0 0.0
  %176 = vmatpush1.xpose.msra.mxu0 0.0
  %177 = vmatprep.subr.mxu0 0.0
  %178 = vmatpush1.xpose.msra.mxu0 0.0
  %179 = vmatprep.subr.mxu0 0.0
  %180 = vmatpush1.xpose.msra.mxu0 0.0
  %181 = vmatprep.subr.mxu0 0.0
  %182 = vmatpush1.xpose.msra.mxu0 0.0
  %183 = vmatprep.subr.mxu0 0.0
  %184 = vmatpush1.xpose.msra.mxu0 0.0
  %185 = vmatprep.subr.mxu0 0.0
  %186 = vmatpush1.xpose.msra.mxu0 0.0
  %187 = vmatprep.subr.mxu0 0.0
  %188 = vmatpush1.xpose.msra.mxu0 0.0
  %189 = vmatprep.subr.mxu0 0.0
  %190 = vmatpush1.xpose.msra.mxu0 0.0
  %191 = vmatprep.subr.mxu0 0.0
  %192 = vmatpush1.xpose.msra.mxu0 0.0
  %193 = vmatprep.subr.mxu0 0.0
  %194 = vmatpush1.xpose.msra.mxu0 0.0
  %195 = vmatprep.subr.mxu0 0.0
  %196 = vmatpush1.xpose.msra.mxu0 0.0
  %197 = vmatprep.subr.mxu0 0.0
  %198 = vmatpush1.xpose.msra.mxu0 0.0
  %199 = vmatprep.subr.mxu0 0.0
  %200 = vmatpush1.xpose.msra.mxu0 0.0
  %201 = vmatprep.subr.mxu0 0.0
  %202 = vmatpush1.xpose.msra.mxu0 0.0
  %203 = vmatprep.subr.mxu0 0.0
  %204 = vmatpush1.xpose.msra.mxu0 0.0
  %205 = vmatprep.subr.mxu0 0.0
  %206 = vmatpush1.xpose.msra.mxu0 0.0
  %207 = vmatprep.subr.mxu0 0.0
  %208 = vmatpush1.xpose.msra.mxu0 0.0
  %209 = vmatprep.subr.mxu0 0.0
  %210 = vmatpush1.xpose.msra.mxu0 0.0
  %211 = vmatprep.subr.mxu0 0.0
  %212 = vmatpush1.xpose.msra.mxu0 0.0
  %213 = vmatprep.mubr.f32.mxu0 0.0
  %214 = vmatmul.mubr.f32.gmra.mrb[0].mxu0 %v144
  %v215 = vpop.f32.mrb[0].mxu0
  %v216 = vadd.f32 0.0, %v215
  %v217 = vpop.f32.mrb[0].mxu0
  %218 = vdwg.mxu0
  %v220 = vsel %vm66, %v19, 0
  %v223 = vsel %vm66, %v35, 0
  %225 = vmatprep.subr.mxu0 0.0
  %226 = vmatpush1.xpose.msra.mxu0 %v223
  %227 = vmatprep.subr.mxu0 0.0
  %228 = vmatpush1.xpose.msra.mxu0 0.0
  %229 = vmatprep.subr.mxu0 0.0
  %230 = vmatpush1.xpose.msra.mxu0 0.0
  %231 = vmatprep.subr.mxu0 0.0
  %232 = vmatpush1.xpose.msra.mxu0 0.0
  %233 = vmatprep.subr.mxu0 0.0
  %234 = vmatpush1.xpose.msra.mxu0 0.0
  %235 = vmatprep.subr.mxu0 0.0
  %236 = vmatpush1.xpose.msra.mxu0 0.0
  %237 = vmatprep.subr.mxu0 0.0
  %238 = vmatpush1.xpose.msra.mxu0 0.0
  %239 = vmatprep.subr.mxu0 0.0
  %240 = vmatpush1.xpose.msra.mxu0 0.0
  %241 = vmatprep.subr.mxu0 0.0
  %242 = vmatpush1.xpose.msra.mxu0 0.0
  %243 = vmatprep.subr.mxu0 0.0
  %244 = vmatpush1.xpose.msra.mxu0 0.0
  %245 = vmatprep.subr.mxu0 0.0
  %246 = vmatpush1.xpose.msra.mxu0 0.0
  %247 = vmatprep.subr.mxu0 0.0
  %248 = vmatpush1.xpose.msra.mxu0 0.0
  %249 = vmatprep.subr.mxu0 0.0
  %250 = vmatpush1.xpose.msra.mxu0 0.0
  %251 = vmatprep.subr.mxu0 0.0
  %252 = vmatpush1.xpose.msra.mxu0 0.0
  %253 = vmatprep.subr.mxu0 0.0
  %254 = vmatpush1.xpose.msra.mxu0 0.0
  %255 = vmatprep.subr.mxu0 0.0
  %256 = vmatpush1.xpose.msra.mxu0 0.0
  %257 = vmatprep.subr.mxu0 0.0
  %258 = vmatpush1.xpose.msra.mxu0 0.0
  %259 = vmatprep.subr.mxu0 0.0
  %260 = vmatpush1.xpose.msra.mxu0 0.0
  %261 = vmatprep.subr.mxu0 0.0
  %262 = vmatpush1.xpose.msra.mxu0 0.0
  %263 = vmatprep.subr.mxu0 0.0
  %264 = vmatpush1.xpose.msra.mxu0 0.0
  %265 = vmatprep.subr.mxu0 0.0
  %266 = vmatpush1.xpose.msra.mxu0 0.0
  %267 = vmatprep.subr.mxu0 0.0
  %268 = vmatpush1.xpose.msra.mxu0 0.0
  %269 = vmatprep.subr.mxu0 0.0
  %270 = vmatpush1.xpose.msra.mxu0 0.0
  %271 = vmatprep.subr.mxu0 0.0
  %272 = vmatpush1.xpose.msra.mxu0 0.0
  %273 = vmatprep.subr.mxu0 0.0
  %274 = vmatpush1.xpose.msra.mxu0 0.0
  %275 = vmatprep.subr.mxu0 0.0
  %276 = vmatpush1.xpose.msra.mxu0 0.0
  %277 = vmatprep.subr.mxu0 0.0
  %278 = vmatpush1.xpose.msra.mxu0 0.0
  %279 = vmatprep.subr.mxu0 0.0
  %280 = vmatpush1.xpose.msra.mxu0 0.0
  %281 = vmatprep.subr.mxu0 0.0
  %282 = vmatpush1.xpose.msra.mxu0 0.0
  %283 = vmatprep.subr.mxu0 0.0
  %284 = vmatpush1.xpose.msra.mxu0 0.0
  %285 = vmatprep.subr.mxu0 0.0
  %286 = vmatpush1.xpose.msra.mxu0 0.0
  %287 = vmatprep.subr.mxu0 0.0
  %288 = vmatpush1.xpose.msra.mxu0 0.0
  %289 = vmatprep.mubr.f32.mxu0 0.0
  %290 = vmatmul.mubr.f32.gmra.mrb[0].mxu0 %v220
  %v291 = vpop.f32.mrb[0].mxu0
  %v292 = vadd.f32 0.0, %v291
  %v293 = vpop.f32.mrb[0].mxu0
  %294 = vdwg.mxu0
  %v296 = vsel %vm66, %v20, 0
  %v299 = vsel %vm66, %v36, 0
  %301 = vmatprep.subr.mxu0 0.0
  %302 = vmatpush1.xpose.msra.mxu0 %v299
  %303 = vmatprep.subr.mxu0 0.0
  %304 = vmatpush1.xpose.msra.mxu0 0.0
  %305 = vmatprep.subr.mxu0 0.0
  %306 = vmatpush1.xpose.msra.mxu0 0.0
  %307 = vmatprep.subr.mxu0 0.0
  %308 = vmatpush1.xpose.msra.mxu0 0.0
  %309 = vmatprep.subr.mxu0 0.0
  %310 = vmatpush1.xpose.msra.mxu0 0.0
  %311 = vmatprep.subr.mxu0 0.0
  %312 = vmatpush1.xpose.msra.mxu0 0.0
  %313 = vmatprep.subr.mxu0 0.0
  %314 = vmatpush1.xpose.msra.mxu0 0.0
  %315 = vmatprep.subr.mxu0 0.0
  %316 = vmatpush1.xpose.msra.mxu0 0.0
  %317 = vmatprep.subr.mxu0 0.0
  %318 = vmatpush1.xpose.msra.mxu0 0.0
  %319 = vmatprep.subr.mxu0 0.0
  %320 = vmatpush1.xpose.msra.mxu0 0.0
  %321 = vmatprep.subr.mxu0 0.0
  %322 = vmatpush1.xpose.msra.mxu0 0.0
  %323 = vmatprep.subr.mxu0 0.0
  %324 = vmatpush1.xpose.msra.mxu0 0.0
  %325 = vmatprep.subr.mxu0 0.0
  %326 = vmatpush1.xpose.msra.mxu0 0.0
  %327 = vmatprep.subr.mxu0 0.0
  %328 = vmatpush1.xpose.msra.mxu0 0.0
  %329 = vmatprep.subr.mxu0 0.0
  %330 = vmatpush1.xpose.msra.mxu0 0.0
  %331 = vmatprep.subr.mxu0 0.0
  %332 = vmatpush1.xpose.msra.mxu0 0.0
  %333 = vmatprep.subr.mxu0 0.0
  %334 = vmatpush1.xpose.msra.mxu0 0.0
  %335 = vmatprep.subr.mxu0 0.0
  %336 = vmatpush1.xpose.msra.mxu0 0.0
  %337 = vmatprep.subr.mxu0 0.0
  %338 = vmatpush1.xpose.msra.mxu0 0.0
  %339 = vmatprep.subr.mxu0 0.0
  %340 = vmatpush1.xpose.msra.mxu0 0.0
  %341 = vmatprep.subr.mxu0 0.0
  %342 = vmatpush1.xpose.msra.mxu0 0.0
  %343 = vmatprep.subr.mxu0 0.0
  %344 = vmatpush1.xpose.msra.mxu0 0.0
  %345 = vmatprep.subr.mxu0 0.0
  %346 = vmatpush1.xpose.msra.mxu0 0.0
  %347 = vmatprep.subr.mxu0 0.0
  %348 = vmatpush1.xpose.msra.mxu0 0.0
  %349 = vmatprep.subr.mxu0 0.0
  %350 = vmatpush1.xpose.msra.mxu0 0.0
  %351 = vmatprep.subr.mxu0 0.0
  %352 = vmatpush1.xpose.msra.mxu0 0.0
  %353 = vmatprep.subr.mxu0 0.0
  %354 = vmatpush1.xpose.msra.mxu0 0.0
  %355 = vmatprep.subr.mxu0 0.0
  %356 = vmatpush1.xpose.msra.mxu0 0.0
  %357 = vmatprep.subr.mxu0 0.0
  %358 = vmatpush1.xpose.msra.mxu0 0.0
  %359 = vmatprep.subr.mxu0 0.0
  %360 = vmatpush1.xpose.msra.mxu0 0.0
  %361 = vmatprep.subr.mxu0 0.0
  %362 = vmatpush1.xpose.msra.mxu0 0.0
  %363 = vmatprep.subr.mxu0 0.0
  %364 = vmatpush1.xpose.msra.mxu0 0.0
  %365 = vmatprep.mubr.f32.mxu0 0.0
  %366 = vmatmul.mubr.f32.gmra.mrb[0].mxu0 %v296
  %v367 = vpop.f32.mrb[0].mxu0
  %v368 = vadd.f32 0.0, %v367
  %v369 = vpop.f32.mrb[0].mxu0
  %370 = vdwg.mxu0
  %v372 = vsel %vm66, %v21, 0
  %v375 = vsel %vm66, %v37, 0
  %377 = vmatprep.subr.mxu0 0.0
  %378 = vmatpush1.xpose.msra.mxu0 %v375
  %379 = vmatprep.subr.mxu0 0.0
  %380 = vmatpush1.xpose.msra.mxu0 0.0
  %381 = vmatprep.subr.mxu0 0.0
  %382 = vmatpush1.xpose.msra.mxu0 0.0
  %383 = vmatprep.subr.mxu0 0.0
  %384 = vmatpush1.xpose.msra.mxu0 0.0
  %385 = vmatprep.subr.mxu0 0.0
  %386 = vmatpush1.xpose.msra.mxu0 0.0
  %387 = vmatprep.subr.mxu0 0.0
  %388 = vmatpush1.xpose.msra.mxu0 0.0
  %389 = vmatprep.subr.mxu0 0.0
  %390 = vmatpush1.xpose.msra.mxu0 0.0
  %391 = vmatprep.subr.mxu0 0.0
  %392 = vmatpush1.xpose.msra.mxu0 0.0
  %393 = vmatprep.subr.mxu0 0.0
  %394 = vmatpush1.xpose.msra.mxu0 0.0
  %395 = vmatprep.subr.mxu0 0.0
  %396 = vmatpush1.xpose.msra.mxu0 0.0
  %397 = vmatprep.subr.mxu0 0.0
  %398 = vmatpush1.xpose.msra.mxu0 0.0
  %399 = vmatprep.subr.mxu0 0.0
  %400 = vmatpush1.xpose.msra.mxu0 0.0
  %401 = vmatprep.subr.mxu0 0.0
  %402 = vmatpush1.xpose.msra.mxu0 0.0
  %403 = vmatprep.subr.mxu0 0.0
  %404 = vmatpush1.xpose.msra.mxu0 0.0
  %405 = vmatprep.subr.mxu0 0.0
  %406 = vmatpush1.xpose.msra.mxu0 0.0
  %407 = vmatprep.subr.mxu0 0.0
  %408 = vmatpush1.xpose.msra.mxu0 0.0
  %409 = vmatprep.subr.mxu0 0.0
  %410 = vmatpush1.xpose.msra.mxu0 0.0
  %411 = vmatprep.subr.mxu0 0.0
  %412 = vmatpush1.xpose.msra.mxu0 0.0
  %413 = vmatprep.subr.mxu0 0.0
  %414 = vmatpush1.xpose.msra.mxu0 0.0
  %415 = vmatprep.subr.mxu0 0.0
  %416 = vmatpush1.xpose.msra.mxu0 0.0
  %417 = vmatprep.subr.mxu0 0.0
  %418 = vmatpush1.xpose.msra.mxu0 0.0
  %419 = vmatprep.subr.mxu0 0.0
  %420 = vmatpush1.xpose.msra.mxu0 0.0
  %421 = vmatprep.subr.mxu0 0.0
  %422 = vmatpush1.xpose.msra.mxu0 0.0
  %423 = vmatprep.subr.mxu0 0.0
  %424 = vmatpush1.xpose.msra.mxu0 0.0
  %425 = vmatprep.subr.mxu0 0.0
  %426 = vmatpush1.xpose.msra.mxu0 0.0
  %427 = vmatprep.subr.mxu0 0.0
  %428 = vmatpush1.xpose.msra.mxu0 0.0
  %429 = vmatprep.subr.mxu0 0.0
  %430 = vmatpush1.xpose.msra.mxu0 0.0
  %431 = vmatprep.subr.mxu0 0.0
  %432 = vmatpush1.xpose.msra.mxu0 0.0
  %433 = vmatprep.subr.mxu0 0.0
  %434 = vmatpush1.xpose.msra.mxu0 0.0
  %435 = vmatprep.subr.mxu0 0.0
  %436 = vmatpush1.xpose.msra.mxu0 0.0
  %437 = vmatprep.subr.mxu0 0.0
  %438 = vmatpush1.xpose.msra.mxu0 0.0
  %439 = vmatprep.subr.mxu0 0.0
  %440 = vmatpush1.xpose.msra.mxu0 0.0
  %441 = vmatprep.mubr.f32.mxu0 0.0
  %442 = vmatmul.mubr.f32.gmra.mrb[0].mxu0 %v372
  %v443 = vpop.f32.mrb[0].mxu0
  %v444 = vadd.f32 0.0, %v443
  %v445 = vpop.f32.mrb[0].mxu0
  %446 = vdwg.mxu0
  %v448 = vsel %vm66, %v22, 0
  %v451 = vsel %vm66, %v38, 0
  %453 = vmatprep.subr.mxu0 0.0
  %454 = vmatpush1.xpose.msra.mxu0 %v451
  %455 = vmatprep.subr.mxu0 0.0
  %456 = vmatpush1.xpose.msra.mxu0 0.0
  %457 = vmatprep.subr.mxu0 0.0
  %458 = vmatpush1.xpose.msra.mxu0 0.0
  %459 = vmatprep.subr.mxu0 0.0
  %460 = vmatpush1.xpose.msra.mxu0 0.0
  %461 = vmatprep.subr.mxu0 0.0
  %462 = vmatpush1.xpose.msra.mxu0 0.0
  %463 = vmatprep.subr.mxu0 0.0
  %464 = vmatpush1.xpose.msra.mxu0 0.0
  %465 = vmatprep.subr.mxu0 0.0
  %466 = vmatpush1.xpose.msra.mxu0 0.0
  %467 = vmatprep.subr.mxu0 0.0
  %468 = vmatpush1.xpose.msra.mxu0 0.0
  %469 = vmatprep.subr.mxu0 0.0
  %470 = vmatpush1.xpose.msra.mxu0 0.0
  %471 = vmatprep.subr.mxu0 0.0
  %472 = vmatpush1.xpose.msra.mxu0 0.0
  %473 = vmatprep.subr.mxu0 0.0
  %474 = vmatpush1.xpose.msra.mxu0 0.0
  %475 = vmatprep.subr.mxu0 0.0
  %476 = vmatpush1.xpose.msra.mxu0 0.0
  %477 = vmatprep.subr.mxu0 0.0
  %478 = vmatpush1.xpose.msra.mxu0 0.0
  %479 = vmatprep.subr.mxu0 0.0
  %480 = vmatpush1.xpose.msra.mxu0 0.0
  %481 = vmatprep.subr.mxu0 0.0
  %482 = vmatpush1.xpose.msra.mxu0 0.0
  %483 = vmatprep.subr.mxu0 0.0
  %484 = vmatpush1.xpose.msra.mxu0 0.0
  %485 = vmatprep.subr.mxu0 0.0
  %486 = vmatpush1.xpose.msra.mxu0 0.0
  %487 = vmatprep.subr.mxu0 0.0
  %488 = vmatpush1.xpose.msra.mxu0 0.0
  %489 = vmatprep.subr.mxu0 0.0
  %490 = vmatpush1.xpose.msra.mxu0 0.0
  %491 = vmatprep.subr.mxu0 0.0
  %492 = vmatpush1.xpose.msra.mxu0 0.0
  %493 = vmatprep.subr.mxu0 0.0
  %494 = vmatpush1.xpose.msra.mxu0 0.0
  %495 = vmatprep.subr.mxu0 0.0
  %496 = vmatpush1.xpose.msra.mxu0 0.0
  %497 = vmatprep.subr.mxu0 0.0
  %498 = vmatpush1.xpose.msra.mxu0 0.0
  %499 = vmatprep.subr.mxu0 0.0
  %500 = vmatpush1.xpose.msra.mxu0 0.0
  %501 = vmatprep.subr.mxu0 0.0
  %502 = vmatpush1.xpose.msra.mxu0 0.0
  %503 = vmatprep.subr.mxu0 0.0
  %504 = vmatpush1.xpose.msra.mxu0 0.0
  %505 = vmatprep.subr.mxu0 0.0
  %506 = vmatpush1.xpose.msra.mxu0 0.0
  %507 = vmatprep.subr.mxu0 0.0
  %508 = vmatpush1.xpose.msra.mxu0 0.0
  %509 = vmatprep.subr.mxu0 0.0
  %510 = vmatpush1.xpose.msra.mxu0 0.0
  %511 = vmatprep.subr.mxu0 0.0
  %512 = vmatpush1.xpose.msra.mxu0 0.0
  %513 = vmatprep.subr.mxu0 0.0
  %514 = vmatpush1.xpose.msra.mxu0 0.0
  %515 = vmatprep.subr.mxu0 0.0
  %516 = vmatpush1.xpose.msra.mxu0 0.0
  %517 = vmatprep.mubr.f32.mxu0 0.0
  %518 = vmatmul.mubr.f32.gmra.mrb[0].mxu0 %v448
  %v519 = vpop.f32.mrb[0].mxu0
  %v520 = vadd.f32 0.0, %v519
  %v521 = vpop.f32.mrb[0].mxu0
  %522 = vdwg.mxu0
  %v524 = vsel %vm66, %v23, 0
  %v527 = vsel %vm66, %v39, 0
  %529 = vmatprep.subr.mxu0 0.0
  %530 = vmatpush1.xpose.msra.mxu0 %v527
  %531 = vmatprep.subr.mxu0 0.0
  %532 = vmatpush1.xpose.msra.mxu0 0.0
  %533 = vmatprep.subr.mxu0 0.0
  %534 = vmatpush1.xpose.msra.mxu0 0.0
  %535 = vmatprep.subr.mxu0 0.0
  %536 = vmatpush1.xpose.msra.mxu0 0.0
  %537 = vmatprep.subr.mxu0 0.0
  %538 = vmatpush1.xpose.msra.mxu0 0.0
  %539 = vmatprep.subr.mxu0 0.0
  %540 = vmatpush1.xpose.msra.mxu0 0.0
  %541 = vmatprep.subr.mxu0 0.0
  %542 = vmatpush1.xpose.msra.mxu0 0.0
  %543 = vmatprep.subr.mxu0 0.0
  %544 = vmatpush1.xpose.msra.mxu0 0.0
  %545 = vmatprep.subr.mxu0 0.0
  %546 = vmatpush1.xpose.msra.mxu0 0.0
  %547 = vmatprep.subr.mxu0 0.0
  %548 = vmatpush1.xpose.msra.mxu0 0.0
  %549 = vmatprep.subr.mxu0 0.0
  %550 = vmatpush1.xpose.msra.mxu0 0.0
  %551 = vmatprep.subr.mxu0 0.0
  %552 = vmatpush1.xpose.msra.mxu0 0.0
  %553 = vmatprep.subr.mxu0 0.0
  %554 = vmatpush1.xpose.msra.mxu0 0.0
  %555 = vmatprep.subr.mxu0 0.0
  %556 = vmatpush1.xpose.msra.mxu0 0.0
  %557 = vmatprep.subr.mxu0 0.0
  %558 = vmatpush1.xpose.msra.mxu0 0.0
  %559 = vmatprep.subr.mxu0 0.0
  %560 = vmatpush1.xpose.msra.mxu0 0.0
  %561 = vmatprep.subr.mxu0 0.0
  %562 = vmatpush1.xpose.msra.mxu0 0.0
  %563 = vmatprep.subr.mxu0 0.0
  %564 = vmatpush1.xpose.msra.mxu0 0.0
  %565 = vmatprep.subr.mxu0 0.0
  %566 = vmatpush1.xpose.msra.mxu0 0.0
  %567 = vmatprep.subr.mxu0 0.0
  %568 = vmatpush1.xpose.msra.mxu0 0.0
  %569 = vmatprep.subr.mxu0 0.0
  %570 = vmatpush1.xpose.msra.mxu0 0.0
  %571 = vmatprep.subr.mxu0 0.0
  %572 = vmatpush1.xpose.msra.mxu0 0.0
  %573 = vmatprep.subr.mxu0 0.0
  %574 = vmatpush1.xpose.msra.mxu0 0.0
  %575 = vmatprep.subr.mxu0 0.0
  %576 = vmatpush1.xpose.msra.mxu0 0.0
  %577 = vmatprep.subr.mxu0 0.0
  %578 = vmatpush1.xpose.msra.mxu0 0.0
  %579 = vmatprep.subr.mxu0 0.0
  %580 = vmatpush1.xpose.msra.mxu0 0.0
  %581 = vmatprep.subr.mxu0 0.0
  %582 = vmatpush1.xpose.msra.mxu0 0.0
  %583 = vmatprep.subr.mxu0 0.0
  %584 = vmatpush1.xpose.msra.mxu0 0.0
  %585 = vmatprep.subr.mxu0 0.0
  %586 = vmatpush1.xpose.msra.mxu0 0.0
  %587 = vmatprep.subr.mxu0 0.0
  %588 = vmatpush1.xpose.msra.mxu0 0.0
  %589 = vmatprep.subr.mxu0 0.0
  %590 = vmatpush1.xpose.msra.mxu0 0.0
  %591 = vmatprep.subr.mxu0 0.0
  %592 = vmatpush1.xpose.msra.mxu0 0.0
  %593 = vmatprep.mubr.f32.mxu0 0.0
  %594 = vmatmul.mubr.f32.gmra.mrb[0].mxu0 %v524
  %v595 = vpop.f32.mrb[0].mxu0
  %v596 = vadd.f32 0.0, %v595
  %v597 = vpop.f32.mrb[0].mxu0
  %598 = vdwg.mxu0
  %v600 = vsel %vm66, %v24, 0
  %v603 = vsel %vm66, %v40, 0
  %605 = vmatprep.subr.mxu0 0.0
  %606 = vmatpush1.xpose.msra.mxu0 %v603
  %607 = vmatprep.subr.mxu0 0.0
  %608 = vmatpush1.xpose.msra.mxu0 0.0
  %609 = vmatprep.subr.mxu0 0.0
  %610 = vmatpush1.xpose.msra.mxu0 0.0
  %611 = vmatprep.subr.mxu0 0.0
  %612 = vmatpush1.xpose.msra.mxu0 0.0
  %613 = vmatprep.subr.mxu0 0.0
  %614 = vmatpush1.xpose.msra.mxu0 0.0
  %615 = vmatprep.subr.mxu0 0.0
  %616 = vmatpush1.xpose.msra.mxu0 0.0
  %617 = vmatprep.subr.mxu0 0.0
  %618 = vmatpush1.xpose.msra.mxu0 0.0
  %619 = vmatprep.subr.mxu0 0.0
  %620 = vmatpush1.xpose.msra.mxu0 0.0
  %621 = vmatprep.subr.mxu0 0.0
  %622 = vmatpush1.xpose.msra.mxu0 0.0
  %623 = vmatprep.subr.mxu0 0.0
  %624 = vmatpush1.xpose.msra.mxu0 0.0
  %625 = vmatprep.subr.mxu0 0.0
  %626 = vmatpush1.xpose.msra.mxu0 0.0
  %627 = vmatprep.subr.mxu0 0.0
  %628 = vmatpush1.xpose.msra.mxu0 0.0
  %629 = vmatprep.subr.mxu0 0.0
  %630 = vmatpush1.xpose.msra.mxu0 0.0
  %631 = vmatprep.subr.mxu0 0.0
  %632 = vmatpush1.xpose.msra.mxu0 0.0
  %633 = vmatprep.subr.mxu0 0.0
  %634 = vmatpush1.xpose.msra.mxu0 0.0
  %635 = vmatprep.subr.mxu0 0.0
  %636 = vmatpush1.xpose.msra.mxu0 0.0
  %637 = vmatprep.subr.mxu0 0.0
  %638 = vmatpush1.xpose.msra.mxu0 0.0
  %639 = vmatprep.subr.mxu0 0.0
  %640 = vmatpush1.xpose.msra.mxu0 0.0
  %641 = vmatprep.subr.mxu0 0.0
  %642 = vmatpush1.xpose.msra.mxu0 0.0
  %643 = vmatprep.subr.mxu0 0.0
  %644 = vmatpush1.xpose.msra.mxu0 0.0
  %645 = vmatprep.subr.mxu0 0.0
  %646 = vmatpush1.xpose.msra.mxu0 0.0
  %647 = vmatprep.subr.mxu0 0.0
  %648 = vmatpush1.xpose.msra.mxu0 0.0
  %649 = vmatprep.subr.mxu0 0.0
  %650 = vmatpush1.xpose.msra.mxu0 0.0
  %651 = vmatprep.subr.mxu0 0.0
  %652 = vmatpush1.xpose.msra.mxu0 0.0
  %653 = vmatprep.subr.mxu0 0.0
  %654 = vmatpush1.xpose.msra.mxu0 0.0
  %655 = vmatprep.subr.mxu0 0.0
  %656 = vmatpush1.xpose.msra.mxu0 0.0
  %657 = vmatprep.subr.mxu0 0.0
  %658 = vmatpush1.xpose.msra.mxu0 0.0
  %659 = vmatprep.subr.mxu0 0.0
  %660 = vmatpush1.xpose.msra.mxu0 0.0
  %661 = vmatprep.subr.mxu0 0.0
  %662 = vmatpush1.xpose.msra.mxu0 0.0
  %663 = vmatprep.subr.mxu0 0.0
  %664 = vmatpush1.xpose.msra.mxu0 0.0
  %665 = vmatprep.subr.mxu0 0.0
  %666 = vmatpush1.xpose.msra.mxu0 0.0
  %667 = vmatprep.subr.mxu0 0.0
  %668 = vmatpush1.xpose.msra.mxu0 0.0
  %669 = vmatprep.mubr.f32.mxu0 0.0
  %670 = vmatmul.mubr.f32.gmra.mrb[0].mxu0 %v600
  %v671 = vpop.f32.mrb[0].mxu0
  %v672 = vadd.f32 0.0, %v671
  %v673 = vpop.f32.mrb[0].mxu0
  %674 = vdwg.mxu0
  %v676 = vsel %vm66, %v25, 0
  %v679 = vsel %vm66, %v41, 0
  %681 = vmatprep.subr.mxu0 0.0
  %682 = vmatpush1.xpose.msra.mxu0 %v679
  %683 = vmatprep.subr.mxu0 0.0
  %684 = vmatpush1.xpose.msra.mxu0 0.0
  %685 = vmatprep.subr.mxu0 0.0
  %686 = vmatpush1.xpose.msra.mxu0 0.0
  %687 = vmatprep.subr.mxu0 0.0
  %688 = vmatpush1.xpose.msra.mxu0 0.0
  %689 = vmatprep.subr.mxu0 0.0
  %690 = vmatpush1.xpose.msra.mxu0 0.0
  %691 = vmatprep.subr.mxu0 0.0
  %692 = vmatpush1.xpose.msra.mxu0 0.0
  %693 = vmatprep.subr.mxu0 0.0
  %694 = vmatpush1.xpose.msra.mxu0 0.0
  %695 = vmatprep.subr.mxu0 0.0
  %696 = vmatpush1.xpose.msra.mxu0 0.0
  %697 = vmatprep.subr.mxu0 0.0
  %698 = vmatpush1.xpose.msra.mxu0 0.0
  %699 = vmatprep.subr.mxu0 0.0
  %700 = vmatpush1.xpose.msra.mxu0 0.0
  %701 = vmatprep.subr.mxu0 0.0
  %702 = vmatpush1.xpose.msra.mxu0 0.0
  %703 = vmatprep.subr.mxu0 0.0
  %704 = vmatpush1.xpose.msra.mxu0 0.0
  %705 = vmatprep.subr.mxu0 0.0
  %706 = vmatpush1.xpose.msra.mxu0 0.0
  %707 = vmatprep.subr.mxu0 0.0
  %708 = vmatpush1.xpose.msra.mxu0 0.0
  %709 = vmatprep.subr.mxu0 0.0
  %710 = vmatpush1.xpose.msra.mxu0 0.0
  %711 = vmatprep.subr.mxu0 0.0
  %712 = vmatpush1.xpose.msra.mxu0 0.0
  %713 = vmatprep.subr.mxu0 0.0
  %714 = vmatpush1.xpose.msra.mxu0 0.0
  %715 = vmatprep.subr.mxu0 0.0
  %716 = vmatpush1.xpose.msra.mxu0 0.0
  %717 = vmatprep.subr.mxu0 0.0
  %718 = vmatpush1.xpose.msra.mxu0 0.0
  %719 = vmatprep.subr.mxu0 0.0
  %720 = vmatpush1.xpose.msra.mxu0 0.0
  %721 = vmatprep.subr.mxu0 0.0
  %722 = vmatpush1.xpose.msra.mxu0 0.0
  %723 = vmatprep.subr.mxu0 0.0
  %724 = vmatpush1.xpose.msra.mxu0 0.0
  %725 = vmatprep.subr.mxu0 0.0
  %726 = vmatpush1.xpose.msra.mxu0 0.0
  %727 = vmatprep.subr.mxu0 0.0
  %728 = vmatpush1.xpose.msra.mxu0 0.0
  %729 = vmatprep.subr.mxu0 0.0
  %730 = vmatpush1.xpose.msra.mxu0 0.0
  %731 = vmatprep.subr.mxu0 0.0
  %732 = vmatpush1.xpose.msra.mxu0 0.0
  %733 = vmatprep.subr.mxu0 0.0
  %734 = vmatpush1.xpose.msra.mxu0 0.0
  %735 = vmatprep.subr.mxu0 0.0
  %736 = vmatpush1.xpose.msra.mxu0 0.0
  %737 = vmatprep.subr.mxu0 0.0
  %738 = vmatpush1.xpose.msra.mxu0 0.0
  %739 = vmatprep.subr.mxu0 0.0
  %740 = vmatpush1.xpose.msra.mxu0 0.0
  %741 = vmatprep.subr.mxu0 0.0
  %742 = vmatpush1.xpose.msra.mxu0 0.0
  %743 = vmatprep.subr.mxu0 0.0
  %744 = vmatpush1.xpose.msra.mxu0 0.0
  %745 = vmatprep.mubr.f32.mxu0 0.0
  %746 = vmatmul.mubr.f32.gmra.mrb[0].mxu0 %v676
  %v747 = vpop.f32.mrb[0].mxu0
  %v748 = vadd.f32 0.0, %v747
  %v749 = vpop.f32.mrb[0].mxu0
  %750 = vdwg.mxu0
  %v752 = vsel %vm66, %v26, 0
  %v755 = vsel %vm66, %v42, 0
  %757 = vmatprep.subr.mxu0 0.0
  %758 = vmatpush1.xpose.msra.mxu0 %v755
  %759 = vmatprep.subr.mxu0 0.0
  %760 = vmatpush1.xpose.msra.mxu0 0.0
  %761 = vmatprep.subr.mxu0 0.0
  %762 = vmatpush1.xpose.msra.mxu0 0.0
  %763 = vmatprep.subr.mxu0 0.0
  %764 = vmatpush1.xpose.msra.mxu0 0.0
  %765 = vmatprep.subr.mxu0 0.0
  %766 = vmatpush1.xpose.msra.mxu0 0.0
  %767 = vmatprep.subr.mxu0 0.0
  %768 = vmatpush1.xpose.msra.mxu0 0.0
  %769 = vmatprep.subr.mxu0 0.0
  %770 = vmatpush1.xpose.msra.mxu0 0.0
  %771 = vmatprep.subr.mxu0 0.0
  %772 = vmatpush1.xpose.msra.mxu0 0.0
  %773 = vmatprep.subr.mxu0 0.0
  %774 = vmatpush1.xpose.msra.mxu0 0.0
  %775 = vmatprep.subr.mxu0 0.0
  %776 = vmatpush1.xpose.msra.mxu0 0.0
  %777 = vmatprep.subr.mxu0 0.0
  %778 = vmatpush1.xpose.msra.mxu0 0.0
  %779 = vmatprep.subr.mxu0 0.0
  %780 = vmatpush1.xpose.msra.mxu0 0.0
  %781 = vmatprep.subr.mxu0 0.0
  %782 = vmatpush1.xpose.msra.mxu0 0.0
  %783 = vmatprep.subr.mxu0 0.0
  %784 = vmatpush1.xpose.msra.mxu0 0.0
  %785 = vmatprep.subr.mxu0 0.0
  %786 = vmatpush1.xpose.msra.mxu0 0.0
  %787 = vmatprep.subr.mxu0 0.0
  %788 = vmatpush1.xpose.msra.mxu0 0.0
  %789 = vmatprep.subr.mxu0 0.0
  %790 = vmatpush1.xpose.msra.mxu0 0.0
  %791 = vmatprep.subr.mxu0 0.0
  %792 = vmatpush1.xpose.msra.mxu0 0.0
  %793 = vmatprep.subr.mxu0 0.0
  %794 = vmatpush1.xpose.msra.mxu0 0.0
  %795 = vmatprep.subr.mxu0 0.0
  %796 = vmatpush1.xpose.msra.mxu0 0.0
  %797 = vmatprep.subr.mxu0 0.0
  %798 = vmatpush1.xpose.msra.mxu0 0.0
  %799 = vmatprep.subr.mxu0 0.0
  %800 = vmatpush1.xpose.msra.mxu0 0.0
  %801 = vmatprep.subr.mxu0 0.0
  %802 = vmatpush1.xpose.msra.mxu0 0.0
  %803 = vmatprep.subr.mxu0 0.0
  %804 = vmatpush1.xpose.msra.mxu0 0.0
  %805 = vmatprep.subr.mxu0 0.0
  %806 = vmatpush1.xpose.msra.mxu0 0.0
  %807 = vmatprep.subr.mxu0 0.0
  %808 = vmatpush1.xpose.msra.mxu0 0.0
  %809 = vmatprep.subr.mxu0 0.0
  %810 = vmatpush1.xpose.msra.mxu0 0.0
  %811 = vmatprep.subr.mxu0 0.0
  %812 = vmatpush1.xpose.msra.mxu0 0.0
  %813 = vmatprep.subr.mxu0 0.0
  %814 = vmatpush1.xpose.msra.mxu0 0.0
  %815 = vmatprep.subr.mxu0 0.0
  %816 = vmatpush1.xpose.msra.mxu0 0.0
  %817 = vmatprep.subr.mxu0 0.0
  %818 = vmatpush1.xpose.msra.mxu0 0.0
  %819 = vmatprep.subr.mxu0 0.0
  %820 = vmatpush1.xpose.msra.mxu0 0.0
  %821 = vmatprep.mubr.f32.mxu0 0.0
  %822 = vmatmul.mubr.f32.gmra.mrb[0].mxu0 %v752
  %v823 = vpop.f32.mrb[0].mxu0
  %v824 = vadd.f32 0.0, %v823
  %v825 = vpop.f32.mrb[0].mxu0
  %826 = vdwg.mxu0
  %v828 = vsel %vm66, %v27, 0
  %v831 = vsel %vm66, %v43, 0
  %833 = vmatprep.subr.mxu0 0.0
  %834 = vmatpush1.xpose.msra.mxu0 %v831
  %835 = vmatprep.subr.mxu0 0.0
  %836 = vmatpush1.xpose.msra.mxu0 0.0
  %837 = vmatprep.subr.mxu0 0.0
  %838 = vmatpush1.xpose.msra.mxu0 0.0
  %839 = vmatprep.subr.mxu0 0.0
  %840 = vmatpush1.xpose.msra.mxu0 0.0
  %841 = vmatprep.subr.mxu0 0.0
  %842 = vmatpush1.xpose.msra.mxu0 0.0
  %843 = vmatprep.subr.mxu0 0.0
  %844 = vmatpush1.xpose.msra.mxu0 0.0
  %845 = vmatprep.subr.mxu0 0.0
  %846 = vmatpush1.xpose.msra.mxu0 0.0
  %847 = vmatprep.subr.mxu0 0.0
  %848 = vmatpush1.xpose.msra.mxu0 0.0
  %849 = vmatprep.subr.mxu0 0.0
  %850 = vmatpush1.xpose.msra.mxu0 0.0
  %851 = vmatprep.subr.mxu0 0.0
  %852 = vmatpush1.xpose.msra.mxu0 0.0
  %853 = vmatprep.subr.mxu0 0.0
  %854 = vmatpush1.xpose.msra.mxu0 0.0
  %855 = vmatprep.subr.mxu0 0.0
  %856 = vmatpush1.xpose.msra.mxu0 0.0
  %857 = vmatprep.subr.mxu0 0.0
  %858 = vmatpush1.xpose.msra.mxu0 0.0
  %859 = vmatprep.subr.mxu0 0.0
  %860 = vmatpush1.xpose.msra.mxu0 0.0
  %861 = vmatprep.subr.mxu0 0.0
  %862 = vmatpush1.xpose.msra.mxu0 0.0
  %863 = vmatprep.subr.mxu0 0.0
  %864 = vmatpush1.xpose.msra.mxu0 0.0
  %865 = vmatprep.subr.mxu0 0.0
  %866 = vmatpush1.xpose.msra.mxu0 0.0
  %867 = vmatprep.subr.mxu0 0.0
  %868 = vmatpush1.xpose.msra.mxu0 0.0
  %869 = vmatprep.subr.mxu0 0.0
  %870 = vmatpush1.xpose.msra.mxu0 0.0
  %871 = vmatprep.subr.mxu0 0.0
  %872 = vmatpush1.xpose.msra.mxu0 0.0
  %873 = vmatprep.subr.mxu0 0.0
  %874 = vmatpush1.xpose.msra.mxu0 0.0
  %875 = vmatprep.subr.mxu0 0.0
  %876 = vmatpush1.xpose.msra.mxu0 0.0
  %877 = vmatprep.subr.mxu0 0.0
  %878 = vmatpush1.xpose.msra.mxu0 0.0
  %879 = vmatprep.subr.mxu0 0.0
  %880 = vmatpush1.xpose.msra.mxu0 0.0
  %881 = vmatprep.subr.mxu0 0.0
  %882 = vmatpush1.xpose.msra.mxu0 0.0
  %883 = vmatprep.subr.mxu0 0.0
  %884 = vmatpush1.xpose.msra.mxu0 0.0
  %885 = vmatprep.subr.mxu0 0.0
  %886 = vmatpush1.xpose.msra.mxu0 0.0
  %887 = vmatprep.subr.mxu0 0.0
  %888 = vmatpush1.xpose.msra.mxu0 0.0
  %889 = vmatprep.subr.mxu0 0.0
  %890 = vmatpush1.xpose.msra.mxu0 0.0
  %891 = vmatprep.subr.mxu0 0.0
  %892 = vmatpush1.xpose.msra.mxu0 0.0
  %893 = vmatprep.subr.mxu0 0.0
  %894 = vmatpush1.xpose.msra.mxu0 0.0
  %895 = vmatprep.subr.mxu0 0.0
  %896 = vmatpush1.xpose.msra.mxu0 0.0
  %897 = vmatprep.mubr.f32.mxu0 0.0
  %898 = vmatmul.mubr.f32.gmra.mrb[0].mxu0 %v828
  %v899 = vpop.f32.mrb[0].mxu0
  %v900 = vadd.f32 0.0, %v899
  %v901 = vpop.f32.mrb[0].mxu0
  %902 = vdwg.mxu0
  %v904 = vsel %vm66, %v28, 0
  %v907 = vsel %vm66, %v44, 0
  %909 = vmatprep.subr.mxu0 0.0
  %910 = vmatpush1.xpose.msra.mxu0 %v907
  %911 = vmatprep.subr.mxu0 0.0
  %912 = vmatpush1.xpose.msra.mxu0 0.0
  %913 = vmatprep.subr.mxu0 0.0
  %914 = vmatpush1.xpose.msra.mxu0 0.0
  %915 = vmatprep.subr.mxu0 0.0
  %916 = vmatpush1.xpose.msra.mxu0 0.0
  %917 = vmatprep.subr.mxu0 0.0
  %918 = vmatpush1.xpose.msra.mxu0 0.0
  %919 = vmatprep.subr.mxu0 0.0
  %920 = vmatpush1.xpose.msra.mxu0 0.0
  %921 = vmatprep.subr.mxu0 0.0
  %922 = vmatpush1.xpose.msra.mxu0 0.0
  %923 = vmatprep.subr.mxu0 0.0
  %924 = vmatpush1.xpose.msra.mxu0 0.0
  %925 = vmatprep.subr.mxu0 0.0
  %926 = vmatpush1.xpose.msra.mxu0 0.0
  %927 = vmatprep.subr.mxu0 0.0
  %928 = vmatpush1.xpose.msra.mxu0 0.0
  %929 = vmatprep.subr.mxu0 0.0
  %930 = vmatpush1.xpose.msra.mxu0 0.0
  %931 = vmatprep.subr.mxu0 0.0
  %932 = vmatpush1.xpose.msra.mxu0 0.0
  %933 = vmatprep.subr.mxu0 0.0
  %934 = vmatpush1.xpose.msra.mxu0 0.0
  %935 = vmatprep.subr.mxu0 0.0
  %936 = vmatpush1.xpose.msra.mxu0 0.0
  %937 = vmatprep.subr.mxu0 0.0
  %938 = vmatpush1.xpose.msra.mxu0 0.0
  %939 = vmatprep.subr.mxu0 0.0
  %940 = vmatpush1.xpose.msra.mxu0 0.0
  %941 = vmatprep.subr.mxu0 0.0
  %942 = vmatpush1.xpose.msra.mxu0 0.0
  %943 = vmatprep.subr.mxu0 0.0
  %944 = vmatpush1.xpose.msra.mxu0 0.0
  %945 = vmatprep.subr.mxu0 0.0
  %946 = vmatpush1.xpose.msra.mxu0 0.0
  %947 = vmatprep.subr.mxu0 0.0
  %948 = vmatpush1.xpose.msra.mxu0 0.0
  %949 = vmatprep.subr.mxu0 0.0
  %950 = vmatpush1.xpose.msra.mxu0 0.0
  %951 = vmatprep.subr.mxu0 0.0
  %952 = vmatpush1.xpose.msra.mxu0 0.0
  %953 = vmatprep.subr.mxu0 0.0
  %954 = vmatpush1.xpose.msra.mxu0 0.0
  %955 = vmatprep.subr.mxu0 0.0
  %956 = vmatpush1.xpose.msra.mxu0 0.0
  %957 = vmatprep.subr.mxu0 0.0
  %958 = vmatpush1.xpose.msra.mxu0 0.0
  %959 = vmatprep.subr.mxu0 0.0
  %960 = vmatpush1.xpose.msra.mxu0 0.0
  %961 = vmatprep.subr.mxu0 0.0
  %962 = vmatpush1.xpose.msra.mxu0 0.0
  %963 = vmatprep.subr.mxu0 0.0
  %964 = vmatpush1.xpose.msra.mxu0 0.0
  %965 = vmatprep.subr.mxu0 0.0
  %966 = vmatpush1.xpose.msra.mxu0 0.0
  %967 = vmatprep.subr.mxu0 0.0
  %968 = vmatpush1.xpose.msra.mxu0 0.0
  %969 = vmatprep.subr.mxu0 0.0
  %970 = vmatpush1.xpose.msra.mxu0 0.0
  %971 = vmatprep.subr.mxu0 0.0
  %972 = vmatpush1.xpose.msra.mxu0 0.0
  %973 = vmatprep.mubr.f32.mxu0 0.0
  %974 = vmatmul.mubr.f32.gmra.mrb[0].mxu0 %v904
  %v975 = vpop.f32.mrb[0].mxu0
  %v976 = vadd.f32 0.0, %v975
  %v977 = vpop.f32.mrb[0].mxu0
  %978 = vdwg.mxu0
  %v980 = vsel %vm66, %v29, 0
  %v983 = vsel %vm66, %v45, 0
  %985 = vmatprep.subr.mxu0 0.0
  %986 = vmatpush1.xpose.msra.mxu0 %v983
  %987 = vmatprep.subr.mxu0 0.0
  %988 = vmatpush1.xpose.msra.mxu0 0.0
  %989 = vmatprep.subr.mxu0 0.0
  %990 = vmatpush1.xpose.msra.mxu0 0.0
  %991 = vmatprep.subr.mxu0 0.0
  %992 = vmatpush1.xpose.msra.mxu0 0.0
  %993 = vmatprep.subr.mxu0 0.0
  %994 = vmatpush1.xpose.msra.mxu0 0.0
  %995 = vmatprep.subr.mxu0 0.0
  %996 = vmatpush1.xpose.msra.mxu0 0.0
  %997 = vmatprep.subr.mxu0 0.0
  %998 = vmatpush1.xpose.msra.mxu0 0.0
  %999 = vmatprep.subr.mxu0 0.0
  %1000 = vmatpush1.xpose.msra.mxu0 0.0
  %1001 = vmatprep.subr.mxu0 0.0
  %1002 = vmatpush1.xpose.msra.mxu0 0.0
  %1003 = vmatprep.subr.mxu0 0.0
  %1004 = vmatpush1.xpose.msra.mxu0 0.0
  %1005 = vmatprep.subr.mxu0 0.0
  %1006 = vmatpush1.xpose.msra.mxu0 0.0
  %1007 = vmatprep.subr.mxu0 0.0
  %1008 = vmatpush1.xpose.msra.mxu0 0.0
  %1009 = vmatprep.subr.mxu0 0.0
  %1010 = vmatpush1.xpose.msra.mxu0 0.0
  %1011 = vmatprep.subr.mxu0 0.0
  %1012 = vmatpush1.xpose.msra.mxu0 0.0
  %1013 = vmatprep.subr.mxu0 0.0
  %1014 = vmatpush1.xpose.msra.mxu0 0.0
  %1015 = vmatprep.subr.mxu0 0.0
  %1016 = vmatpush1.xpose.msra.mxu0 0.0
  %1017 = vmatprep.subr.mxu0 0.0
  %1018 = vmatpush1.xpose.msra.mxu0 0.0
  %1019 = vmatprep.subr.mxu0 0.0
  %1020 = vmatpush1.xpose.msra.mxu0 0.0
  %1021 = vmatprep.subr.mxu0 0.0
  %1022 = vmatpush1.xpose.msra.mxu0 0.0
  %1023 = vmatprep.subr.mxu0 0.0
  %1024 = vmatpush1.xpose.msra.mxu0 0.0
  %1025 = vmatprep.subr.mxu0 0.0
  %1026 = vmatpush1.xpose.msra.mxu0 0.0
  %1027 = vmatprep.subr.mxu0 0.0
  %1028 = vmatpush1.xpose.msra.mxu0 0.0
  %1029 = vmatprep.subr.mxu0 0.0
  %1030 = vmatpush1.xpose.msra.mxu0 0.0
  %1031 = vmatprep.subr.mxu0 0.0
  %1032 = vmatpush1.xpose.msra.mxu0 0.0
  %1033 = vmatprep.subr.mxu0 0.0
  %1034 = vmatpush1.xpose.msra.mxu0 0.0
  %1035 = vmatprep.subr.mxu0 0.0
  %1036 = vmatpush1.xpose.msra.mxu0 0.0
  %1037 = vmatprep.subr.mxu0 0.0
  %1038 = vmatpush1.xpose.msra.mxu0 0.0
  %1039 = vmatprep.subr.mxu0 0.0
  %1040 = vmatpush1.xpose.msra.mxu0 0.0
  %1041 = vmatprep.subr.mxu0 0.0
  %1042 = vmatpush1.xpose.msra.mxu0 0.0
  %1043 = vmatprep.subr.mxu0 0.0
  %1044 = vmatpush1.xpose.msra.mxu0 0.0
  %1045 = vmatprep.subr.mxu0 0.0
  %1046 = vmatpush1.xpose.msra.mxu0 0.0
  %1047 = vmatprep.subr.mxu0 0.0
  %1048 = vmatpush1.xpose.msra.mxu0 0.0
  %1049 = vmatprep.mubr.f32.mxu0 0.0
  %1050 = vmatmul.mubr.f32.gmra.mrb[0].mxu0 %v980
  %v1051 = vpop.f32.mrb[0].mxu0
  %v1052 = vadd.f32 0.0, %v1051
  %v1053 = vpop.f32.mrb[0].mxu0
  %1054 = vdwg.mxu0
  %v1056 = vsel %vm66, %v30, 0
  %v1059 = vsel %vm66, %v46, 0
  %1061 = vmatprep.subr.mxu0 0.0
  %1062 = vmatpush1.xpose.msra.mxu0 %v1059
  %1063 = vmatprep.subr.mxu0 0.0
  %1064 = vmatpush1.xpose.msra.mxu0 0.0
  %1065 = vmatprep.subr.mxu0 0.0
  %1066 = vmatpush1.xpose.msra.mxu0 0.0
  %1067 = vmatprep.subr.mxu0 0.0
  %1068 = vmatpush1.xpose.msra.mxu0 0.0
  %1069 = vmatprep.subr.mxu0 0.0
  %1070 = vmatpush1.xpose.msra.mxu0 0.0
  %1071 = vmatprep.subr.mxu0 0.0
  %1072 = vmatpush1.xpose.msra.mxu0 0.0
  %1073 = vmatprep.subr.mxu0 0.0
  %1074 = vmatpush1.xpose.msra.mxu0 0.0
  %1075 = vmatprep.subr.mxu0 0.0
  %1076 = vmatpush1.xpose.msra.mxu0 0.0
  %1077 = vmatprep.subr.mxu0 0.0
  %1078 = vmatpush1.xpose.msra.mxu0 0.0
  %1079 = vmatprep.subr.mxu0 0.0
  %1080 = vmatpush1.xpose.msra.mxu0 0.0
  %1081 = vmatprep.subr.mxu0 0.0
  %1082 = vmatpush1.xpose.msra.mxu0 0.0
  %1083 = vmatprep.subr.mxu0 0.0
  %1084 = vmatpush1.xpose.msra.mxu0 0.0
  %1085 = vmatprep.subr.mxu0 0.0
  %1086 = vmatpush1.xpose.msra.mxu0 0.0
  %1087 = vmatprep.subr.mxu0 0.0
  %1088 = vmatpush1.xpose.msra.mxu0 0.0
  %1089 = vmatprep.subr.mxu0 0.0
  %1090 = vmatpush1.xpose.msra.mxu0 0.0
  %1091 = vmatprep.subr.mxu0 0.0
  %1092 = vmatpush1.xpose.msra.mxu0 0.0
  %1093 = vmatprep.subr.mxu0 0.0
  %1094 = vmatpush1.xpose.msra.mxu0 0.0
  %1095 = vmatprep.subr.mxu0 0.0
  %1096 = vmatpush1.xpose.msra.mxu0 0.0
  %1097 = vmatprep.subr.mxu0 0.0
  %1098 = vmatpush1.xpose.msra.mxu0 0.0
  %1099 = vmatprep.subr.mxu0 0.0
  %1100 = vmatpush1.xpose.msra.mxu0 0.0
  %1101 = vmatprep.subr.mxu0 0.0
  %1102 = vmatpush1.xpose.msra.mxu0 0.0
  %1103 = vmatprep.subr.mxu0 0.0
  %1104 = vmatpush1.xpose.msra.mxu0 0.0
  %1105 = vmatprep.subr.mxu0 0.0
  %1106 = vmatpush1.xpose.msra.mxu0 0.0
  %1107 = vmatprep.subr.mxu0 0.0
  %1108 = vmatpush1.xpose.msra.mxu0 0.0
  %1109 = vmatprep.subr.mxu0 0.0
  %1110 = vmatpush1.xpose.msra.mxu0 0.0
  %1111 = vmatprep.subr.mxu0 0.0
  %1112 = vmatpush1.xpose.msra.mxu0 0.0
  %1113 = vmatprep.subr.mxu0 0.0
  %1114 = vmatpush1.xpose.msra.mxu0 0.0
  %1115 = vmatprep.subr.mxu0 0.0
  %1116 = vmatpush1.xpose.msra.mxu0 0.0
  %1117 = vmatprep.subr.mxu0 0.0
  %1118 = vmatpush1.xpose.msra.mxu0 0.0
  %1119 = vmatprep.subr.mxu0 0.0
  %1120 = vmatpush1.xpose.msra.mxu0 0.0
  %1121 = vmatprep.subr.mxu0 0.0
  %1122 = vmatpush1.xpose.msra.mxu0 0.0
  %1123 = vmatprep.subr.mxu0 0.0
  %1124 = vmatpush1.xpose.msra.mxu0 0.0
  %1125 = vmatprep.mubr.f32.mxu0 0.0
  %1126 = vmatmul.mubr.f32.gmra.mrb[0].mxu0 %v1056
  %v1127 = vpop.f32.mrb[0].mxu0
  %v1128 = vadd.f32 0.0, %v1127
  %v1129 = vpop.f32.mrb[0].mxu0
  %1130 = vdwg.mxu0
  %v1132 = vsel %vm66, %v31, 0
  %v1135 = vsel %vm66, %v47, 0
  %1137 = vmatprep.subr.mxu0 0.0
  %1138 = vmatpush1.xpose.msra.mxu0 %v1135
  %1139 = vmatprep.subr.mxu0 0.0
  %1140 = vmatpush1.xpose.msra.mxu0 0.0
  %1141 = vmatprep.subr.mxu0 0.0
  %1142 = vmatpush1.xpose.msra.mxu0 0.0
  %1143 = vmatprep.subr.mxu0 0.0
  %1144 = vmatpush1.xpose.msra.mxu0 0.0
  %1145 = vmatprep.subr.mxu0 0.0
  %1146 = vmatpush1.xpose.msra.mxu0 0.0
  %1147 = vmatprep.subr.mxu0 0.0
  %1148 = vmatpush1.xpose.msra.mxu0 0.0
  %1149 = vmatprep.subr.mxu0 0.0
  %1150 = vmatpush1.xpose.msra.mxu0 0.0
  %1151 = vmatprep.subr.mxu0 0.0
  %1152 = vmatpush1.xpose.msra.mxu0 0.0
  %1153 = vmatprep.subr.mxu0 0.0
  %1154 = vmatpush1.xpose.msra.mxu0 0.0
  %1155 = vmatprep.subr.mxu0 0.0
  %1156 = vmatpush1.xpose.msra.mxu0 0.0
  %1157 = vmatprep.subr.mxu0 0.0
  %1158 = vmatpush1.xpose.msra.mxu0 0.0
  %1159 = vmatprep.subr.mxu0 0.0
  %1160 = vmatpush1.xpose.msra.mxu0 0.0
  %1161 = vmatprep.subr.mxu0 0.0
  %1162 = vmatpush1.xpose.msra.mxu0 0.0
  %1163 = vmatprep.subr.mxu0 0.0
  %1164 = vmatpush1.xpose.msra.mxu0 0.0
  %1165 = vmatprep.subr.mxu0 0.0
  %1166 = vmatpush1.xpose.msra.mxu0 0.0
  %1167 = vmatprep.subr.mxu0 0.0
  %1168 = vmatpush1.xpose.msra.mxu0 0.0
  %1169 = vmatprep.subr.mxu0 0.0
  %1170 = vmatpush1.xpose.msra.mxu0 0.0
  %1171 = vmatprep.subr.mxu0 0.0
  %1172 = vmatpush1.xpose.msra.mxu0 0.0
  %1173 = vmatprep.subr.mxu0 0.0
  %1174 = vmatpush1.xpose.msra.mxu0 0.0
  %1175 = vmatprep.subr.mxu0 0.0
  %1176 = vmatpush1.xpose.msra.mxu0 0.0
  %1177 = vmatprep.subr.mxu0 0.0
  %1178 = vmatpush1.xpose.msra.mxu0 0.0
  %1179 = vmatprep.subr.mxu0 0.0
  %1180 = vmatpush1.xpose.msra.mxu0 0.0
  %1181 = vmatprep.subr.mxu0 0.0
  %1182 = vmatpush1.xpose.msra.mxu0 0.0
  %1183 = vmatprep.subr.mxu0 0.0
  %1184 = vmatpush1.xpose.msra.mxu0 0.0
  %1185 = vmatprep.subr.mxu0 0.0
  %1186 = vmatpush1.xpose.msra.mxu0 0.0
  %1187 = vmatprep.subr.mxu0 0.0
  %1188 = vmatpush1.xpose.msra.mxu0 0.0
  %1189 = vmatprep.subr.mxu0 0.0
  %1190 = vmatpush1.xpose.msra.mxu0 0.0
  %1191 = vmatprep.subr.mxu0 0.0
  %1192 = vmatpush1.xpose.msra.mxu0 0.0
  %1193 = vmatprep.subr.mxu0 0.0
  %1194 = vmatpush1.xpose.msra.mxu0 0.0
  %1195 = vmatprep.subr.mxu0 0.0
  %1196 = vmatpush1.xpose.msra.mxu0 0.0
  %1197 = vmatprep.subr.mxu0 0.0
  %1198 = vmatpush1.xpose.msra.mxu0 0.0
  %1199 = vmatprep.subr.mxu0 0.0
  %1200 = vmatpush1.xpose.msra.mxu0 0.0
  %1201 = vmatprep.mubr.f32.mxu0 0.0
  %1202 = vmatmul.mubr.f32.gmra.mrb[0].mxu0 %v1132
  %v1203 = vpop.f32.mrb[0].mxu0
  %v1204 = vadd.f32 0.0, %v1203
  %v1205 = vpop.f32.mrb[0].mxu0
  %1206 = vdwg.mxu0
  %v1208 = vsel %vm66, %v32, 0
  %v1211 = vsel %vm66, %v48, 0
  %1213 = vmatprep.subr.mxu0 0.0
  %1214 = vmatpush1.xpose.msra.mxu0 %v1211
  %1215 = vmatprep.subr.mxu0 0.0
  %1216 = vmatpush1.xpose.msra.mxu0 0.0
  %1217 = vmatprep.subr.mxu0 0.0
  %1218 = vmatpush1.xpose.msra.mxu0 0.0
  %1219 = vmatprep.subr.mxu0 0.0
  %1220 = vmatpush1.xpose.msra.mxu0 0.0
  %1221 = vmatprep.subr.mxu0 0.0
  %1222 = vmatpush1.xpose.msra.mxu0 0.0
  %1223 = vmatprep.subr.mxu0 0.0
  %1224 = vmatpush1.xpose.msra.mxu0 0.0
  %1225 = vmatprep.subr.mxu0 0.0
  %1226 = vmatpush1.xpose.msra.mxu0 0.0
  %1227 = vmatprep.subr.mxu0 0.0
  %1228 = vmatpush1.xpose.msra.mxu0 0.0
  %1229 = vmatprep.subr.mxu0 0.0
  %1230 = vmatpush1.xpose.msra.mxu0 0.0
  %1231 = vmatprep.subr.mxu0 0.0
  %1232 = vmatpush1.xpose.msra.mxu0 0.0
  %1233 = vmatprep.subr.mxu0 0.0
  %1234 = vmatpush1.xpose.msra.mxu0 0.0
  %1235 = vmatprep.subr.mxu0 0.0
  %1236 = vmatpush1.xpose.msra.mxu0 0.0
  %1237 = vmatprep.subr.mxu0 0.0
  %1238 = vmatpush1.xpose.msra.mxu0 0.0
  %1239 = vmatprep.subr.mxu0 0.0
  %1240 = vmatpush1.xpose.msra.mxu0 0.0
  %1241 = vmatprep.subr.mxu0 0.0
  %1242 = vmatpush1.xpose.msra.mxu0 0.0
  %1243 = vmatprep.subr.mxu0 0.0
  %1244 = vmatpush1.xpose.msra.mxu0 0.0
  %1245 = vmatprep.subr.mxu0 0.0
  %1246 = vmatpush1.xpose.msra.mxu0 0.0
  %1247 = vmatprep.subr.mxu0 0.0
  %1248 = vmatpush1.xpose.msra.mxu0 0.0
  %1249 = vmatprep.subr.mxu0 0.0
  %1250 = vmatpush1.xpose.msra.mxu0 0.0
  %1251 = vmatprep.subr.mxu0 0.0
  %1252 = vmatpush1.xpose.msra.mxu0 0.0
  %1253 = vmatprep.subr.mxu0 0.0
  %1254 = vmatpush1.xpose.msra.mxu0 0.0
  %1255 = vmatprep.subr.mxu0 0.0
  %1256 = vmatpush1.xpose.msra.mxu0 0.0
  %1257 = vmatprep.subr.mxu0 0.0
  %1258 = vmatpush1.xpose.msra.mxu0 0.0
  %1259 = vmatprep.subr.mxu0 0.0
  %1260 = vmatpush1.xpose.msra.mxu0 0.0
  %1261 = vmatprep.subr.mxu0 0.0
  %1262 = vmatpush1.xpose.msra.mxu0 0.0
  %1263 = vmatprep.subr.mxu0 0.0
  %1264 = vmatpush1.xpose.msra.mxu0 0.0
  %1265 = vmatprep.subr.mxu0 0.0
  %1266 = vmatpush1.xpose.msra.mxu0 0.0
  %1267 = vmatprep.subr.mxu0 0.0
  %1268 = vmatpush1.xpose.msra.mxu0 0.0
  %1269 = vmatprep.subr.mxu0 0.0
  %1270 = vmatpush1.xpose.msra.mxu0 0.0
  %1271 = vmatprep.subr.mxu0 0.0
  %1272 = vmatpush1.xpose.msra.mxu0 0.0
  %1273 = vmatprep.subr.mxu0 0.0
  %1274 = vmatpush1.xpose.msra.mxu0 0.0
  %1275 = vmatprep.subr.mxu0 0.0
  %1276 = vmatpush1.xpose.msra.mxu0 0.0
  %1277 = vmatprep.mubr.f32.mxu0 0.0
  %1278 = vmatmul.mubr.f32.gmra.mrb[0].mxu0 %v1208
  %v1279 = vpop.f32.mrb[0].mxu0
  %v1280 = vadd.f32 0.0, %v1279
  %v1281 = vpop.f32.mrb[0].mxu0
  %1282 = vdwg.mxu0
  %v1283 = vmul.f32 %v140, 0.17677669
  %v1284 = vmul.f32 %v216, 0.17677669
  %v1285 = vmul.f32 %v292, 0.17677669
  %v1286 = vmul.f32 %v368, 0.17677669
  %v1287 = vmul.f32 %v444, 0.17677669
  %v1288 = vmul.f32 %v520, 0.17677669
  %v1289 = vmul.f32 %v596, 0.17677669
  %v1290 = vmul.f32 %v672, 0.17677669
  %v1291 = vmul.f32 %v748, 0.17677669
  %v1292 = vmul.f32 %v824, 0.17677669
  %v1293 = vmul.f32 %v900, 0.17677669
  %v1294 = vmul.f32 %v976, 0.17677669
  %v1295 = vmul.f32 %v1052, 0.17677669
  %v1296 = vmul.f32 %v1128, 0.17677669
  %v1297 = vmul.f32 %v1204, 0.17677669
  %v1298 = vmul.f32 %v1280, 0.17677669
  %vm1299 = vcmp.gt.f32.partialorder %v65, 0.5
  %v1300 = vsel %vm1299, 1, 0
  %vm1301 = vcmp.eq.s32.totalorder %v1300, 1
  %v1302 = vsel %vm1301, %v1283, -1e+09
  %v1303 = vsel %vm1301, %v1284, -1e+09
  %v1304 = vsel %vm1301, %v1285, -1e+09
  %v1305 = vsel %vm1301, %v1286, -1e+09
  %v1306 = vsel %vm1301, %v1287, -1e+09
  %v1307 = vsel %vm1301, %v1288, -1e+09
  %v1308 = vsel %vm1301, %v1289, -1e+09
  %v1309 = vsel %vm1301, %v1290, -1e+09
  %v1310 = vsel %vm1301, %v1291, -1e+09
  %v1311 = vsel %vm1301, %v1292, -1e+09
  %v1312 = vsel %vm1301, %v1293, -1e+09
  %v1313 = vsel %vm1301, %v1294, -1e+09
  %v1314 = vsel %vm1301, %v1295, -1e+09
  %v1315 = vsel %vm1301, %v1296, -1e+09
  %v1316 = vsel %vm1301, %v1297, -1e+09
  %v1317 = vsel %vm1301, %v1298, -1e+09
  %vm1318 = vcmask 18432
  %v1319 = vsel %vm1318, %v1302, -inf
  %1320 = vmax.xlane.f32.xlu0 %v1319
  %v1321 = vpop.xlane.xlu0 %1320
  %v1322 = vsel %vm1318, %v1303, -inf
  %1323 = vmax.xlane.f32.xlu0 %v1322
  %v1324 = vpop.xlane.xlu0 %1323
  %v1325 = vsel %vm1318, %v1304, -inf
  %1326 = vmax.xlane.f32.xlu0 %v1325
  %v1327 = vpop.xlane.xlu0 %1326
  %v1328 = vsel %vm1318, %v1305, -inf
  %1329 = vmax.xlane.f32.xlu0 %v1328
  %v1330 = vpop.xlane.xlu0 %1329
  %v1331 = vsel %vm1318, %v1306, -inf
  %1332 = vmax.xlane.f32.xlu0 %v1331
  %v1333 = vpop.xlane.xlu0 %1332
  %v1334 = vsel %vm1318, %v1307, -inf
  %1335 = vmax.xlane.f32.xlu0 %v1334
  %v1336 = vpop.xlane.xlu0 %1335
  %v1337 = vsel %vm1318, %v1308, -inf
  %1338 = vmax.xlane.f32.xlu0 %v1337
  %v1339 = vpop.xlane.xlu0 %1338
  %v1340 = vsel %vm1318, %v1309, -inf
  %1341 = vmax.xlane.f32.xlu0 %v1340
  %v1342 = vpop.xlane.xlu0 %1341
  %v1343 = vsel %vm1318, %v1310, -inf
  %1344 = vmax.xlane.f32.xlu0 %v1343
  %v1345 = vpop.xlane.xlu0 %1344
  %v1346 = vsel %vm1318, %v1311, -inf
  %1347 = vmax.xlane.f32.xlu0 %v1346
  %v1348 = vpop.xlane.xlu0 %1347
  %v1349 = vsel %vm1318, %v1312, -inf
  %1350 = vmax.xlane.f32.xlu0 %v1349
  %v1351 = vpop.xlane.xlu0 %1350
  %v1352 = vsel %vm1318, %v1313, -inf
  %1353 = vmax.xlane.f32.xlu0 %v1352
  %v1354 = vpop.xlane.xlu0 %1353
  %v1355 = vsel %vm1318, %v1314, -inf
  %1356 = vmax.xlane.f32.xlu0 %v1355
  %v1357 = vpop.xlane.xlu0 %1356
  %v1358 = vsel %vm1318, %v1315, -inf
  %1359 = vmax.xlane.f32.xlu0 %v1358
  %v1360 = vpop.xlane.xlu0 %1359
  %v1361 = vsel %vm1318, %v1316, -inf
  %1362 = vmax.xlane.f32.xlu0 %v1361
  %v1363 = vpop.xlane.xlu0 %1362
  %v1364 = vsel %vm1318, %v1317, -inf
  %1365 = vmax.xlane.f32.xlu0 %v1364
  %v1366 = vpop.xlane.xlu0 %1365
  %v1367 = vsub.f32 %v1302, %v1321
  %v1368 = vsub.f32 %v1303, %v1324
  %v1369 = vsub.f32 %v1304, %v1327
  %v1370 = vsub.f32 %v1305, %v1330
  %v1371 = vsub.f32 %v1306, %v1333
  %v1372 = vsub.f32 %v1307, %v1336
  %v1373 = vsub.f32 %v1308, %v1339
  %v1374 = vsub.f32 %v1309, %v1342
  %v1375 = vsub.f32 %v1310, %v1345
  %v1376 = vsub.f32 %v1311, %v1348
  %v1377 = vsub.f32 %v1312, %v1351
  %v1378 = vsub.f32 %v1313, %v1354
  %v1379 = vsub.f32 %v1314, %v1357
  %v1380 = vsub.f32 %v1315, %v1360
  %v1381 = vsub.f32 %v1316, %v1363
  %v1382 = vsub.f32 %v1317, %v1366
  %v1383 = vmul.f32 %v1367, 1.442695
  %v1384 = vpow.pop %v1383
  %v1385 = vmul.f32 %v1368, 1.442695
  %v1386 = vpow.pop %v1385
  %v1387 = vmul.f32 %v1369, 1.442695
  %v1388 = vpow.pop %v1387
  %v1389 = vmul.f32 %v1370, 1.442695
  %v1390 = vpow.pop %v1389
  %v1391 = vmul.f32 %v1371, 1.442695
  %v1392 = vpow.pop %v1391
  %v1393 = vmul.f32 %v1372, 1.442695
  %v1394 = vpow.pop %v1393
  %v1395 = vmul.f32 %v1373, 1.442695
  %v1396 = vpow.pop %v1395
  %v1397 = vmul.f32 %v1374, 1.442695
  %v1398 = vpow.pop %v1397
  %v1399 = vmul.f32 %v1375, 1.442695
  %v1400 = vpow.pop %v1399
  %v1401 = vmul.f32 %v1376, 1.442695
  %v1402 = vpow.pop %v1401
  %v1403 = vmul.f32 %v1377, 1.442695
  %v1404 = vpow.pop %v1403
  %v1405 = vmul.f32 %v1378, 1.442695
  %v1406 = vpow.pop %v1405
  %v1407 = vmul.f32 %v1379, 1.442695
  %v1408 = vpow.pop %v1407
  %v1409 = vmul.f32 %v1380, 1.442695
  %v1410 = vpow.pop %v1409
  %v1411 = vmul.f32 %v1381, 1.442695
  %v1412 = vpow.pop %v1411
  %v1413 = vmul.f32 %v1382, 1.442695
  %v1414 = vpow.pop %v1413
  %v1415 = vsel %vm1318, %v1384, 0.0
  %1416 = vadd.xlane.f32.xlu0 %v1415
  %v1417 = vpop.xlane.xlu0 %1416
  %v1418 = vsel %vm1318, %v1386, 0.0
  %1419 = vadd.xlane.f32.xlu0 %v1418
  %v1420 = vpop.xlane.xlu0 %1419
  %v1421 = vsel %vm1318, %v1388, 0.0
  %1422 = vadd.xlane.f32.xlu0 %v1421
  %v1423 = vpop.xlane.xlu0 %1422
  %v1424 = vsel %vm1318, %v1390, 0.0
  %1425 = vadd.xlane.f32.xlu0 %v1424
  %v1426 = vpop.xlane.xlu0 %1425
  %v1427 = vsel %vm1318, %v1392, 0.0
  %1428 = vadd.xlane.f32.xlu0 %v1427
  %v1429 = vpop.xlane.xlu0 %1428
  %v1430 = vsel %vm1318, %v1394, 0.0
  %1431 = vadd.xlane.f32.xlu0 %v1430
  %v1432 = vpop.xlane.xlu0 %1431
  %v1433 = vsel %vm1318, %v1396, 0.0
  %1434 = vadd.xlane.f32.xlu0 %v1433
  %v1435 = vpop.xlane.xlu0 %1434
  %v1436 = vsel %vm1318, %v1398, 0.0
  %1437 = vadd.xlane.f32.xlu0 %v1436
  %v1438 = vpop.xlane.xlu0 %1437
  %v1439 = vsel %vm1318, %v1400, 0.0
  %1440 = vadd.xlane.f32.xlu0 %v1439
  %v1441 = vpop.xlane.xlu0 %1440
  %v1442 = vsel %vm1318, %v1402, 0.0
  %1443 = vadd.xlane.f32.xlu0 %v1442
  %v1444 = vpop.xlane.xlu0 %1443
  %v1445 = vsel %vm1318, %v1404, 0.0
  %1446 = vadd.xlane.f32.xlu0 %v1445
  %v1447 = vpop.xlane.xlu0 %1446
  %v1448 = vsel %vm1318, %v1406, 0.0
  %1449 = vadd.xlane.f32.xlu0 %v1448
  %v1450 = vpop.xlane.xlu0 %1449
  %v1451 = vsel %vm1318, %v1408, 0.0
  %1452 = vadd.xlane.f32.xlu0 %v1451
  %v1453 = vpop.xlane.xlu0 %1452
  %v1454 = vsel %vm1318, %v1410, 0.0
  %1455 = vadd.xlane.f32.xlu0 %v1454
  %v1456 = vpop.xlane.xlu0 %1455
  %v1457 = vsel %vm1318, %v1412, 0.0
  %1458 = vadd.xlane.f32.xlu0 %v1457
  %v1459 = vpop.xlane.xlu0 %1458
  %v1460 = vsel %vm1318, %v1414, 0.0
  %1461 = vadd.xlane.f32.xlu0 %v1460
  %v1462 = vpop.xlane.xlu0 %1461
  %v1463 = vrcp.pop %v1417
  %v1464 = vmul.f32 %v1384, %v1463
  %v1465 = vrcp.pop %v1420
  %v1466 = vmul.f32 %v1386, %v1465
  %v1467 = vrcp.pop %v1423
  %v1468 = vmul.f32 %v1388, %v1467
  %v1469 = vrcp.pop %v1426
  %v1470 = vmul.f32 %v1390, %v1469
  %v1471 = vrcp.pop %v1429
  %v1472 = vmul.f32 %v1392, %v1471
  %v1473 = vrcp.pop %v1432
  %v1474 = vmul.f32 %v1394, %v1473
  %v1475 = vrcp.pop %v1435
  %v1476 = vmul.f32 %v1396, %v1475
  %v1477 = vrcp.pop %v1438
  %v1478 = vmul.f32 %v1398, %v1477
  %v1479 = vrcp.pop %v1441
  %v1480 = vmul.f32 %v1400, %v1479
  %v1481 = vrcp.pop %v1444
  %v1482 = vmul.f32 %v1402, %v1481
  %v1483 = vrcp.pop %v1447
  %v1484 = vmul.f32 %v1404, %v1483
  %v1485 = vrcp.pop %v1450
  %v1486 = vmul.f32 %v1406, %v1485
  %v1487 = vrcp.pop %v1453
  %v1488 = vmul.f32 %v1408, %v1487
  %v1489 = vrcp.pop %v1456
  %v1490 = vmul.f32 %v1410, %v1489
  %v1491 = vrcp.pop %v1459
  %v1492 = vmul.f32 %v1412, %v1491
  %v1493 = vrcp.pop %v1462
  %v1494 = vmul.f32 %v1414, %v1493
  %vm1495 = vcmask 23552
  %v1497 = vsel %vm1495, %v1464, 0
  %vm1499 = vcmask 1042432
  %v1501 = vsel %vm1499, %v49, 0
  %1503 = vmatprep.subr.mxu0 0.0
  %1504 = vmatpush1.msra.mxu0 %v1501
  %1505 = vmatprep.subr.mxu0 0.0
  %1506 = vmatpush1.msra.mxu0 0.0
  %1507 = vmatprep.subr.mxu0 0.0
  %1508 = vmatpush1.msra.mxu0 0.0
  %1509 = vmatprep.subr.mxu0 0.0
  %1510 = vmatpush1.msra.mxu0 0.0
  %1511 = vmatprep.subr.mxu0 0.0
  %1512 = vmatpush1.msra.mxu0 0.0
  %1513 = vmatprep.subr.mxu0 0.0
  %1514 = vmatpush1.msra.mxu0 0.0
  %1515 = vmatprep.subr.mxu0 0.0
  %1516 = vmatpush1.msra.mxu0 0.0
  %1517 = vmatprep.subr.mxu0 0.0
  %1518 = vmatpush1.msra.mxu0 0.0
  %1519 = vmatprep.subr.mxu0 0.0
  %1520 = vmatpush1.msra.mxu0 0.0
  %1521 = vmatprep.subr.mxu0 0.0
  %1522 = vmatpush1.msra.mxu0 0.0
  %1523 = vmatprep.subr.mxu0 0.0
  %1524 = vmatpush1.msra.mxu0 0.0
  %1525 = vmatprep.subr.mxu0 0.0
  %1526 = vmatpush1.msra.mxu0 0.0
  %1527 = vmatprep.subr.mxu0 0.0
  %1528 = vmatpush1.msra.mxu0 0.0
  %1529 = vmatprep.subr.mxu0 0.0
  %1530 = vmatpush1.msra.mxu0 0.0
  %1531 = vmatprep.subr.mxu0 0.0
  %1532 = vmatpush1.msra.mxu0 0.0
  %1533 = vmatprep.subr.mxu0 0.0
  %1534 = vmatpush1.msra.mxu0 0.0
  %1535 = vmatprep.subr.mxu0 0.0
  %1536 = vmatpush1.msra.mxu0 0.0
  %1537 = vmatprep.subr.mxu0 0.0
  %1538 = vmatpush1.msra.mxu0 0.0
  %1539 = vmatprep.subr.mxu0 0.0
  %1540 = vmatpush1.msra.mxu0 0.0
  %1541 = vmatprep.subr.mxu0 0.0
  %1542 = vmatpush1.msra.mxu0 0.0
  %1543 = vmatprep.subr.mxu0 0.0
  %1544 = vmatpush1.msra.mxu0 0.0
  %1545 = vmatprep.subr.mxu0 0.0
  %1546 = vmatpush1.msra.mxu0 0.0
  %1547 = vmatprep.subr.mxu0 0.0
  %1548 = vmatpush1.msra.mxu0 0.0
  %1549 = vmatprep.subr.mxu0 0.0
  %1550 = vmatpush1.msra.mxu0 0.0
  %1551 = vmatprep.subr.mxu0 0.0
  %1552 = vmatpush1.msra.mxu0 0.0
  %1553 = vmatprep.subr.mxu0 0.0
  %1554 = vmatpush1.msra.mxu0 0.0
  %1555 = vmatprep.subr.mxu0 0.0
  %1556 = vmatpush1.msra.mxu0 0.0
  %1557 = vmatprep.subr.mxu0 0.0
  %1558 = vmatpush1.msra.mxu0 0.0
  %1559 = vmatprep.subr.mxu0 0.0
  %1560 = vmatpush1.msra.mxu0 0.0
  %1561 = vmatprep.subr.mxu0 0.0
  %1562 = vmatpush1.msra.mxu0 0.0
  %1563 = vmatprep.subr.mxu0 0.0
  %1564 = vmatpush1.msra.mxu0 0.0
  %1565 = vmatprep.subr.mxu0 0.0
  %1566 = vmatpush1.msra.mxu0 0.0
  %1567 = vmatprep.mubr.f32.mxu0 0.0
  %1568 = vmatmul.mubr.f32.gmra.mrb[0].mxu0 %v1497
  %v1569 = vpop.f32.mrb[0].mxu0
  %v1570 = vadd.f32 0.0, %v1569
  %v1571 = vpop.f32.mrb[0].mxu0
  %1572 = vdwg.mxu0
  %v1574 = vsel %vm1495, %v1466, 0
  %v1577 = vsel %vm1499, %v50, 0
  %1579 = vmatprep.subr.mxu0 0.0
  %1580 = vmatpush1.msra.mxu0 %v1577
  %1581 = vmatprep.subr.mxu0 0.0
  %1582 = vmatpush1.msra.mxu0 0.0
  %1583 = vmatprep.subr.mxu0 0.0
  %1584 = vmatpush1.msra.mxu0 0.0
  %1585 = vmatprep.subr.mxu0 0.0
  %1586 = vmatpush1.msra.mxu0 0.0
  %1587 = vmatprep.subr.mxu0 0.0
  %1588 = vmatpush1.msra.mxu0 0.0
  %1589 = vmatprep.subr.mxu0 0.0
  %1590 = vmatpush1.msra.mxu0 0.0
  %1591 = vmatprep.subr.mxu0 0.0
  %1592 = vmatpush1.msra.mxu0 0.0
  %1593 = vmatprep.subr.mxu0 0.0
  %1594 = vmatpush1.msra.mxu0 0.0
  %1595 = vmatprep.subr.mxu0 0.0
  %1596 = vmatpush1.msra.mxu0 0.0
  %1597 = vmatprep.subr.mxu0 0.0
  %1598 = vmatpush1.msra.mxu0 0.0
  %1599 = vmatprep.subr.mxu0 0.0
  %1600 = vmatpush1.msra.mxu0 0.0
  %1601 = vmatprep.subr.mxu0 0.0
  %1602 = vmatpush1.msra.mxu0 0.0
  %1603 = vmatprep.subr.mxu0 0.0
  %1604 = vmatpush1.msra.mxu0 0.0
  %1605 = vmatprep.subr.mxu0 0.0
  %1606 = vmatpush1.msra.mxu0 0.0
  %1607 = vmatprep.subr.mxu0 0.0
  %1608 = vmatpush1.msra.mxu0 0.0
  %1609 = vmatprep.subr.mxu0 0.0
  %1610 = vmatpush1.msra.mxu0 0.0
  %1611 = vmatprep.subr.mxu0 0.0
  %1612 = vmatpush1.msra.mxu0 0.0
  %1613 = vmatprep.subr.mxu0 0.0
  %1614 = vmatpush1.msra.mxu0 0.0
  %1615 = vmatprep.subr.mxu0 0.0
  %1616 = vmatpush1.msra.mxu0 0.0
  %1617 = vmatprep.subr.mxu0 0.0
  %1618 = vmatpush1.msra.mxu0 0.0
  %1619 = vmatprep.subr.mxu0 0.0
  %1620 = vmatpush1.msra.mxu0 0.0
  %1621 = vmatprep.subr.mxu0 0.0
  %1622 = vmatpush1.msra.mxu0 0.0
  %1623 = vmatprep.subr.mxu0 0.0
  %1624 = vmatpush1.msra.mxu0 0.0
  %1625 = vmatprep.subr.mxu0 0.0
  %1626 = vmatpush1.msra.mxu0 0.0
  %1627 = vmatprep.subr.mxu0 0.0
  %1628 = vmatpush1.msra.mxu0 0.0
  %1629 = vmatprep.subr.mxu0 0.0
  %1630 = vmatpush1.msra.mxu0 0.0
  %1631 = vmatprep.subr.mxu0 0.0
  %1632 = vmatpush1.msra.mxu0 0.0
  %1633 = vmatprep.subr.mxu0 0.0
  %1634 = vmatpush1.msra.mxu0 0.0
  %1635 = vmatprep.subr.mxu0 0.0
  %1636 = vmatpush1.msra.mxu0 0.0
  %1637 = vmatprep.subr.mxu0 0.0
  %1638 = vmatpush1.msra.mxu0 0.0
  %1639 = vmatprep.subr.mxu0 0.0
  %1640 = vmatpush1.msra.mxu0 0.0
  %1641 = vmatprep.subr.mxu0 0.0
  %1642 = vmatpush1.msra.mxu0 0.0
  %1643 = vmatprep.mubr.f32.mxu0 0.0
  %1644 = vmatmul.mubr.f32.gmra.mrb[0].mxu0 %v1574
  %v1645 = vpop.f32.mrb[0].mxu0
  %v1646 = vadd.f32 0.0, %v1645
  %v1647 = vpop.f32.mrb[0].mxu0
  %1648 = vdwg.mxu0
  %v1650 = vsel %vm1495, %v1468, 0
  %v1653 = vsel %vm1499, %v51, 0
  %1655 = vmatprep.subr.mxu0 0.0
  %1656 = vmatpush1.msra.mxu0 %v1653
  %1657 = vmatprep.subr.mxu0 0.0
  %1658 = vmatpush1.msra.mxu0 0.0
  %1659 = vmatprep.subr.mxu0 0.0
  %1660 = vmatpush1.msra.mxu0 0.0
  %1661 = vmatprep.subr.mxu0 0.0
  %1662 = vmatpush1.msra.mxu0 0.0
  %1663 = vmatprep.subr.mxu0 0.0
  %1664 = vmatpush1.msra.mxu0 0.0
  %1665 = vmatprep.subr.mxu0 0.0
  %1666 = vmatpush1.msra.mxu0 0.0
  %1667 = vmatprep.subr.mxu0 0.0
  %1668 = vmatpush1.msra.mxu0 0.0
  %1669 = vmatprep.subr.mxu0 0.0
  %1670 = vmatpush1.msra.mxu0 0.0
  %1671 = vmatprep.subr.mxu0 0.0
  %1672 = vmatpush1.msra.mxu0 0.0
  %1673 = vmatprep.subr.mxu0 0.0
  %1674 = vmatpush1.msra.mxu0 0.0
  %1675 = vmatprep.subr.mxu0 0.0
  %1676 = vmatpush1.msra.mxu0 0.0
  %1677 = vmatprep.subr.mxu0 0.0
  %1678 = vmatpush1.msra.mxu0 0.0
  %1679 = vmatprep.subr.mxu0 0.0
  %1680 = vmatpush1.msra.mxu0 0.0
  %1681 = vmatprep.subr.mxu0 0.0
  %1682 = vmatpush1.msra.mxu0 0.0
  %1683 = vmatprep.subr.mxu0 0.0
  %1684 = vmatpush1.msra.mxu0 0.0
  %1685 = vmatprep.subr.mxu0 0.0
  %1686 = vmatpush1.msra.mxu0 0.0
  %1687 = vmatprep.subr.mxu0 0.0
  %1688 = vmatpush1.msra.mxu0 0.0
  %1689 = vmatprep.subr.mxu0 0.0
  %1690 = vmatpush1.msra.mxu0 0.0
  %1691 = vmatprep.subr.mxu0 0.0
  %1692 = vmatpush1.msra.mxu0 0.0
  %1693 = vmatprep.subr.mxu0 0.0
  %1694 = vmatpush1.msra.mxu0 0.0
  %1695 = vmatprep.subr.mxu0 0.0
  %1696 = vmatpush1.msra.mxu0 0.0
  %1697 = vmatprep.subr.mxu0 0.0
  %1698 = vmatpush1.msra.mxu0 0.0
  %1699 = vmatprep.subr.mxu0 0.0
  %1700 = vmatpush1.msra.mxu0 0.0
  %1701 = vmatprep.subr.mxu0 0.0
  %1702 = vmatpush1.msra.mxu0 0.0
  %1703 = vmatprep.subr.mxu0 0.0
  %1704 = vmatpush1.msra.mxu0 0.0
  %1705 = vmatprep.subr.mxu0 0.0
  %1706 = vmatpush1.msra.mxu0 0.0
  %1707 = vmatprep.subr.mxu0 0.0
  %1708 = vmatpush1.msra.mxu0 0.0
  %1709 = vmatprep.subr.mxu0 0.0
  %1710 = vmatpush1.msra.mxu0 0.0
  %1711 = vmatprep.subr.mxu0 0.0
  %1712 = vmatpush1.msra.mxu0 0.0
  %1713 = vmatprep.subr.mxu0 0.0
  %1714 = vmatpush1.msra.mxu0 0.0
  %1715 = vmatprep.subr.mxu0 0.0
  %1716 = vmatpush1.msra.mxu0 0.0
  %1717 = vmatprep.subr.mxu0 0.0
  %1718 = vmatpush1.msra.mxu0 0.0
  %1719 = vmatprep.mubr.f32.mxu0 0.0
  %1720 = vmatmul.mubr.f32.gmra.mrb[0].mxu0 %v1650
  %v1721 = vpop.f32.mrb[0].mxu0
  %v1722 = vadd.f32 0.0, %v1721
  %v1723 = vpop.f32.mrb[0].mxu0
  %1724 = vdwg.mxu0
  %v1726 = vsel %vm1495, %v1470, 0
  %v1729 = vsel %vm1499, %v52, 0
  %1731 = vmatprep.subr.mxu0 0.0
  %1732 = vmatpush1.msra.mxu0 %v1729
  %1733 = vmatprep.subr.mxu0 0.0
  %1734 = vmatpush1.msra.mxu0 0.0
  %1735 = vmatprep.subr.mxu0 0.0
  %1736 = vmatpush1.msra.mxu0 0.0
  %1737 = vmatprep.subr.mxu0 0.0
  %1738 = vmatpush1.msra.mxu0 0.0
  %1739 = vmatprep.subr.mxu0 0.0
  %1740 = vmatpush1.msra.mxu0 0.0
  %1741 = vmatprep.subr.mxu0 0.0
  %1742 = vmatpush1.msra.mxu0 0.0
  %1743 = vmatprep.subr.mxu0 0.0
  %1744 = vmatpush1.msra.mxu0 0.0
  %1745 = vmatprep.subr.mxu0 0.0
  %1746 = vmatpush1.msra.mxu0 0.0
  %1747 = vmatprep.subr.mxu0 0.0
  %1748 = vmatpush1.msra.mxu0 0.0
  %1749 = vmatprep.subr.mxu0 0.0
  %1750 = vmatpush1.msra.mxu0 0.0
  %1751 = vmatprep.subr.mxu0 0.0
  %1752 = vmatpush1.msra.mxu0 0.0
  %1753 = vmatprep.subr.mxu0 0.0
  %1754 = vmatpush1.msra.mxu0 0.0
  %1755 = vmatprep.subr.mxu0 0.0
  %1756 = vmatpush1.msra.mxu0 0.0
  %1757 = vmatprep.subr.mxu0 0.0
  %1758 = vmatpush1.msra.mxu0 0.0
  %1759 = vmatprep.subr.mxu0 0.0
  %1760 = vmatpush1.msra.mxu0 0.0
  %1761 = vmatprep.subr.mxu0 0.0
  %1762 = vmatpush1.msra.mxu0 0.0
  %1763 = vmatprep.subr.mxu0 0.0
  %1764 = vmatpush1.msra.mxu0 0.0
  %1765 = vmatprep.subr.mxu0 0.0
  %1766 = vmatpush1.msra.mxu0 0.0
  %1767 = vmatprep.subr.mxu0 0.0
  %1768 = vmatpush1.msra.mxu0 0.0
  %1769 = vmatprep.subr.mxu0 0.0
  %1770 = vmatpush1.msra.mxu0 0.0
  %1771 = vmatprep.subr.mxu0 0.0
  %1772 = vmatpush1.msra.mxu0 0.0
  %1773 = vmatprep.subr.mxu0 0.0
  %1774 = vmatpush1.msra.mxu0 0.0
  %1775 = vmatprep.subr.mxu0 0.0
  %1776 = vmatpush1.msra.mxu0 0.0
  %1777 = vmatprep.subr.mxu0 0.0
  %1778 = vmatpush1.msra.mxu0 0.0
  %1779 = vmatprep.subr.mxu0 0.0
  %1780 = vmatpush1.msra.mxu0 0.0
  %1781 = vmatprep.subr.mxu0 0.0
  %1782 = vmatpush1.msra.mxu0 0.0
  %1783 = vmatprep.subr.mxu0 0.0
  %1784 = vmatpush1.msra.mxu0 0.0
  %1785 = vmatprep.subr.mxu0 0.0
  %1786 = vmatpush1.msra.mxu0 0.0
  %1787 = vmatprep.subr.mxu0 0.0
  %1788 = vmatpush1.msra.mxu0 0.0
  %1789 = vmatprep.subr.mxu0 0.0
  %1790 = vmatpush1.msra.mxu0 0.0
  %1791 = vmatprep.subr.mxu0 0.0
  %1792 = vmatpush1.msra.mxu0 0.0
  %1793 = vmatprep.subr.mxu0 0.0
  %1794 = vmatpush1.msra.mxu0 0.0
  %1795 = vmatprep.mubr.f32.mxu0 0.0
  %1796 = vmatmul.mubr.f32.gmra.mrb[0].mxu0 %v1726
  %v1797 = vpop.f32.mrb[0].mxu0
  %v1798 = vadd.f32 0.0, %v1797
  %v1799 = vpop.f32.mrb[0].mxu0
  %1800 = vdwg.mxu0
  %v1802 = vsel %vm1495, %v1472, 0
  %v1805 = vsel %vm1499, %v53, 0
  %1807 = vmatprep.subr.mxu0 0.0
  %1808 = vmatpush1.msra.mxu0 %v1805
  %1809 = vmatprep.subr.mxu0 0.0
  %1810 = vmatpush1.msra.mxu0 0.0
  %1811 = vmatprep.subr.mxu0 0.0
  %1812 = vmatpush1.msra.mxu0 0.0
  %1813 = vmatprep.subr.mxu0 0.0
  %1814 = vmatpush1.msra.mxu0 0.0
  %1815 = vmatprep.subr.mxu0 0.0
  %1816 = vmatpush1.msra.mxu0 0.0
  %1817 = vmatprep.subr.mxu0 0.0
  %1818 = vmatpush1.msra.mxu0 0.0
  %1819 = vmatprep.subr.mxu0 0.0
  %1820 = vmatpush1.msra.mxu0 0.0
  %1821 = vmatprep.subr.mxu0 0.0
  %1822 = vmatpush1.msra.mxu0 0.0
  %1823 = vmatprep.subr.mxu0 0.0
  %1824 = vmatpush1.msra.mxu0 0.0
  %1825 = vmatprep.subr.mxu0 0.0
  %1826 = vmatpush1.msra.mxu0 0.0
  %1827 = vmatprep.subr.mxu0 0.0
  %1828 = vmatpush1.msra.mxu0 0.0
  %1829 = vmatprep.subr.mxu0 0.0
  %1830 = vmatpush1.msra.mxu0 0.0
  %1831 = vmatprep.subr.mxu0 0.0
  %1832 = vmatpush1.msra.mxu0 0.0
  %1833 = vmatprep.subr.mxu0 0.0
  %1834 = vmatpush1.msra.mxu0 0.0
  %1835 = vmatprep.subr.mxu0 0.0
  %1836 = vmatpush1.msra.mxu0 0.0
  %1837 = vmatprep.subr.mxu0 0.0
  %1838 = vmatpush1.msra.mxu0 0.0
  %1839 = vmatprep.subr.mxu0 0.0
  %1840 = vmatpush1.msra.mxu0 0.0
  %1841 = vmatprep.subr.mxu0 0.0
  %1842 = vmatpush1.msra.mxu0 0.0
  %1843 = vmatprep.subr.mxu0 0.0
  %1844 = vmatpush1.msra.mxu0 0.0
  %1845 = vmatprep.subr.mxu0 0.0
  %1846 = vmatpush1.msra.mxu0 0.0
  %1847 = vmatprep.subr.mxu0 0.0
  %1848 = vmatpush1.msra.mxu0 0.0
  %1849 = vmatprep.subr.mxu0 0.0
  %1850 = vmatpush1.msra.mxu0 0.0
  %1851 = vmatprep.subr.mxu0 0.0
  %1852 = vmatpush1.msra.mxu0 0.0
  %1853 = vmatprep.subr.mxu0 0.0
  %1854 = vmatpush1.msra.mxu0 0.0
  %1855 = vmatprep.subr.mxu0 0.0
  %1856 = vmatpush1.msra.mxu0 0.0
  %1857 = vmatprep.subr.mxu0 0.0
  %1858 = vmatpush1.msra.mxu0 0.0
  %1859 = vmatprep.subr.mxu0 0.0
  %1860 = vmatpush1.msra.mxu0 0.0
  %1861 = vmatprep.subr.mxu0 0.0
  %1862 = vmatpush1.msra.mxu0 0.0
  %1863 = vmatprep.subr.mxu0 0.0
  %1864 = vmatpush1.msra.mxu0 0.0
  %1865 = vmatprep.subr.mxu0 0.0
  %1866 = vmatpush1.msra.mxu0 0.0
  %1867 = vmatprep.subr.mxu0 0.0
  %1868 = vmatpush1.msra.mxu0 0.0
  %1869 = vmatprep.subr.mxu0 0.0
  %1870 = vmatpush1.msra.mxu0 0.0
  %1871 = vmatprep.mubr.f32.mxu0 0.0
  %1872 = vmatmul.mubr.f32.gmra.mrb[0].mxu0 %v1802
  %v1873 = vpop.f32.mrb[0].mxu0
  %v1874 = vadd.f32 0.0, %v1873
  %v1875 = vpop.f32.mrb[0].mxu0
  %1876 = vdwg.mxu0
  %v1878 = vsel %vm1495, %v1474, 0
  %v1881 = vsel %vm1499, %v54, 0
  %1883 = vmatprep.subr.mxu0 0.0
  %1884 = vmatpush1.msra.mxu0 %v1881
  %1885 = vmatprep.subr.mxu0 0.0
  %1886 = vmatpush1.msra.mxu0 0.0
  %1887 = vmatprep.subr.mxu0 0.0
  %1888 = vmatpush1.msra.mxu0 0.0
  %1889 = vmatprep.subr.mxu0 0.0
  %1890 = vmatpush1.msra.mxu0 0.0
  %1891 = vmatprep.subr.mxu0 0.0
  %1892 = vmatpush1.msra.mxu0 0.0
  %1893 = vmatprep.subr.mxu0 0.0
  %1894 = vmatpush1.msra.mxu0 0.0
  %1895 = vmatprep.subr.mxu0 0.0
  %1896 = vmatpush1.msra.mxu0 0.0
  %1897 = vmatprep.subr.mxu0 0.0
  %1898 = vmatpush1.msra.mxu0 0.0
  %1899 = vmatprep.subr.mxu0 0.0
  %1900 = vmatpush1.msra.mxu0 0.0
  %1901 = vmatprep.subr.mxu0 0.0
  %1902 = vmatpush1.msra.mxu0 0.0
  %1903 = vmatprep.subr.mxu0 0.0
  %1904 = vmatpush1.msra.mxu0 0.0
  %1905 = vmatprep.subr.mxu0 0.0
  %1906 = vmatpush1.msra.mxu0 0.0
  %1907 = vmatprep.subr.mxu0 0.0
  %1908 = vmatpush1.msra.mxu0 0.0
  %1909 = vmatprep.subr.mxu0 0.0
  %1910 = vmatpush1.msra.mxu0 0.0
  %1911 = vmatprep.subr.mxu0 0.0
  %1912 = vmatpush1.msra.mxu0 0.0
  %1913 = vmatprep.subr.mxu0 0.0
  %1914 = vmatpush1.msra.mxu0 0.0
  %1915 = vmatprep.subr.mxu0 0.0
  %1916 = vmatpush1.msra.mxu0 0.0
  %1917 = vmatprep.subr.mxu0 0.0
  %1918 = vmatpush1.msra.mxu0 0.0
  %1919 = vmatprep.subr.mxu0 0.0
  %1920 = vmatpush1.msra.mxu0 0.0
  %1921 = vmatprep.subr.mxu0 0.0
  %1922 = vmatpush1.msra.mxu0 0.0
  %1923 = vmatprep.subr.mxu0 0.0
  %1924 = vmatpush1.msra.mxu0 0.0
  %1925 = vmatprep.subr.mxu0 0.0
  %1926 = vmatpush1.msra.mxu0 0.0
  %1927 = vmatprep.subr.mxu0 0.0
  %1928 = vmatpush1.msra.mxu0 0.0
  %1929 = vmatprep.subr.mxu0 0.0
  %1930 = vmatpush1.msra.mxu0 0.0
  %1931 = vmatprep.subr.mxu0 0.0
  %1932 = vmatpush1.msra.mxu0 0.0
  %1933 = vmatprep.subr.mxu0 0.0
  %1934 = vmatpush1.msra.mxu0 0.0
  %1935 = vmatprep.subr.mxu0 0.0
  %1936 = vmatpush1.msra.mxu0 0.0
  %1937 = vmatprep.subr.mxu0 0.0
  %1938 = vmatpush1.msra.mxu0 0.0
  %1939 = vmatprep.subr.mxu0 0.0
  %1940 = vmatpush1.msra.mxu0 0.0
  %1941 = vmatprep.subr.mxu0 0.0
  %1942 = vmatpush1.msra.mxu0 0.0
  %1943 = vmatprep.subr.mxu0 0.0
  %1944 = vmatpush1.msra.mxu0 0.0
  %1945 = vmatprep.subr.mxu0 0.0
  %1946 = vmatpush1.msra.mxu0 0.0
  %1947 = vmatprep.mubr.f32.mxu0 0.0
  %1948 = vmatmul.mubr.f32.gmra.mrb[0].mxu0 %v1878
  %v1949 = vpop.f32.mrb[0].mxu0
  %v1950 = vadd.f32 0.0, %v1949
  %v1951 = vpop.f32.mrb[0].mxu0
  %1952 = vdwg.mxu0
  %v1954 = vsel %vm1495, %v1476, 0
  %v1957 = vsel %vm1499, %v55, 0
  %1959 = vmatprep.subr.mxu0 0.0
  %1960 = vmatpush1.msra.mxu0 %v1957
  %1961 = vmatprep.subr.mxu0 0.0
  %1962 = vmatpush1.msra.mxu0 0.0
  %1963 = vmatprep.subr.mxu0 0.0
  %1964 = vmatpush1.msra.mxu0 0.0
  %1965 = vmatprep.subr.mxu0 0.0
  %1966 = vmatpush1.msra.mxu0 0.0
  %1967 = vmatprep.subr.mxu0 0.0
  %1968 = vmatpush1.msra.mxu0 0.0
  %1969 = vmatprep.subr.mxu0 0.0
  %1970 = vmatpush1.msra.mxu0 0.0
  %1971 = vmatprep.subr.mxu0 0.0
  %1972 = vmatpush1.msra.mxu0 0.0
  %1973 = vmatprep.subr.mxu0 0.0
  %1974 = vmatpush1.msra.mxu0 0.0
  %1975 = vmatprep.subr.mxu0 0.0
  %1976 = vmatpush1.msra.mxu0 0.0
  %1977 = vmatprep.subr.mxu0 0.0
  %1978 = vmatpush1.msra.mxu0 0.0
  %1979 = vmatprep.subr.mxu0 0.0
  %1980 = vmatpush1.msra.mxu0 0.0
  %1981 = vmatprep.subr.mxu0 0.0
  %1982 = vmatpush1.msra.mxu0 0.0
  %1983 = vmatprep.subr.mxu0 0.0
  %1984 = vmatpush1.msra.mxu0 0.0
  %1985 = vmatprep.subr.mxu0 0.0
  %1986 = vmatpush1.msra.mxu0 0.0
  %1987 = vmatprep.subr.mxu0 0.0
  %1988 = vmatpush1.msra.mxu0 0.0
  %1989 = vmatprep.subr.mxu0 0.0
  %1990 = vmatpush1.msra.mxu0 0.0
  %1991 = vmatprep.subr.mxu0 0.0
  %1992 = vmatpush1.msra.mxu0 0.0
  %1993 = vmatprep.subr.mxu0 0.0
  %1994 = vmatpush1.msra.mxu0 0.0
  %1995 = vmatprep.subr.mxu0 0.0
  %1996 = vmatpush1.msra.mxu0 0.0
  %1997 = vmatprep.subr.mxu0 0.0
  %1998 = vmatpush1.msra.mxu0 0.0
  %1999 = vmatprep.subr.mxu0 0.0
  %2000 = vmatpush1.msra.mxu0 0.0
  %2001 = vmatprep.subr.mxu0 0.0
  %2002 = vmatpush1.msra.mxu0 0.0
  %2003 = vmatprep.subr.mxu0 0.0
  %2004 = vmatpush1.msra.mxu0 0.0
  %2005 = vmatprep.subr.mxu0 0.0
  %2006 = vmatpush1.msra.mxu0 0.0
  %2007 = vmatprep.subr.mxu0 0.0
  %2008 = vmatpush1.msra.mxu0 0.0
  %2009 = vmatprep.subr.mxu0 0.0
  %2010 = vmatpush1.msra.mxu0 0.0
  %2011 = vmatprep.subr.mxu0 0.0
  %2012 = vmatpush1.msra.mxu0 0.0
  %2013 = vmatprep.subr.mxu0 0.0
  %2014 = vmatpush1.msra.mxu0 0.0
  %2015 = vmatprep.subr.mxu0 0.0
  %2016 = vmatpush1.msra.mxu0 0.0
  %2017 = vmatprep.subr.mxu0 0.0
  %2018 = vmatpush1.msra.mxu0 0.0
  %2019 = vmatprep.subr.mxu0 0.0
  %2020 = vmatpush1.msra.mxu0 0.0
  %2021 = vmatprep.subr.mxu0 0.0
  %2022 = vmatpush1.msra.mxu0 0.0
  %2023 = vmatprep.mubr.f32.mxu0 0.0
  %2024 = vmatmul.mubr.f32.gmra.mrb[0].mxu0 %v1954
  %v2025 = vpop.f32.mrb[0].mxu0
  %v2026 = vadd.f32 0.0, %v2025
  %v2027 = vpop.f32.mrb[0].mxu0
  %2028 = vdwg.mxu0
  %v2030 = vsel %vm1495, %v1478, 0
  %v2033 = vsel %vm1499, %v56, 0
  %2035 = vmatprep.subr.mxu0 0.0
  %2036 = vmatpush1.msra.mxu0 %v2033
  %2037 = vmatprep.subr.mxu0 0.0
  %2038 = vmatpush1.msra.mxu0 0.0
  %2039 = vmatprep.subr.mxu0 0.0
  %2040 = vmatpush1.msra.mxu0 0.0
  %2041 = vmatprep.subr.mxu0 0.0
  %2042 = vmatpush1.msra.mxu0 0.0
  %2043 = vmatprep.subr.mxu0 0.0
  %2044 = vmatpush1.msra.mxu0 0.0
  %2045 = vmatprep.subr.mxu0 0.0
  %2046 = vmatpush1.msra.mxu0 0.0
  %2047 = vmatprep.subr.mxu0 0.0
  %2048 = vmatpush1.msra.mxu0 0.0
  %2049 = vmatprep.subr.mxu0 0.0
  %2050 = vmatpush1.msra.mxu0 0.0
  %2051 = vmatprep.subr.mxu0 0.0
  %2052 = vmatpush1.msra.mxu0 0.0
  %2053 = vmatprep.subr.mxu0 0.0
  %2054 = vmatpush1.msra.mxu0 0.0
  %2055 = vmatprep.subr.mxu0 0.0
  %2056 = vmatpush1.msra.mxu0 0.0
  %2057 = vmatprep.subr.mxu0 0.0
  %2058 = vmatpush1.msra.mxu0 0.0
  %2059 = vmatprep.subr.mxu0 0.0
  %2060 = vmatpush1.msra.mxu0 0.0
  %2061 = vmatprep.subr.mxu0 0.0
  %2062 = vmatpush1.msra.mxu0 0.0
  %2063 = vmatprep.subr.mxu0 0.0
  %2064 = vmatpush1.msra.mxu0 0.0
  %2065 = vmatprep.subr.mxu0 0.0
  %2066 = vmatpush1.msra.mxu0 0.0
  %2067 = vmatprep.subr.mxu0 0.0
  %2068 = vmatpush1.msra.mxu0 0.0
  %2069 = vmatprep.subr.mxu0 0.0
  %2070 = vmatpush1.msra.mxu0 0.0
  %2071 = vmatprep.subr.mxu0 0.0
  %2072 = vmatpush1.msra.mxu0 0.0
  %2073 = vmatprep.subr.mxu0 0.0
  %2074 = vmatpush1.msra.mxu0 0.0
  %2075 = vmatprep.subr.mxu0 0.0
  %2076 = vmatpush1.msra.mxu0 0.0
  %2077 = vmatprep.subr.mxu0 0.0
  %2078 = vmatpush1.msra.mxu0 0.0
  %2079 = vmatprep.subr.mxu0 0.0
  %2080 = vmatpush1.msra.mxu0 0.0
  %2081 = vmatprep.subr.mxu0 0.0
  %2082 = vmatpush1.msra.mxu0 0.0
  %2083 = vmatprep.subr.mxu0 0.0
  %2084 = vmatpush1.msra.mxu0 0.0
  %2085 = vmatprep.subr.mxu0 0.0
  %2086 = vmatpush1.msra.mxu0 0.0
  %2087 = vmatprep.subr.mxu0 0.0
  %2088 = vmatpush1.msra.mxu0 0.0
  %2089 = vmatprep.subr.mxu0 0.0
  %2090 = vmatpush1.msra.mxu0 0.0
  %2091 = vmatprep.subr.mxu0 0.0
  %2092 = vmatpush1.msra.mxu0 0.0
  %2093 = vmatprep.subr.mxu0 0.0
  %2094 = vmatpush1.msra.mxu0 0.0
  %2095 = vmatprep.subr.mxu0 0.0
  %2096 = vmatpush1.msra.mxu0 0.0
  %2097 = vmatprep.subr.mxu0 0.0
  %2098 = vmatpush1.msra.mxu0 0.0
  %2099 = vmatprep.mubr.f32.mxu0 0.0
  %2100 = vmatmul.mubr.f32.gmra.mrb[0].mxu0 %v2030
  %v2101 = vpop.f32.mrb[0].mxu0
  %v2102 = vadd.f32 0.0, %v2101
  %v2103 = vpop.f32.mrb[0].mxu0
  %2104 = vdwg.mxu0
  %v2106 = vsel %vm1495, %v1480, 0
  %v2109 = vsel %vm1499, %v57, 0
  %2111 = vmatprep.subr.mxu0 0.0
  %2112 = vmatpush1.msra.mxu0 %v2109
  %2113 = vmatprep.subr.mxu0 0.0
  %2114 = vmatpush1.msra.mxu0 0.0
  %2115 = vmatprep.subr.mxu0 0.0
  %2116 = vmatpush1.msra.mxu0 0.0
  %2117 = vmatprep.subr.mxu0 0.0
  %2118 = vmatpush1.msra.mxu0 0.0
  %2119 = vmatprep.subr.mxu0 0.0
  %2120 = vmatpush1.msra.mxu0 0.0
  %2121 = vmatprep.subr.mxu0 0.0
  %2122 = vmatpush1.msra.mxu0 0.0
  %2123 = vmatprep.subr.mxu0 0.0
  %2124 = vmatpush1.msra.mxu0 0.0
  %2125 = vmatprep.subr.mxu0 0.0
  %2126 = vmatpush1.msra.mxu0 0.0
  %2127 = vmatprep.subr.mxu0 0.0
  %2128 = vmatpush1.msra.mxu0 0.0
  %2129 = vmatprep.subr.mxu0 0.0
  %2130 = vmatpush1.msra.mxu0 0.0
  %2131 = vmatprep.subr.mxu0 0.0
  %2132 = vmatpush1.msra.mxu0 0.0
  %2133 = vmatprep.subr.mxu0 0.0
  %2134 = vmatpush1.msra.mxu0 0.0
  %2135 = vmatprep.subr.mxu0 0.0
  %2136 = vmatpush1.msra.mxu0 0.0
  %2137 = vmatprep.subr.mxu0 0.0
  %2138 = vmatpush1.msra.mxu0 0.0
  %2139 = vmatprep.subr.mxu0 0.0
  %2140 = vmatpush1.msra.mxu0 0.0
  %2141 = vmatprep.subr.mxu0 0.0
  %2142 = vmatpush1.msra.mxu0 0.0
  %2143 = vmatprep.subr.mxu0 0.0
  %2144 = vmatpush1.msra.mxu0 0.0
  %2145 = vmatprep.subr.mxu0 0.0
  %2146 = vmatpush1.msra.mxu0 0.0
  %2147 = vmatprep.subr.mxu0 0.0
  %2148 = vmatpush1.msra.mxu0 0.0
  %2149 = vmatprep.subr.mxu0 0.0
  %2150 = vmatpush1.msra.mxu0 0.0
  %2151 = vmatprep.subr.mxu0 0.0
  %2152 = vmatpush1.msra.mxu0 0.0
  %2153 = vmatprep.subr.mxu0 0.0
  %2154 = vmatpush1.msra.mxu0 0.0
  %2155 = vmatprep.subr.mxu0 0.0
  %2156 = vmatpush1.msra.mxu0 0.0
  %2157 = vmatprep.subr.mxu0 0.0
  %2158 = vmatpush1.msra.mxu0 0.0
  %2159 = vmatprep.subr.mxu0 0.0
  %2160 = vmatpush1.msra.mxu0 0.0
  %2161 = vmatprep.subr.mxu0 0.0
  %2162 = vmatpush1.msra.mxu0 0.0
  %2163 = vmatprep.subr.mxu0 0.0
  %2164 = vmatpush1.msra.mxu0 0.0
  %2165 = vmatprep.subr.mxu0 0.0
  %2166 = vmatpush1.msra.mxu0 0.0
  %2167 = vmatprep.subr.mxu0 0.0
  %2168 = vmatpush1.msra.mxu0 0.0
  %2169 = vmatprep.subr.mxu0 0.0
  %2170 = vmatpush1.msra.mxu0 0.0
  %2171 = vmatprep.subr.mxu0 0.0
  %2172 = vmatpush1.msra.mxu0 0.0
  %2173 = vmatprep.subr.mxu0 0.0
  %2174 = vmatpush1.msra.mxu0 0.0
  %2175 = vmatprep.mubr.f32.mxu0 0.0
  %2176 = vmatmul.mubr.f32.gmra.mrb[0].mxu0 %v2106
  %v2177 = vpop.f32.mrb[0].mxu0
  %v2178 = vadd.f32 0.0, %v2177
  %v2179 = vpop.f32.mrb[0].mxu0
  %2180 = vdwg.mxu0
  %v2182 = vsel %vm1495, %v1482, 0
  %v2185 = vsel %vm1499, %v58, 0
  %2187 = vmatprep.subr.mxu0 0.0
  %2188 = vmatpush1.msra.mxu0 %v2185
  %2189 = vmatprep.subr.mxu0 0.0
  %2190 = vmatpush1.msra.mxu0 0.0
  %2191 = vmatprep.subr.mxu0 0.0
  %2192 = vmatpush1.msra.mxu0 0.0
  %2193 = vmatprep.subr.mxu0 0.0
  %2194 = vmatpush1.msra.mxu0 0.0
  %2195 = vmatprep.subr.mxu0 0.0
  %2196 = vmatpush1.msra.mxu0 0.0
  %2197 = vmatprep.subr.mxu0 0.0
  %2198 = vmatpush1.msra.mxu0 0.0
  %2199 = vmatprep.subr.mxu0 0.0
  %2200 = vmatpush1.msra.mxu0 0.0
  %2201 = vmatprep.subr.mxu0 0.0
  %2202 = vmatpush1.msra.mxu0 0.0
  %2203 = vmatprep.subr.mxu0 0.0
  %2204 = vmatpush1.msra.mxu0 0.0
  %2205 = vmatprep.subr.mxu0 0.0
  %2206 = vmatpush1.msra.mxu0 0.0
  %2207 = vmatprep.subr.mxu0 0.0
  %2208 = vmatpush1.msra.mxu0 0.0
  %2209 = vmatprep.subr.mxu0 0.0
  %2210 = vmatpush1.msra.mxu0 0.0
  %2211 = vmatprep.subr.mxu0 0.0
  %2212 = vmatpush1.msra.mxu0 0.0
  %2213 = vmatprep.subr.mxu0 0.0
  %2214 = vmatpush1.msra.mxu0 0.0
  %2215 = vmatprep.subr.mxu0 0.0
  %2216 = vmatpush1.msra.mxu0 0.0
  %2217 = vmatprep.subr.mxu0 0.0
  %2218 = vmatpush1.msra.mxu0 0.0
  %2219 = vmatprep.subr.mxu0 0.0
  %2220 = vmatpush1.msra.mxu0 0.0
  %2221 = vmatprep.subr.mxu0 0.0
  %2222 = vmatpush1.msra.mxu0 0.0
  %2223 = vmatprep.subr.mxu0 0.0
  %2224 = vmatpush1.msra.mxu0 0.0
  %2225 = vmatprep.subr.mxu0 0.0
  %2226 = vmatpush1.msra.mxu0 0.0
  %2227 = vmatprep.subr.mxu0 0.0
  %2228 = vmatpush1.msra.mxu0 0.0
  %2229 = vmatprep.subr.mxu0 0.0
  %2230 = vmatpush1.msra.mxu0 0.0
  %2231 = vmatprep.subr.mxu0 0.0
  %2232 = vmatpush1.msra.mxu0 0.0
  %2233 = vmatprep.subr.mxu0 0.0
  %2234 = vmatpush1.msra.mxu0 0.0
  %2235 = vmatprep.subr.mxu0 0.0
  %2236 = vmatpush1.msra.mxu0 0.0
  %2237 = vmatprep.subr.mxu0 0.0
  %2238 = vmatpush1.msra.mxu0 0.0
  %2239 = vmatprep.subr.mxu0 0.0
  %2240 = vmatpush1.msra.mxu0 0.0
  %2241 = vmatprep.subr.mxu0 0.0
  %2242 = vmatpush1.msra.mxu0 0.0
  %2243 = vmatprep.subr.mxu0 0.0
  %2244 = vmatpush1.msra.mxu0 0.0
  %2245 = vmatprep.subr.mxu0 0.0
  %2246 = vmatpush1.msra.mxu0 0.0
  %2247 = vmatprep.subr.mxu0 0.0
  %2248 = vmatpush1.msra.mxu0 0.0
  %2249 = vmatprep.subr.mxu0 0.0
  %2250 = vmatpush1.msra.mxu0 0.0
  %2251 = vmatprep.mubr.f32.mxu0 0.0
  %2252 = vmatmul.mubr.f32.gmra.mrb[0].mxu0 %v2182
  %v2253 = vpop.f32.mrb[0].mxu0
  %v2254 = vadd.f32 0.0, %v2253
  %v2255 = vpop.f32.mrb[0].mxu0
  %2256 = vdwg.mxu0
  %v2258 = vsel %vm1495, %v1484, 0
  %v2261 = vsel %vm1499, %v59, 0
  %2263 = vmatprep.subr.mxu0 0.0
  %2264 = vmatpush1.msra.mxu0 %v2261
  %2265 = vmatprep.subr.mxu0 0.0
  %2266 = vmatpush1.msra.mxu0 0.0
  %2267 = vmatprep.subr.mxu0 0.0
  %2268 = vmatpush1.msra.mxu0 0.0
  %2269 = vmatprep.subr.mxu0 0.0
  %2270 = vmatpush1.msra.mxu0 0.0
  %2271 = vmatprep.subr.mxu0 0.0
  %2272 = vmatpush1.msra.mxu0 0.0
  %2273 = vmatprep.subr.mxu0 0.0
  %2274 = vmatpush1.msra.mxu0 0.0
  %2275 = vmatprep.subr.mxu0 0.0
  %2276 = vmatpush1.msra.mxu0 0.0
  %2277 = vmatprep.subr.mxu0 0.0
  %2278 = vmatpush1.msra.mxu0 0.0
  %2279 = vmatprep.subr.mxu0 0.0
  %2280 = vmatpush1.msra.mxu0 0.0
  %2281 = vmatprep.subr.mxu0 0.0
  %2282 = vmatpush1.msra.mxu0 0.0
  %2283 = vmatprep.subr.mxu0 0.0
  %2284 = vmatpush1.msra.mxu0 0.0
  %2285 = vmatprep.subr.mxu0 0.0
  %2286 = vmatpush1.msra.mxu0 0.0
  %2287 = vmatprep.subr.mxu0 0.0
  %2288 = vmatpush1.msra.mxu0 0.0
  %2289 = vmatprep.subr.mxu0 0.0
  %2290 = vmatpush1.msra.mxu0 0.0
  %2291 = vmatprep.subr.mxu0 0.0
  %2292 = vmatpush1.msra.mxu0 0.0
  %2293 = vmatprep.subr.mxu0 0.0
  %2294 = vmatpush1.msra.mxu0 0.0
  %2295 = vmatprep.subr.mxu0 0.0
  %2296 = vmatpush1.msra.mxu0 0.0
  %2297 = vmatprep.subr.mxu0 0.0
  %2298 = vmatpush1.msra.mxu0 0.0
  %2299 = vmatprep.subr.mxu0 0.0
  %2300 = vmatpush1.msra.mxu0 0.0
  %2301 = vmatprep.subr.mxu0 0.0
  %2302 = vmatpush1.msra.mxu0 0.0
  %2303 = vmatprep.subr.mxu0 0.0
  %2304 = vmatpush1.msra.mxu0 0.0
  %2305 = vmatprep.subr.mxu0 0.0
  %2306 = vmatpush1.msra.mxu0 0.0
  %2307 = vmatprep.subr.mxu0 0.0
  %2308 = vmatpush1.msra.mxu0 0.0
  %2309 = vmatprep.subr.mxu0 0.0
  %2310 = vmatpush1.msra.mxu0 0.0
  %2311 = vmatprep.subr.mxu0 0.0
  %2312 = vmatpush1.msra.mxu0 0.0
  %2313 = vmatprep.subr.mxu0 0.0
  %2314 = vmatpush1.msra.mxu0 0.0
  %2315 = vmatprep.subr.mxu0 0.0
  %2316 = vmatpush1.msra.mxu0 0.0
  %2317 = vmatprep.subr.mxu0 0.0
  %2318 = vmatpush1.msra.mxu0 0.0
  %2319 = vmatprep.subr.mxu0 0.0
  %2320 = vmatpush1.msra.mxu0 0.0
  %2321 = vmatprep.subr.mxu0 0.0
  %2322 = vmatpush1.msra.mxu0 0.0
  %2323 = vmatprep.subr.mxu0 0.0
  %2324 = vmatpush1.msra.mxu0 0.0
  %2325 = vmatprep.subr.mxu0 0.0
  %2326 = vmatpush1.msra.mxu0 0.0
  %2327 = vmatprep.mubr.f32.mxu0 0.0
  %2328 = vmatmul.mubr.f32.gmra.mrb[0].mxu0 %v2258
  %v2329 = vpop.f32.mrb[0].mxu0
  %v2330 = vadd.f32 0.0, %v2329
  %v2331 = vpop.f32.mrb[0].mxu0
  %2332 = vdwg.mxu0
  %v2334 = vsel %vm1495, %v1486, 0
  %v2337 = vsel %vm1499, %v60, 0
  %2339 = vmatprep.subr.mxu0 0.0
  %2340 = vmatpush1.msra.mxu0 %v2337
  %2341 = vmatprep.subr.mxu0 0.0
  %2342 = vmatpush1.msra.mxu0 0.0
  %2343 = vmatprep.subr.mxu0 0.0
  %2344 = vmatpush1.msra.mxu0 0.0
  %2345 = vmatprep.subr.mxu0 0.0
  %2346 = vmatpush1.msra.mxu0 0.0
  %2347 = vmatprep.subr.mxu0 0.0
  %2348 = vmatpush1.msra.mxu0 0.0
  %2349 = vmatprep.subr.mxu0 0.0
  %2350 = vmatpush1.msra.mxu0 0.0
  %2351 = vmatprep.subr.mxu0 0.0
  %2352 = vmatpush1.msra.mxu0 0.0
  %2353 = vmatprep.subr.mxu0 0.0
  %2354 = vmatpush1.msra.mxu0 0.0
  %2355 = vmatprep.subr.mxu0 0.0
  %2356 = vmatpush1.msra.mxu0 0.0
  %2357 = vmatprep.subr.mxu0 0.0
  %2358 = vmatpush1.msra.mxu0 0.0
  %2359 = vmatprep.subr.mxu0 0.0
  %2360 = vmatpush1.msra.mxu0 0.0
  %2361 = vmatprep.subr.mxu0 0.0
  %2362 = vmatpush1.msra.mxu0 0.0
  %2363 = vmatprep.subr.mxu0 0.0
  %2364 = vmatpush1.msra.mxu0 0.0
  %2365 = vmatprep.subr.mxu0 0.0
  %2366 = vmatpush1.msra.mxu0 0.0
  %2367 = vmatprep.subr.mxu0 0.0
  %2368 = vmatpush1.msra.mxu0 0.0
  %2369 = vmatprep.subr.mxu0 0.0
  %2370 = vmatpush1.msra.mxu0 0.0
  %2371 = vmatprep.subr.mxu0 0.0
  %2372 = vmatpush1.msra.mxu0 0.0
  %2373 = vmatprep.subr.mxu0 0.0
  %2374 = vmatpush1.msra.mxu0 0.0
  %2375 = vmatprep.subr.mxu0 0.0
  %2376 = vmatpush1.msra.mxu0 0.0
  %2377 = vmatprep.subr.mxu0 0.0
  %2378 = vmatpush1.msra.mxu0 0.0
  %2379 = vmatprep.subr.mxu0 0.0
  %2380 = vmatpush1.msra.mxu0 0.0
  %2381 = vmatprep.subr.mxu0 0.0
  %2382 = vmatpush1.msra.mxu0 0.0
  %2383 = vmatprep.subr.mxu0 0.0
  %2384 = vmatpush1.msra.mxu0 0.0
  %2385 = vmatprep.subr.mxu0 0.0
  %2386 = vmatpush1.msra.mxu0 0.0
  %2387 = vmatprep.subr.mxu0 0.0
  %2388 = vmatpush1.msra.mxu0 0.0
  %2389 = vmatprep.subr.mxu0 0.0
  %2390 = vmatpush1.msra.mxu0 0.0
  %2391 = vmatprep.subr.mxu0 0.0
  %2392 = vmatpush1.msra.mxu0 0.0
  %2393 = vmatprep.subr.mxu0 0.0
  %2394 = vmatpush1.msra.mxu0 0.0
  %2395 = vmatprep.subr.mxu0 0.0
  %2396 = vmatpush1.msra.mxu0 0.0
  %2397 = vmatprep.subr.mxu0 0.0
  %2398 = vmatpush1.msra.mxu0 0.0
  %2399 = vmatprep.subr.mxu0 0.0
  %2400 = vmatpush1.msra.mxu0 0.0
  %2401 = vmatprep.subr.mxu0 0.0
  %2402 = vmatpush1.msra.mxu0 0.0
  %2403 = vmatprep.mubr.f32.mxu0 0.0
  %2404 = vmatmul.mubr.f32.gmra.mrb[0].mxu0 %v2334
  %v2405 = vpop.f32.mrb[0].mxu0
  %v2406 = vadd.f32 0.0, %v2405
  %v2407 = vpop.f32.mrb[0].mxu0
  %2408 = vdwg.mxu0
  %v2410 = vsel %vm1495, %v1488, 0
  %v2413 = vsel %vm1499, %v61, 0
  %2415 = vmatprep.subr.mxu0 0.0
  %2416 = vmatpush1.msra.mxu0 %v2413
  %2417 = vmatprep.subr.mxu0 0.0
  %2418 = vmatpush1.msra.mxu0 0.0
  %2419 = vmatprep.subr.mxu0 0.0
  %2420 = vmatpush1.msra.mxu0 0.0
  %2421 = vmatprep.subr.mxu0 0.0
  %2422 = vmatpush1.msra.mxu0 0.0
  %2423 = vmatprep.subr.mxu0 0.0
  %2424 = vmatpush1.msra.mxu0 0.0
  %2425 = vmatprep.subr.mxu0 0.0
  %2426 = vmatpush1.msra.mxu0 0.0
  %2427 = vmatprep.subr.mxu0 0.0
  %2428 = vmatpush1.msra.mxu0 0.0
  %2429 = vmatprep.subr.mxu0 0.0
  %2430 = vmatpush1.msra.mxu0 0.0
  %2431 = vmatprep.subr.mxu0 0.0
  %2432 = vmatpush1.msra.mxu0 0.0
  %2433 = vmatprep.subr.mxu0 0.0
  %2434 = vmatpush1.msra.mxu0 0.0
  %2435 = vmatprep.subr.mxu0 0.0
  %2436 = vmatpush1.msra.mxu0 0.0
  %2437 = vmatprep.subr.mxu0 0.0
  %2438 = vmatpush1.msra.mxu0 0.0
  %2439 = vmatprep.subr.mxu0 0.0
  %2440 = vmatpush1.msra.mxu0 0.0
  %2441 = vmatprep.subr.mxu0 0.0
  %2442 = vmatpush1.msra.mxu0 0.0
  %2443 = vmatprep.subr.mxu0 0.0
  %2444 = vmatpush1.msra.mxu0 0.0
  %2445 = vmatprep.subr.mxu0 0.0
  %2446 = vmatpush1.msra.mxu0 0.0
  %2447 = vmatprep.subr.mxu0 0.0
  %2448 = vmatpush1.msra.mxu0 0.0
  %2449 = vmatprep.subr.mxu0 0.0
  %2450 = vmatpush1.msra.mxu0 0.0
  %2451 = vmatprep.subr.mxu0 0.0
  %2452 = vmatpush1.msra.mxu0 0.0
  %2453 = vmatprep.subr.mxu0 0.0
  %2454 = vmatpush1.msra.mxu0 0.0
  %2455 = vmatprep.subr.mxu0 0.0
  %2456 = vmatpush1.msra.mxu0 0.0
  %2457 = vmatprep.subr.mxu0 0.0
  %2458 = vmatpush1.msra.mxu0 0.0
  %2459 = vmatprep.subr.mxu0 0.0
  %2460 = vmatpush1.msra.mxu0 0.0
  %2461 = vmatprep.subr.mxu0 0.0
  %2462 = vmatpush1.msra.mxu0 0.0
  %2463 = vmatprep.subr.mxu0 0.0
  %2464 = vmatpush1.msra.mxu0 0.0
  %2465 = vmatprep.subr.mxu0 0.0
  %2466 = vmatpush1.msra.mxu0 0.0
  %2467 = vmatprep.subr.mxu0 0.0
  %2468 = vmatpush1.msra.mxu0 0.0
  %2469 = vmatprep.subr.mxu0 0.0
  %2470 = vmatpush1.msra.mxu0 0.0
  %2471 = vmatprep.subr.mxu0 0.0
  %2472 = vmatpush1.msra.mxu0 0.0
  %2473 = vmatprep.subr.mxu0 0.0
  %2474 = vmatpush1.msra.mxu0 0.0
  %2475 = vmatprep.subr.mxu0 0.0
  %2476 = vmatpush1.msra.mxu0 0.0
  %2477 = vmatprep.subr.mxu0 0.0
  %2478 = vmatpush1.msra.mxu0 0.0
  %2479 = vmatprep.mubr.f32.mxu0 0.0
  %2480 = vmatmul.mubr.f32.gmra.mrb[0].mxu0 %v2410
  %v2481 = vpop.f32.mrb[0].mxu0
  %v2482 = vadd.f32 0.0, %v2481
  %v2483 = vpop.f32.mrb[0].mxu0
  %2484 = vdwg.mxu0
  %v2486 = vsel %vm1495, %v1490, 0
  %v2489 = vsel %vm1499, %v62, 0
  %2491 = vmatprep.subr.mxu0 0.0
  %2492 = vmatpush1.msra.mxu0 %v2489
  %2493 = vmatprep.subr.mxu0 0.0
  %2494 = vmatpush1.msra.mxu0 0.0
  %2495 = vmatprep.subr.mxu0 0.0
  %2496 = vmatpush1.msra.mxu0 0.0
  %2497 = vmatprep.subr.mxu0 0.0
  %2498 = vmatpush1.msra.mxu0 0.0
  %2499 = vmatprep.subr.mxu0 0.0
  %2500 = vmatpush1.msra.mxu0 0.0
  %2501 = vmatprep.subr.mxu0 0.0
  %2502 = vmatpush1.msra.mxu0 0.0
  %2503 = vmatprep.subr.mxu0 0.0
  %2504 = vmatpush1.msra.mxu0 0.0
  %2505 = vmatprep.subr.mxu0 0.0
  %2506 = vmatpush1.msra.mxu0 0.0
  %2507 = vmatprep.subr.mxu0 0.0
  %2508 = vmatpush1.msra.mxu0 0.0
  %2509 = vmatprep.subr.mxu0 0.0
  %2510 = vmatpush1.msra.mxu0 0.0
  %2511 = vmatprep.subr.mxu0 0.0
  %2512 = vmatpush1.msra.mxu0 0.0
  %2513 = vmatprep.subr.mxu0 0.0
  %2514 = vmatpush1.msra.mxu0 0.0
  %2515 = vmatprep.subr.mxu0 0.0
  %2516 = vmatpush1.msra.mxu0 0.0
  %2517 = vmatprep.subr.mxu0 0.0
  %2518 = vmatpush1.msra.mxu0 0.0
  %2519 = vmatprep.subr.mxu0 0.0
  %2520 = vmatpush1.msra.mxu0 0.0
  %2521 = vmatprep.subr.mxu0 0.0
  %2522 = vmatpush1.msra.mxu0 0.0
  %2523 = vmatprep.subr.mxu0 0.0
  %2524 = vmatpush1.msra.mxu0 0.0
  %2525 = vmatprep.subr.mxu0 0.0
  %2526 = vmatpush1.msra.mxu0 0.0
  %2527 = vmatprep.subr.mxu0 0.0
  %2528 = vmatpush1.msra.mxu0 0.0
  %2529 = vmatprep.subr.mxu0 0.0
  %2530 = vmatpush1.msra.mxu0 0.0
  %2531 = vmatprep.subr.mxu0 0.0
  %2532 = vmatpush1.msra.mxu0 0.0
  %2533 = vmatprep.subr.mxu0 0.0
  %2534 = vmatpush1.msra.mxu0 0.0
  %2535 = vmatprep.subr.mxu0 0.0
  %2536 = vmatpush1.msra.mxu0 0.0
  %2537 = vmatprep.subr.mxu0 0.0
  %2538 = vmatpush1.msra.mxu0 0.0
  %2539 = vmatprep.subr.mxu0 0.0
  %2540 = vmatpush1.msra.mxu0 0.0
  %2541 = vmatprep.subr.mxu0 0.0
  %2542 = vmatpush1.msra.mxu0 0.0
  %2543 = vmatprep.subr.mxu0 0.0
  %2544 = vmatpush1.msra.mxu0 0.0
  %2545 = vmatprep.subr.mxu0 0.0
  %2546 = vmatpush1.msra.mxu0 0.0
  %2547 = vmatprep.subr.mxu0 0.0
  %2548 = vmatpush1.msra.mxu0 0.0
  %2549 = vmatprep.subr.mxu0 0.0
  %2550 = vmatpush1.msra.mxu0 0.0
  %2551 = vmatprep.subr.mxu0 0.0
  %2552 = vmatpush1.msra.mxu0 0.0
  %2553 = vmatprep.subr.mxu0 0.0
  %2554 = vmatpush1.msra.mxu0 0.0
  %2555 = vmatprep.mubr.f32.mxu0 0.0
  %2556 = vmatmul.mubr.f32.gmra.mrb[0].mxu0 %v2486
  %v2557 = vpop.f32.mrb[0].mxu0
  %v2558 = vadd.f32 0.0, %v2557
  %v2559 = vpop.f32.mrb[0].mxu0
  %2560 = vdwg.mxu0
  %v2562 = vsel %vm1495, %v1492, 0
  %v2565 = vsel %vm1499, %v63, 0
  %2567 = vmatprep.subr.mxu0 0.0
  %2568 = vmatpush1.msra.mxu0 %v2565
  %2569 = vmatprep.subr.mxu0 0.0
  %2570 = vmatpush1.msra.mxu0 0.0
  %2571 = vmatprep.subr.mxu0 0.0
  %2572 = vmatpush1.msra.mxu0 0.0
  %2573 = vmatprep.subr.mxu0 0.0
  %2574 = vmatpush1.msra.mxu0 0.0
  %2575 = vmatprep.subr.mxu0 0.0
  %2576 = vmatpush1.msra.mxu0 0.0
  %2577 = vmatprep.subr.mxu0 0.0
  %2578 = vmatpush1.msra.mxu0 0.0
  %2579 = vmatprep.subr.mxu0 0.0
  %2580 = vmatpush1.msra.mxu0 0.0
  %2581 = vmatprep.subr.mxu0 0.0
  %2582 = vmatpush1.msra.mxu0 0.0
  %2583 = vmatprep.subr.mxu0 0.0
  %2584 = vmatpush1.msra.mxu0 0.0
  %2585 = vmatprep.subr.mxu0 0.0
  %2586 = vmatpush1.msra.mxu0 0.0
  %2587 = vmatprep.subr.mxu0 0.0
  %2588 = vmatpush1.msra.mxu0 0.0
  %2589 = vmatprep.subr.mxu0 0.0
  %2590 = vmatpush1.msra.mxu0 0.0
  %2591 = vmatprep.subr.mxu0 0.0
  %2592 = vmatpush1.msra.mxu0 0.0
  %2593 = vmatprep.subr.mxu0 0.0
  %2594 = vmatpush1.msra.mxu0 0.0
  %2595 = vmatprep.subr.mxu0 0.0
  %2596 = vmatpush1.msra.mxu0 0.0
  %2597 = vmatprep.subr.mxu0 0.0
  %2598 = vmatpush1.msra.mxu0 0.0
  %2599 = vmatprep.subr.mxu0 0.0
  %2600 = vmatpush1.msra.mxu0 0.0
  %2601 = vmatprep.subr.mxu0 0.0
  %2602 = vmatpush1.msra.mxu0 0.0
  %2603 = vmatprep.subr.mxu0 0.0
  %2604 = vmatpush1.msra.mxu0 0.0
  %2605 = vmatprep.subr.mxu0 0.0
  %2606 = vmatpush1.msra.mxu0 0.0
  %2607 = vmatprep.subr.mxu0 0.0
  %2608 = vmatpush1.msra.mxu0 0.0
  %2609 = vmatprep.subr.mxu0 0.0
  %2610 = vmatpush1.msra.mxu0 0.0
  %2611 = vmatprep.subr.mxu0 0.0
  %2612 = vmatpush1.msra.mxu0 0.0
  %2613 = vmatprep.subr.mxu0 0.0
  %2614 = vmatpush1.msra.mxu0 0.0
  %2615 = vmatprep.subr.mxu0 0.0
  %2616 = vmatpush1.msra.mxu0 0.0
  %2617 = vmatprep.subr.mxu0 0.0
  %2618 = vmatpush1.msra.mxu0 0.0
  %2619 = vmatprep.subr.mxu0 0.0
  %2620 = vmatpush1.msra.mxu0 0.0
  %2621 = vmatprep.subr.mxu0 0.0
  %2622 = vmatpush1.msra.mxu0 0.0
  %2623 = vmatprep.subr.mxu0 0.0
  %2624 = vmatpush1.msra.mxu0 0.0
  %2625 = vmatprep.subr.mxu0 0.0
  %2626 = vmatpush1.msra.mxu0 0.0
  %2627 = vmatprep.subr.mxu0 0.0
  %2628 = vmatpush1.msra.mxu0 0.0
  %2629 = vmatprep.subr.mxu0 0.0
  %2630 = vmatpush1.msra.mxu0 0.0
  %2631 = vmatprep.mubr.f32.mxu0 0.0
  %2632 = vmatmul.mubr.f32.gmra.mrb[0].mxu0 %v2562
  %v2633 = vpop.f32.mrb[0].mxu0
  %v2634 = vadd.f32 0.0, %v2633
  %v2635 = vpop.f32.mrb[0].mxu0
  %2636 = vdwg.mxu0
  %v2638 = vsel %vm1495, %v1494, 0
  %v2641 = vsel %vm1499, %v64, 0
  %2643 = vmatprep.subr.mxu0 0.0
  %2644 = vmatpush1.msra.mxu0 %v2641
  %2645 = vmatprep.subr.mxu0 0.0
  %2646 = vmatpush1.msra.mxu0 0.0
  %2647 = vmatprep.subr.mxu0 0.0
  %2648 = vmatpush1.msra.mxu0 0.0
  %2649 = vmatprep.subr.mxu0 0.0
  %2650 = vmatpush1.msra.mxu0 0.0
  %2651 = vmatprep.subr.mxu0 0.0
  %2652 = vmatpush1.msra.mxu0 0.0
  %2653 = vmatprep.subr.mxu0 0.0
  %2654 = vmatpush1.msra.mxu0 0.0
  %2655 = vmatprep.subr.mxu0 0.0
  %2656 = vmatpush1.msra.mxu0 0.0
  %2657 = vmatprep.subr.mxu0 0.0
  %2658 = vmatpush1.msra.mxu0 0.0
  %2659 = vmatprep.subr.mxu0 0.0
  %2660 = vmatpush1.msra.mxu0 0.0
  %2661 = vmatprep.subr.mxu0 0.0
  %2662 = vmatpush1.msra.mxu0 0.0
  %2663 = vmatprep.subr.mxu0 0.0
  %2664 = vmatpush1.msra.mxu0 0.0
  %2665 = vmatprep.subr.mxu0 0.0
  %2666 = vmatpush1.msra.mxu0 0.0
  %2667 = vmatprep.subr.mxu0 0.0
  %2668 = vmatpush1.msra.mxu0 0.0
  %2669 = vmatprep.subr.mxu0 0.0
  %2670 = vmatpush1.msra.mxu0 0.0
  %2671 = vmatprep.subr.mxu0 0.0
  %2672 = vmatpush1.msra.mxu0 0.0
  %2673 = vmatprep.subr.mxu0 0.0
  %2674 = vmatpush1.msra.mxu0 0.0
  %2675 = vmatprep.subr.mxu0 0.0
  %2676 = vmatpush1.msra.mxu0 0.0
  %2677 = vmatprep.subr.mxu0 0.0
  %2678 = vmatpush1.msra.mxu0 0.0
  %2679 = vmatprep.subr.mxu0 0.0
  %2680 = vmatpush1.msra.mxu0 0.0
  %2681 = vmatprep.subr.mxu0 0.0
  %2682 = vmatpush1.msra.mxu0 0.0
  %2683 = vmatprep.subr.mxu0 0.0
  %2684 = vmatpush1.msra.mxu0 0.0
  %2685 = vmatprep.subr.mxu0 0.0
  %2686 = vmatpush1.msra.mxu0 0.0
  %2687 = vmatprep.subr.mxu0 0.0
  %2688 = vmatpush1.msra.mxu0 0.0
  %2689 = vmatprep.subr.mxu0 0.0
  %2690 = vmatpush1.msra.mxu0 0.0
  %2691 = vmatprep.subr.mxu0 0.0
  %2692 = vmatpush1.msra.mxu0 0.0
  %2693 = vmatprep.subr.mxu0 0.0
  %2694 = vmatpush1.msra.mxu0 0.0
  %2695 = vmatprep.subr.mxu0 0.0
  %2696 = vmatpush1.msra.mxu0 0.0
  %2697 = vmatprep.subr.mxu0 0.0
  %2698 = vmatpush1.msra.mxu0 0.0
  %2699 = vmatprep.subr.mxu0 0.0
  %2700 = vmatpush1.msra.mxu0 0.0
  %2701 = vmatprep.subr.mxu0 0.0
  %2702 = vmatpush1.msra.mxu0 0.0
  %2703 = vmatprep.subr.mxu0 0.0
  %2704 = vmatpush1.msra.mxu0 0.0
  %2705 = vmatprep.subr.mxu0 0.0
  %2706 = vmatpush1.msra.mxu0 0.0
  %2707 = vmatprep.mubr.f32.mxu0 0.0
  %2708 = vmatmul.mubr.f32.gmra.mrb[0].mxu0 %v2638
  %v2709 = vpop.f32.mrb[0].mxu0
  %v2710 = vadd.f32 0.0, %v2709
  %v2711 = vpop.f32.mrb[0].mxu0
  %2712 = vdwg.mxu0
  %vm2713 = vcmask 256000
  %2714 = vst.msk [vmem:[%s4] sm:$0x7] %vm2713, %v1570
  %2715 = vst.msk [vmem:[%s4 + $0x4] sm:$0x7] %vm2713, %v1646
  %2716 = vst.msk [vmem:[%s4 + $0x8] sm:$0x7] %vm2713, %v1722
  %2717 = vst.msk [vmem:[%s4 + $0xc] sm:$0x7] %vm2713, %v1798
  %2718 = vst.msk [vmem:[%s4 + $0x10] sm:$0x7] %vm2713, %v1874
  %2719 = vst.msk [vmem:[%s4 + $0x14] sm:$0x7] %vm2713, %v1950
  %2720 = vst.msk [vmem:[%s4 + $0x18] sm:$0x7] %vm2713, %v2026
  %2721 = vst.msk [vmem:[%s4 + $0x1c] sm:$0x7] %vm2713, %v2102
  %2722 = vst.msk [vmem:[%s4 + $0x20] sm:$0x7] %vm2713, %v2178
  %2723 = vst.msk [vmem:[%s4 + $0x24] sm:$0x7] %vm2713, %v2254
  %2724 = vst.msk [vmem:[%s4 + $0x28] sm:$0x7] %vm2713, %v2330
  %2725 = vst.msk [vmem:[%s4 + $0x2c] sm:$0x7] %vm2713, %v2406
  %2726 = vst.msk [vmem:[%s4 + $0x30] sm:$0x7] %vm2713, %v2482
  %2727 = vst.msk [vmem:[%s4 + $0x34] sm:$0x7] %vm2713, %v2558
  %2728 = vst.msk [vmem:[%s4 + $0x38] sm:$0x7] %vm2713, %v2634
  %2729 = vst.msk [vmem:[%s4 + $0x3c] sm:$0x7] %vm2713, %v2710
  // Predicated region
  $region18: #{transformer_forward.12} parent=0 // pred_check
    _
  $region19: #{transformer_forward.12} parent=0 // pred_check_branch
    %2731 = sbr.rel (0) target = $region21
  $region20: #{transformer_forward.12} parent=0 // pred_region
    _
  $region21: #{transformer_forward.12} parent=0 // pred_fallthru
    _
  // Predicated region
  $region22: #{transformer_forward.12} parent=0 // pred_check
    _
  $region23: #{transformer_forward.12} parent=0 // pred_check_branch
    %2733 = sbr.rel (0) target = $region25
  $region24: #{transformer_forward.12} parent=0 // pred_region
    _
  $region25: #{transformer_forward.12} parent=0 // pred_fallthru
    _

// kernel: transformer_forward.21
$region0: #{transformer_forward.21}
  #allocation0 [shape = 'u32[]', space=smem, size = 0x4, offset = 0x4, fixed_abs, tag = 'smem constant byte address 0x4 - core index']
  #allocation1 [shape = 'u32[144,128]{1,0:T(1,128)}', space=vmem, size = 0x12000, scoped, tag = 'internal scratch']
  %s0 = inlined_call_operand.vmem [shape: bf16[8,128], index: 0, kind: input, shape index: {}]
  %s1 = inlined_call_operand.vmem [shape: bf16[128,128], index: 1, kind: input, shape index: {}]
  %s2 = inlined_call_operand.vmem [shape: f32[8,128], index: 2, kind: output, shape index: {}]
  %s3 = sld [smem:[#allocation0]]
  $region18: #{transformer_forward.21} parent=0
    _
  %s5 = ssub.s32 1, %s3
  %s6 = scalar_select 0, %s5, %s3
  // Predicated region
  $region2: #{transformer_forward.21} parent=0 // pred_check
    _
  $region3: #{transformer_forward.21} parent=0 // pred_check_branch
    %8 = sbr.rel (0) target = $region5
  $region4: #{transformer_forward.21} parent=0 // pred_region
    _
  $region5: #{transformer_forward.21} parent=0 // pred_fallthru
    _
  // Predicated region
  $region6: #{transformer_forward.21} parent=0 // pred_check
    _
  $region7: #{transformer_forward.21} parent=0 // pred_check_branch
    %10 = sbr.rel (0) target = $region9
  $region8: #{transformer_forward.21} parent=0 // pred_region
    _
  $region9: #{transformer_forward.21} parent=0 // pred_fallthru
    _
  %v12 = vld [vmem:[%s0] sm:$0xf]
  %v13 = vld [vmem:[%s1] sm:$0xf]
  %v14 = vld [vmem:[%s1 + $0x4] sm:$0xf]
  %v15 = vld [vmem:[%s1 + $0x8] sm:$0xf]
  %v16 = vld [vmem:[%s1 + $0xc] sm:$0xf]
  %v17 = vld [vmem:[%s1 + $0x10] sm:$0xf]
  %v18 = vld [vmem:[%s1 + $0x14] sm:$0xf]
  %v19 = vld [vmem:[%s1 + $0x18] sm:$0xf]
  %v20 = vld [vmem:[%s1 + $0x1c] sm:$0xf]
  %v21 = vld [vmem:[%s1 + $0x20] sm:$0xf]
  %v22 = vld [vmem:[%s1 + $0x24] sm:$0xf]
  %v23 = vld [vmem:[%s1 + $0x28] sm:$0xf]
  %v24 = vld [vmem:[%s1 + $0x2c] sm:$0xf]
  %v25 = vld [vmem:[%s1 + $0x30] sm:$0xf]
  %v26 = vld [vmem:[%s1 + $0x34] sm:$0xf]
  %v27 = vld [vmem:[%s1 + $0x38] sm:$0xf]
  %v28 = vld [vmem:[%s1 + $0x3c] sm:$0xf]
  %v45 = vunpack.c.l.b16 %v13
  %v46 = vunpack.c.l.b16 %v14
  %v47 = vunpack.c.l.b16 %v15
  %v48 = vunpack.c.l.b16 %v16
  %v49 = vunpack.c.l.b16 %v17
  %v50 = vunpack.c.l.b16 %v18
  %v51 = vunpack.c.l.b16 %v19
  %v52 = vunpack.c.l.b16 %v20
  %v53 = vunpack.c.l.b16 %v21
  %v54 = vunpack.c.l.b16 %v22
  %v55 = vunpack.c.l.b16 %v23
  %v56 = vunpack.c.l.b16 %v24
  %v57 = vunpack.c.l.b16 %v25
  %v58 = vunpack.c.l.b16 %v26
  %v59 = vunpack.c.l.b16 %v27
  %v60 = vunpack.c.l.b16 %v28
  %v61 = vpack.c.b16 %v46, %v45
  %v62 = vpack.c.b16 %v48, %v47
  %v63 = vpack.c.b16 %v50, %v49
  %v64 = vpack.c.b16 %v52, %v51
  %v65 = vpack.c.b16 %v54, %v53
  %v66 = vpack.c.b16 %v56, %v55
  %v67 = vpack.c.b16 %v58, %v57
  %v68 = vpack.c.b16 %v60, %v59
  %77 = vmatprep.subr.bf16.mxu0 0
  %78 = vmatpush1.bf16.msra.mxu0 %v61
  %79 = vmatprep.subr.bf16.mxu0 0
  %80 = vmatpush1.bf16.msra.mxu0 %v62
  %81 = vmatprep.subr.bf16.mxu0 0
  %82 = vmatpush1.bf16.msra.mxu0 %v63
  %83 = vmatprep.subr.bf16.mxu0 0
  %84 = vmatpush1.bf16.msra.mxu0 %v64
  %85 = vmatprep.subr.bf16.mxu0 0
  %86 = vmatpush1.bf16.msra.mxu0 %v65
  %87 = vmatprep.subr.bf16.mxu0 0
  %88 = vmatpush1.bf16.msra.mxu0 %v66
  %89 = vmatprep.subr.bf16.mxu0 0
  %90 = vmatpush1.bf16.msra.mxu0 %v67
  %91 = vmatprep.subr.bf16.mxu0 0
  %92 = vmatpush1.bf16.msra.mxu0 %v68
  %93 = vmatprep.subr.bf16.mxu0 0
  %94 = vmatpush1.bf16.msra.mxu0 0
  %95 = vmatprep.subr.bf16.mxu0 0
  %96 = vmatpush1.bf16.msra.mxu0 0
  %97 = vmatprep.subr.bf16.mxu0 0
  %98 = vmatpush1.bf16.msra.mxu0 0
  %99 = vmatprep.subr.bf16.mxu0 0
  %100 = vmatpush1.bf16.msra.mxu0 0
  %101 = vmatprep.subr.bf16.mxu0 0
  %102 = vmatpush1.bf16.msra.mxu0 0
  %103 = vmatprep.subr.bf16.mxu0 0
  %104 = vmatpush1.bf16.msra.mxu0 0
  %105 = vmatprep.subr.bf16.mxu0 0
  %106 = vmatpush1.bf16.msra.mxu0 0
  %107 = vmatprep.subr.bf16.mxu0 0
  %108 = vmatpush1.bf16.msra.mxu0 0
  %109 = vmatprep.mubr.bf16.mxu0 0
  %110 = vmatmul.mubr.bf16.gmra.mrb[0].mxu0 %v12
  %v111 = vpop.f32.mrb[0].mxu0
  %v112 = vadd.f32 0.0, %v111
  %v113 = vpop.f32.mrb[0].mxu0
  %v114 = vpop.f32.mrb[0].mxu0
  %v115 = vpop.f32.mrb[0].mxu0
  %116 = vdwg.mxu0
  %117 = vst [vmem:[%s2] sm:$0xff] %v112
  // Predicated region
  $region10: #{transformer_forward.21} parent=0 // pred_check
    _
  $region11: #{transformer_forward.21} parent=0 // pred_check_branch
    %119 = sbr.rel (0) target = $region13
  $region12: #{transformer_forward.21} parent=0 // pred_region
    _
  $region13: #{transformer_forward.21} parent=0 // pred_fallthru
    _
  // Predicated region
  $region14: #{transformer_forward.21} parent=0 // pred_check
    _
  $region15: #{transformer_forward.21} parent=0 // pred_check_branch
    %121 = sbr.rel (0) target = $region17
  $region16: #{transformer_forward.21} parent=0 // pred_region
    _
  $region17: #{transformer_forward.21} parent=0 // pred_fallthru
    _

</llo_original>
